<compile_context>
chip_gen: v6e
topology: v6e:2x2x1
jax: 0.10.0
libtpu: 0.0.40
codegen_flags: <defaults>
</compile_context>

<pallas_src>
import jax
import jax.numpy as jnp
from jax.experimental import pallas as pl
from jax.experimental.pallas import tpu as pltpu

N_REGIONS = 25
IN_FEATS = N_REGIONS * 2 * 3   # 150 logical input features
HIDDEN = 1000                  # logical hidden width

IN_PAD = 256                   # 150 -> 256 (lane aligned)
HID_PAD = 1024                 # 1000 -> 1024 (lane aligned)
OUT_PAD = 128                  # lane-dense output tile; real output is column 0


def _round_up(x, m):
    return (x + m - 1) // m * m


def _bf16_epilogue_ok():
    """bf16 VALU exists on v6e/v7x; keep the f32 epilogue on v5e and older."""
    try:
        kind = jax.devices()[0].device_kind.lower()
    except Exception:
        return True
    return not any(g in kind for g in ("v5", "v4", "v3", "v2"))


# ---------------------------------------------------------------------------
# Preprocessing (glue, plain JAX, outside the kernel).
# ---------------------------------------------------------------------------
def signal_to_power_and_freq(x, sampling_rate):
    """x: (B, n_regions, 2, T) raw signal -> (B, n_regions, 2, 3) features.

    # TODO(synk): `SignalToPowerAndFreq` source was not provided with the
    # module; this is a deterministic FFT-based stand-in producing
    # (peak_freq_hz, peak_power, total_power) per (region, channel).
    """
    T = x.shape[-1]
    spec = jnp.abs(jnp.fft.rfft(x.astype(jnp.float32), axis=-1)) ** 2
    freqs = jnp.fft.rfftfreq(T, d=1.0 / float(sampling_rate)).astype(jnp.float32)
    peak_idx = jnp.argmax(spec, axis=-1)
    peak_freq = freqs[peak_idx]
    peak_power = jnp.max(spec, axis=-1)
    total_power = jnp.sum(spec, axis=-1)
    return jnp.stack([peak_freq, peak_power, total_power], axis=-1)


# ---------------------------------------------------------------------------
# Pallas kernel: the full MLP hot path (one batch tile per grid step).
# ---------------------------------------------------------------------------
def _mlp_kernel(x_ref, w1, b1, w2, b2, w3, b3, w45, b45, o_ref):
    # x_ref: (TB, 256) bf16; all matmuls accumulate in f32 on the MXU.
    def dense_relu(h, w, b):
        acc = jnp.dot(h, w[...], preferred_element_type=jnp.float32)
        # Bias-add + ReLU in the bias dtype (bf16 on v6e/v7x, f32 on v5e);
        # activation staged as bf16 for the next MXU matmul either way.
        return jnp.maximum(acc.astype(b.dtype) + b[...], 0).astype(jnp.bfloat16)

    h = dense_relu(x_ref[...], w1, b1)   # Linear(150->150)  + ReLU (padded 256x256)
    h = dense_relu(h, w2, b2)            # Linear(150->1000) + ReLU (padded 256x1024)
    h = dense_relu(h, w3, b3)            # Linear(1000->1000)+ ReLU (padded 1024x1024)

    # Fused Linear(1000->1000) [no ReLU] + Linear(1000->1):
    # W45 = W4 @ w5 folded in f32 at prepare time -> a single (1, 1024) row.
    # VPU multiply + XLU cross-lane reduction (no N=1 MXU matmul).
    y = jnp.sum(h.astype(jnp.float32) * w45[...], axis=-1, keepdims=True)  # (TB, 1)
    o_ref[...] = (jnp.broadcast_to(y, o_ref.shape) + b45[...]).astype(o_ref.dtype)


def mlp_forward(x_feat, padded_params, *, tb=512):
    """x_feat: (B, 150) f32, padded_params: output of prepare_params()."""
    B = x_feat.shape[0]
    # TB=512 amortizes per-grid-step overhead on v6e/v7x (also fine on v5e);
    # small batches round up to a multiple of 16 for bf16 sublane packing.
    TB = min(tb, _round_up(max(B, 1), 16))
    B_pad = _round_up(B, TB)

    # Pad batch rows and feature lanes with zeros, cast activations to bf16.
    x_pad = jnp.zeros((B_pad, IN_PAD), jnp.float32)
    x_pad = x_pad.at[:B, :IN_FEATS].set(x_feat).astype(jnp.bfloat16)

    flat = [a for pair in padded_params for a in pair]
    operands = [x_pad] + flat

    in_specs = [pl.BlockSpec((TB, IN_PAD), lambda i: (i, 0))]
    # Weights/biases: constant index_map + single-buffered -> resident in VMEM,
    # DMA'd exactly once, half the footprint of the default double-buffering.
    in_specs += [
        pl.BlockSpec(a.shape, lambda i: (0, 0), pipeline_mode=pl.Buffered(1))
        for a in flat
    ]
    out_spec = pl.BlockSpec((TB, OUT_PAD), lambda i: (i, 0))

    flops = 2 * B_pad * (IN_PAD * IN_PAD + IN_PAD * HID_PAD
                         + HID_PAD * HID_PAD + HID_PAD)
    bytes_accessed = int(sum(a.size * a.dtype.itemsize for a in operands)
                         + B_pad * OUT_PAD * 4)

    out = pl.pallas_call(
        _mlp_kernel,
        out_shape=jax.ShapeDtypeStruct((B_pad, OUT_PAD), jnp.float32),
        grid=(B_pad // TB,),
        in_specs=in_specs,
        out_specs=out_spec,
        compiler_params=pltpu.CompilerParams(
            dimension_semantics=("parallel",),   # shards batch tiles across TCs
            vmem_limit_bytes=32 << 20,           # fits v5e/v6e (128 MiB) and v7x (64 MiB)
        ),
        cost_estimate=pl.CostEstimate(
            flops=flops, transcendentals=0, bytes_accessed=bytes_accessed),
    )(*operands)
    return out[:B, :1]


# ---------------------------------------------------------------------------
# Parameters: PyTorch nn.Linear-style init (logical dims), then a one-time
# fold-fuse-pad-and-cast step to MXU-aligned bf16 weights.
# ---------------------------------------------------------------------------
def init_params(key):
    dims = [(IN_FEATS, IN_FEATS),
            (IN_FEATS, HIDDEN),
            (HIDDEN, HIDDEN),
            (HIDDEN, HIDDEN),
            (HIDDEN, 1)]
    params = []
    for (din, dout) in dims:
        key, kw, kb = jax.random.split(key, 3)
        bound = 1.0 / jnp.sqrt(jnp.float32(din))
        w = jax.random.uniform(kw, (din, dout), jnp.float32, -bound, bound)
        b = jax.random.uniform(kb, (1, dout), jnp.float32, -bound, bound)
        params.append((w, b))
    return params


def prepare_params(params, bf16_epilogue=None):
    """Fuse layers 4+5 in f32, zero-pad to lane-aligned shapes, cast to bf16."""
    if bf16_epilogue is None:
        bf16_epilogue = _bf16_epilogue_ok()
    bias_dtype = jnp.bfloat16 if bf16_epilogue else jnp.float32

    padded_dims = [(IN_PAD, IN_PAD), (IN_PAD, HID_PAD), (HID_PAD, HID_PAD)]
    out = []
    for (w, b), (dpi, dpo) in zip(params[:3], padded_dims):
        din, dout = w.shape
        wp = jnp.zeros((dpi, dpo), jnp.float32).at[:din, :dout].set(w)
        bp = jnp.zeros((1, dpo), jnp.float32).at[:, :dout].set(b)
        out.append((wp.astype(jnp.bfloat16), bp.astype(bias_dtype)))

    # Algebraic fusion of layer 4 (no activation) with layer 5, done in f32 on
    # the raw (pre-bf16) weights so rounding isn't compounded:
    #   y = (h @ W4 + b4) @ w5 + b5 = h @ (W4 @ w5) + (b4 @ w5 + b5)
    w4, b4 = params[3]                      # (1000, 1000), (1, 1000)
    w5, b5 = params[4]                      # (1000, 1),    (1, 1)
    w45 = w4 @ w5                           # (1000, 1)
    b45 = (b4 @ w5 + b5)[0, 0]              # scalar
    w45_row = jnp.zeros((1, HID_PAD), jnp.float32).at[:, :HIDDEN].set(w45[:, 0][None, :])
    b45_row = jnp.full((1, OUT_PAD), b45, jnp.float32)
    out.append((w45_row, b45_row))
    return out


def rppgnn_forward(x_signal, padded_params, sampling_rate):
    feats = signal_to_power_and_freq(x_signal, sampling_rate)   # (B, 25, 2, 3)
    x_flat = feats.reshape(feats.shape[0], -1)                  # (B, 150) == nn.Flatten
    return mlp_forward(x_flat, padded_params)                   # (B, 1)


if __name__ == "__main__":
    key = jax.random.PRNGKey(0)
    k_x, k_p = jax.random.split(key)

    B, T = 2, 128
    sampling_rate = 30.0
    # raw rPPG-style signal: (batch, n_regions, 2 channels, time)
    x = jax.random.normal(k_x, (B, N_REGIONS, 2, T), dtype=jnp.float32)

    params = prepare_params(init_params(k_p))

    out = rppgnn_forward(x, params, sampling_rate)
    jax.block_until_ready(out)
    assert out.shape == (B, 1)
    print("KERNEL_OK")
</pallas_src>

<mosaic_0001>
module attributes {stable_mosaic.version = 11 : i64} {
  func.func @_mlp_kernel(%arg0: i32, %arg1: memref<16x256xbf16, #tpu.memory_space<vmem>>, %arg2: memref<256x256xbf16, #tpu.memory_space<vmem>>, %arg3: memref<1x256xbf16, #tpu.memory_space<vmem>>, %arg4: memref<256x1024xbf16, #tpu.memory_space<vmem>>, %arg5: memref<1x1024xbf16, #tpu.memory_space<vmem>>, %arg6: memref<1024x1024xbf16, #tpu.memory_space<vmem>>, %arg7: memref<1x1024xbf16, #tpu.memory_space<vmem>>, %arg8: memref<1x1024xf32, #tpu.memory_space<vmem>>, %arg9: memref<1x128xf32, #tpu.memory_space<vmem>>, %arg10: memref<16x128xf32, #tpu.memory_space<vmem>>) attributes {dimension_semantics = [#tpu.dimension_semantics<parallel>], iteration_bounds = array<i64: 1>, scalar_prefetch = 0 : i64, scratch_operands = 0 : i64, tpu.core_type = #tpu.core_type<tc>, window_params = [{transform_indices = @transform_0, window_bounds = array<i64: 16, 256>}, {pipeline_mode = #tpu.pipeline_mode<synchronous>, transform_indices = @transform_1, window_bounds = array<i64: 256, 256>}, {pipeline_mode = #tpu.pipeline_mode<synchronous>, transform_indices = @transform_2, window_bounds = array<i64: 1, 256>}, {pipeline_mode = #tpu.pipeline_mode<synchronous>, transform_indices = @transform_3, window_bounds = array<i64: 256, 1024>}, {pipeline_mode = #tpu.pipeline_mode<synchronous>, transform_indices = @transform_4, window_bounds = array<i64: 1, 1024>}, {pipeline_mode = #tpu.pipeline_mode<synchronous>, transform_indices = @transform_5, window_bounds = array<i64: 1024, 1024>}, {pipeline_mode = #tpu.pipeline_mode<synchronous>, transform_indices = @transform_6, window_bounds = array<i64: 1, 1024>}, {pipeline_mode = #tpu.pipeline_mode<synchronous>, transform_indices = @transform_7, window_bounds = array<i64: 1, 1024>}, {pipeline_mode = #tpu.pipeline_mode<synchronous>, transform_indices = @transform_8, window_bounds = array<i64: 1, 128>}, {transform_indices = @transform_9, window_bounds = array<i64: 16, 128>}]} {
    %c0 = arith.constant 0 : index
    %c0_0 = arith.constant 0 : index
    %0 = vector.load %arg1[%c0, %c0_0] : memref<16x256xbf16, #tpu.memory_space<vmem>>, vector<16x256xbf16>
    %c0_1 = arith.constant 0 : index
    %c0_2 = arith.constant 0 : index
    %1 = vector.load %arg2[%c0_1, %c0_2] : memref<256x256xbf16, #tpu.memory_space<vmem>>, vector<256x256xbf16>
    %cst = arith.constant dense<0.000000e+00> : vector<16x256xf32>
    %2 = tpu.matmul %0, %1, %cst {dimension_numbers = #tpu.dot_dimension_numbers<[1], [0], [0], [1], [0, 0, 1, 1], [], []>} : vector<16x256xbf16>, vector<256x256xbf16>, vector<16x256xf32> -> vector<16x256xf32>
    %3 = arith.truncf %2 : vector<16x256xf32> to vector<16x256xbf16>
    %c0_3 = arith.constant 0 : index
    %c0_4 = arith.constant 0 : index
    %4 = vector.load %arg3[%c0_3, %c0_4] : memref<1x256xbf16, #tpu.memory_space<vmem>>, vector<1x256xbf16>
    %5 = vector.broadcast %4 : vector<1x256xbf16> to vector<16x256xbf16>
    %6 = arith.addf %3, %5 : vector<16x256xbf16>
    %cst_5 = arith.constant 0.000000e+00 : bf16
    %7 = vector.broadcast %cst_5 : bf16 to vector<16x256xbf16>
    %8 = arith.maximumf %6, %7 : vector<16x256xbf16>
    %c0_6 = arith.constant 0 : index
    %c0_7 = arith.constant 0 : index
    %9 = vector.load %arg4[%c0_6, %c0_7] : memref<256x1024xbf16, #tpu.memory_space<vmem>>, vector<256x1024xbf16>
    %cst_8 = arith.constant dense<0.000000e+00> : vector<16x1024xf32>
    %10 = tpu.matmul %8, %9, %cst_8 {dimension_numbers = #tpu.dot_dimension_numbers<[1], [0], [0], [1], [0, 0, 1, 1], [], []>} : vector<16x256xbf16>, vector<256x1024xbf16>, vector<16x1024xf32> -> vector<16x1024xf32>
    %11 = arith.truncf %10 : vector<16x1024xf32> to vector<16x1024xbf16>
    %c0_9 = arith.constant 0 : index
    %c0_10 = arith.constant 0 : index
    %12 = vector.load %arg5[%c0_9, %c0_10] : memref<1x1024xbf16, #tpu.memory_space<vmem>>, vector<1x1024xbf16>
    %13 = vector.broadcast %12 : vector<1x1024xbf16> to vector<16x1024xbf16>
    %14 = arith.addf %11, %13 : vector<16x1024xbf16>
    %cst_11 = arith.constant 0.000000e+00 : bf16
    %15 = vector.broadcast %cst_11 : bf16 to vector<16x1024xbf16>
    %16 = arith.maximumf %14, %15 : vector<16x1024xbf16>
    %c0_12 = arith.constant 0 : index
    %c0_13 = arith.constant 0 : index
    %17 = vector.load %arg6[%c0_12, %c0_13] : memref<1024x1024xbf16, #tpu.memory_space<vmem>>, vector<1024x1024xbf16>
    %cst_14 = arith.constant dense<0.000000e+00> : vector<16x1024xf32>
    %18 = tpu.matmul %16, %17, %cst_14 {dimension_numbers = #tpu.dot_dimension_numbers<[1], [0], [0], [1], [0, 0, 1, 1], [], []>} : vector<16x1024xbf16>, vector<1024x1024xbf16>, vector<16x1024xf32> -> vector<16x1024xf32>
    %19 = arith.truncf %18 : vector<16x1024xf32> to vector<16x1024xbf16>
    %c0_15 = arith.constant 0 : index
    %c0_16 = arith.constant 0 : index
    %20 = vector.load %arg7[%c0_15, %c0_16] : memref<1x1024xbf16, #tpu.memory_space<vmem>>, vector<1x1024xbf16>
    %21 = vector.broadcast %20 : vector<1x1024xbf16> to vector<16x1024xbf16>
    %22 = arith.addf %19, %21 : vector<16x1024xbf16>
    %cst_17 = arith.constant 0.000000e+00 : bf16
    %23 = vector.broadcast %cst_17 : bf16 to vector<16x1024xbf16>
    %24 = arith.maximumf %22, %23 : vector<16x1024xbf16>
    %25 = arith.extf %24 : vector<16x1024xbf16> to vector<16x1024xf32>
    %c0_18 = arith.constant 0 : index
    %c0_19 = arith.constant 0 : index
    %26 = vector.load %arg8[%c0_18, %c0_19] : memref<1x1024xf32, #tpu.memory_space<vmem>>, vector<1x1024xf32>
    %27 = vector.broadcast %26 : vector<1x1024xf32> to vector<16x1024xf32>
    %28 = arith.mulf %25, %27 : vector<16x1024xf32>
    %cst_20 = arith.constant dense<0.000000e+00> : vector<16xf32>
    %29 = vector.multi_reduction <add>, %28, %cst_20 [1] : vector<16x1024xf32> to vector<16xf32>
    %30 = vector.shape_cast %29 : vector<16xf32> to vector<16x1xf32>
    %31 = vector.shape_cast %30 : vector<16x1xf32> to vector<16x1xf32>
    %32 = vector.broadcast %31 : vector<16x1xf32> to vector<16x128xf32>
    %c0_21 = arith.constant 0 : index
    %c0_22 = arith.constant 0 : index
    %33 = vector.load %arg9[%c0_21, %c0_22] : memref<1x128xf32, #tpu.memory_space<vmem>>, vector<1x128xf32>
    %34 = vector.broadcast %33 : vector<1x128xf32> to vector<16x128xf32>
    %35 = arith.addf %32, %34 : vector<16x128xf32>
    %c0_23 = arith.constant 0 : index
    %c0_24 = arith.constant 0 : index
    %36 = vector.load %arg10[%c0_23, %c0_24] : memref<16x128xf32, #tpu.memory_space<vmem>>, vector<16x128xf32>
    tpu.vector_store %arg10[%c0_23, %c0_24], %35 {strides = array<i32>} : memref<16x128xf32, #tpu.memory_space<vmem>>, vector<16x128xf32>,
    return
  }
  func.func @transform_0(%arg0: i32) -> (i32, i32) {
    %c0_i32 = arith.constant 0 : i32
    %c0_i32_0 = arith.constant 0 : i32
    return %arg0, %c0_i32 : i32, i32
  }
  func.func @transform_1(%arg0: i32) -> (i32, i32) {
    %c0_i32 = arith.constant 0 : i32
    %c0_i32_0 = arith.constant 0 : i32
    %c0_i32_1 = arith.constant 0 : i32
    return %c0_i32, %c0_i32_0 : i32, i32
  }
  func.func @transform_2(%arg0: i32) -> (i32, i32) {
    %c0_i32 = arith.constant 0 : i32
    %c0_i32_0 = arith.constant 0 : i32
    %c0_i32_1 = arith.constant 0 : i32
    return %c0_i32, %c0_i32_0 : i32, i32
  }
  func.func @transform_3(%arg0: i32) -> (i32, i32) {
    %c0_i32 = arith.constant 0 : i32
    %c0_i32_0 = arith.constant 0 : i32
    %c0_i32_1 = arith.constant 0 : i32
    return %c0_i32, %c0_i32_0 : i32, i32
  }
  func.func @transform_4(%arg0: i32) -> (i32, i32) {
    %c0_i32 = arith.constant 0 : i32
    %c0_i32_0 = arith.constant 0 : i32
    %c0_i32_1 = arith.constant 0 : i32
    return %c0_i32, %c0_i32_0 : i32, i32
  }
  func.func @transform_5(%arg0: i32) -> (i32, i32) {
    %c0_i32 = arith.constant 0 : i32
    %c0_i32_0 = arith.constant 0 : i32
    %c0_i32_1 = arith.constant 0 : i32
    return %c0_i32, %c0_i32_0 : i32, i32
  }
  func.func @transform_6(%arg0: i32) -> (i32, i32) {
    %c0_i32 = arith.constant 0 : i32
    %c0_i32_0 = arith.constant 0 : i32
    %c0_i32_1 = arith.constant 0 : i32
    return %c0_i32, %c0_i32_0 : i32, i32
  }
  func.func @transform_7(%arg0: i32) -> (i32, i32) {
    %c0_i32 = arith.constant 0 : i32
    %c0_i32_0 = arith.constant 0 : i32
    %c0_i32_1 = arith.constant 0 : i32
    return %c0_i32, %c0_i32_0 : i32, i32
  }
  func.func @transform_8(%arg0: i32) -> (i32, i32) {
    %c0_i32 = arith.constant 0 : i32
    %c0_i32_0 = arith.constant 0 : i32
    %c0_i32_1 = arith.constant 0 : i32
    return %c0_i32, %c0_i32_0 : i32, i32
  }
  func.func @transform_9(%arg0: i32) -> (i32, i32) {
    %c0_i32 = arith.constant 0 : i32
    %c0_i32_0 = arith.constant 0 : i32
    return %arg0, %c0_i32 : i32, i32
  }
}

</mosaic_0001>

<llo_original>
// kernel: tpu_custom_call.1
$region0: #{tpu_custom_call.1}
  #allocation0 [shape = 'u32[]', space=smem, size = 0x4, offset = 0x4, fixed_abs, tag = 'smem constant byte address 0x4 - core index']
  #allocation1 [shape = 'u32[144,128]{1,0:T(1,128)}', space=vmem, size = 0x12000, scoped, tag = 'internal scratch']
  %s0 = inlined_call_operand.hbm [shape: bf16[16,256], index: 0, kind: input, shape index: {}]
  %s1 = inlined_call_operand.hbm [shape: bf16[256,256], index: 1, kind: input, shape index: {}]
  %s2 = inlined_call_operand.hbm [shape: bf16[1,256], index: 2, kind: input, shape index: {}]
  %s3 = inlined_call_operand.hbm [shape: bf16[256,1024], index: 3, kind: input, shape index: {}]
  %s4 = inlined_call_operand.hbm [shape: bf16[1,1024], index: 4, kind: input, shape index: {}]
  %s5 = inlined_call_operand.hbm [shape: bf16[1024,1024], index: 5, kind: input, shape index: {}]
  %s6 = inlined_call_operand.hbm [shape: bf16[1,1024], index: 6, kind: input, shape index: {}]
  %s7 = inlined_call_operand.hbm [shape: f32[1,1024], index: 7, kind: input, shape index: {}]
  %s8 = inlined_call_operand.hbm [shape: f32[1,128], index: 8, kind: input, shape index: {}]
  %s9 = inlined_call_operand.hbm [shape: f32[16,128], index: 9, kind: output, shape index: {}]
  %s10 = sld [smem:[#allocation0]]
  $region82: #{tpu_custom_call.1} parent=0
    _
  %s12 = ssub.s32 1, %s10
  %s13 = scalar_select 0, %s12, %s10
  $region1: #{tpu_custom_call.1} parent=0
    #allocation2 [shape = 'u8[8192]{0}', space=vmem, size = 0x2000, scoped, tag = 'input window, operand 0, single buffered']
    #allocation3 [shape = 's32[1]{0}', space=sflag, size = 0x4, scoped, tag = 'scoped memory for tpu_custom_call.1']
    #allocation4 [shape = 's32[1]{0}', space=sflag, size = 0x4, scoped, tag = 'scoped memory for tpu_custom_call.1']
    #allocation5 [shape = 'u8[131072]{0}', space=vmem, size = 0x20000, scoped, tag = 'input window, operand 1, single buffered']
    #allocation6 [shape = 's32[1]{0}', space=sflag, size = 0x4, scoped, tag = 'scoped memory for tpu_custom_call.1']
    #allocation7 [shape = 'u8[1024]{0}', space=vmem, size = 0x400, scoped, tag = 'input window, operand 2, single buffered']
    #allocation8 [shape = 'u8[524288]{0}', space=vmem, size = 0x80000, scoped, tag = 'input window, operand 3, single buffered']
    #allocation9 [shape = 's32[1]{0}', space=sflag, size = 0x4, scoped, tag = 'scoped memory for tpu_custom_call.1']
    #allocation10 [shape = 'u8[4096]{0}', space=vmem, size = 0x1000, scoped, tag = 'input window, operand 4, single buffered']
    #allocation11 [shape = 'u8[2097152]{0}', space=vmem, size = 0x200000, scoped, tag = 'input window, operand 5, single buffered']
    #allocation12 [shape = 's32[1]{0}', space=sflag, size = 0x4, scoped, tag = 'scoped memory for tpu_custom_call.1']
    #allocation13 [shape = 'u8[4096]{0}', space=vmem, size = 0x1000, scoped, tag = 'input window, operand 6, single buffered']
    #allocation14 [shape = 'u8[4096]{0}', space=vmem, size = 0x1000, scoped, tag = 'input window, operand 7, single buffered']
    #allocation15 [shape = 's32[1]{0}', space=sflag, size = 0x4, scoped, tag = 'scoped memory for tpu_custom_call.1']
    #allocation16 [shape = 'u8[512]{0}', space=vmem, size = 0x400, scoped, tag = 'input window, operand 8, single buffered']
    #allocation17 [shape = 'u8[8192]{0}', space=vmem, size = 0x2000, scoped, tag = 'output window, operand 0, single buffered']
    %14 = vsyncpa [#allocation3], 0
    %15 = vsyncpa [#allocation6], 0
    %16 = vsyncpa [#allocation9], 0
    %17 = vsyncpa [#allocation12], 0
    %18 = vsyncpa [#allocation15], 0
    %19 = vsyncpa [#allocation4], 0
    // Predicated region
    $region2: #{tpu_custom_call.1} parent=1 // pred_check
      _
    $region3: #{tpu_custom_call.1} parent=1 // pred_check_branch
      %21 = sbr.rel (0) target = $region5
    $region4: #{tpu_custom_call.1} parent=1 // pred_region
      %s23 = ssub.s32 256, 256
      %24 = vsyncadd [#allocation3], %s23
      %s25 = sshll.u32 [#allocation2], 4
      %s26 = int_to_ptr.vmem [resolvable:$true] %s25
      %31 = dma.hbm_to_vmem [thread:$0]  %s0, 256, %s26, [#allocation3], 128, 128, 8
    $region5: #{tpu_custom_call.1} parent=1 // pred_fallthru
      _
    // Predicated region
    $region6: #{tpu_custom_call.1} parent=1 // pred_check
      _
    $region7: #{tpu_custom_call.1} parent=1 // pred_check_branch
      %33 = sbr.rel (0) target = $region9
    $region8: #{tpu_custom_call.1} parent=1 // pred_region
      %s35 = ssub.s32 4096, 4096
      %36 = vsyncadd [#allocation6], %s35
      %s37 = sshll.u32 [#allocation5], 4
      %s38 = int_to_ptr.vmem [resolvable:$true] %s37
      %43 = dma.hbm_to_vmem [thread:$0]  %s1, 4096, %s38, [#allocation6], 128, 128, 8
    $region9: #{tpu_custom_call.1} parent=1 // pred_fallthru
      _
    // Predicated region
    $region10: #{tpu_custom_call.1} parent=1 // pred_check
      _
    $region11: #{tpu_custom_call.1} parent=1 // pred_check_branch
      %45 = sbr.rel (0) target = $region13
    $region12: #{tpu_custom_call.1} parent=1 // pred_region
      %s47 = ssub.s32 32, 32
      %48 = vsyncadd [#allocation6], %s47
      %s50 = sshll.u32 [#allocation7], 4
      %s51 = int_to_ptr.vmem [resolvable:$true] %s50
      %53 = dma.hbm_to_vmem [thread:$0]  %s2, 32, %s51, [#allocation6]
    $region13: #{tpu_custom_call.1} parent=1 // pred_fallthru
      _
    // Predicated region
    $region14: #{tpu_custom_call.1} parent=1 // pred_check
      _
    $region15: #{tpu_custom_call.1} parent=1 // pred_check_branch
      %55 = sbr.rel (0) target = $region17
    $region16: #{tpu_custom_call.1} parent=1 // pred_region
      %s57 = ssub.s32 16384, 16384
      %58 = vsyncadd [#allocation9], %s57
      %s59 = sshll.u32 [#allocation8], 4
      %s60 = int_to_ptr.vmem [resolvable:$true] %s59
      %65 = dma.hbm_to_vmem [thread:$0]  %s3, 16384, %s60, [#allocation9], 512, 512, 32
    $region17: #{tpu_custom_call.1} parent=1 // pred_fallthru
      _
    // Predicated region
    $region18: #{tpu_custom_call.1} parent=1 // pred_check
      _
    $region19: #{tpu_custom_call.1} parent=1 // pred_check_branch
      %67 = sbr.rel (0) target = $region21
    $region20: #{tpu_custom_call.1} parent=1 // pred_region
      %s69 = ssub.s32 128, 128
      %70 = vsyncadd [#allocation9], %s69
      %s72 = sshll.u32 [#allocation10], 4
      %s73 = int_to_ptr.vmem [resolvable:$true] %s72
      %75 = dma.hbm_to_vmem [thread:$0]  %s4, 128, %s73, [#allocation9]
    $region21: #{tpu_custom_call.1} parent=1 // pred_fallthru
      _
    // Predicated region
    $region22: #{tpu_custom_call.1} parent=1 // pred_check
      _
    $region23: #{tpu_custom_call.1} parent=1 // pred_check_branch
      %77 = sbr.rel (0) target = $region25
    $region24: #{tpu_custom_call.1} parent=1 // pred_region
      %s79 = ssub.s32 65536, 65536
      %80 = vsyncadd [#allocation12], %s79
      %s81 = sshll.u32 [#allocation11], 4
      %s82 = int_to_ptr.vmem [resolvable:$true] %s81
      %87 = dma.hbm_to_vmem [thread:$0]  %s5, 65536, %s82, [#allocation12], 512, 512, 32
    $region25: #{tpu_custom_call.1} parent=1 // pred_fallthru
      _
    // Predicated region
    $region26: #{tpu_custom_call.1} parent=1 // pred_check
      _
    $region27: #{tpu_custom_call.1} parent=1 // pred_check_branch
      %89 = sbr.rel (0) target = $region29
    $region28: #{tpu_custom_call.1} parent=1 // pred_region
      %s91 = ssub.s32 128, 128
      %92 = vsyncadd [#allocation12], %s91
      %s94 = sshll.u32 [#allocation13], 4
      %s95 = int_to_ptr.vmem [resolvable:$true] %s94
      %97 = dma.hbm_to_vmem [thread:$0]  %s6, 128, %s95, [#allocation12]
    $region29: #{tpu_custom_call.1} parent=1 // pred_fallthru
      _
    // Predicated region
    $region30: #{tpu_custom_call.1} parent=1 // pred_check
      _
    $region31: #{tpu_custom_call.1} parent=1 // pred_check_branch
      %99 = sbr.rel (0) target = $region33
    $region32: #{tpu_custom_call.1} parent=1 // pred_region
      %s101 = ssub.s32 128, 128
      %102 = vsyncadd [#allocation15], %s101
      %s104 = sshll.u32 [#allocation14], 4
      %s105 = int_to_ptr.vmem [resolvable:$true] %s104
      %107 = dma.hbm_to_vmem [thread:$0]  %s7, 128, %s105, [#allocation15]
    $region33: #{tpu_custom_call.1} parent=1 // pred_fallthru
      _
    // Predicated region
    $region34: #{tpu_custom_call.1} parent=1 // pred_check
      _
    $region35: #{tpu_custom_call.1} parent=1 // pred_check_branch
      %109 = sbr.rel (0) target = $region37
    $region36: #{tpu_custom_call.1} parent=1 // pred_region
      %s111 = ssub.s32 16, 16
      %112 = vsyncadd [#allocation15], %s111
      %s114 = sshll.u32 [#allocation16], 4
      %s115 = int_to_ptr.vmem [resolvable:$true] %s114
      %117 = dma.hbm_to_vmem [thread:$0]  %s8, 16, %s115, [#allocation15]
    $region37: #{tpu_custom_call.1} parent=1 // pred_fallthru
      _
    // Predicated region
    $region38: #{tpu_custom_call.1} parent=1 // pred_check
      _
    $region39: #{tpu_custom_call.1} parent=1 // pred_check_branch
      %119 = sbr.rel (0) target = $region41
    $region40: #{tpu_custom_call.1} parent=1 // pred_region
      %120 = dma.done [#allocation3], 256
    $region41: #{tpu_custom_call.1} parent=1 // pred_fallthru
      _
    // Predicated region
    $region42: #{tpu_custom_call.1} parent=1 // pred_check
      _
    $region43: #{tpu_custom_call.1} parent=1 // pred_check_branch
      %122 = sbr.rel (0) target = $region45
    $region44: #{tpu_custom_call.1} parent=1 // pred_region
      %123 = dma.done [#allocation6], 4096
    $region45: #{tpu_custom_call.1} parent=1 // pred_fallthru
      _
    // Predicated region
    $region46: #{tpu_custom_call.1} parent=1 // pred_check
      _
    $region47: #{tpu_custom_call.1} parent=1 // pred_check_branch
      %125 = sbr.rel (0) target = $region49
    $region48: #{tpu_custom_call.1} parent=1 // pred_region
      %126 = dma.done [#allocation6], 32
    $region49: #{tpu_custom_call.1} parent=1 // pred_fallthru
      _
    // Predicated region
    $region50: #{tpu_custom_call.1} parent=1 // pred_check
      _
    $region51: #{tpu_custom_call.1} parent=1 // pred_check_branch
      %128 = sbr.rel (0) target = $region53
    $region52: #{tpu_custom_call.1} parent=1 // pred_region
      %129 = dma.done [#allocation9], 16384
    $region53: #{tpu_custom_call.1} parent=1 // pred_fallthru
      _
    // Predicated region
    $region54: #{tpu_custom_call.1} parent=1 // pred_check
      _
    $region55: #{tpu_custom_call.1} parent=1 // pred_check_branch
      %131 = sbr.rel (0) target = $region57
    $region56: #{tpu_custom_call.1} parent=1 // pred_region
      %132 = dma.done [#allocation9], 128
    $region57: #{tpu_custom_call.1} parent=1 // pred_fallthru
      _
    // Predicated region
    $region58: #{tpu_custom_call.1} parent=1 // pred_check
      _
    $region59: #{tpu_custom_call.1} parent=1 // pred_check_branch
      %134 = sbr.rel (0) target = $region61
    $region60: #{tpu_custom_call.1} parent=1 // pred_region
      %135 = dma.done [#allocation12], 65536
    $region61: #{tpu_custom_call.1} parent=1 // pred_fallthru
      _
    // Predicated region
    $region62: #{tpu_custom_call.1} parent=1 // pred_check
      _
    $region63: #{tpu_custom_call.1} parent=1 // pred_check_branch
      %137 = sbr.rel (0) target = $region65
    $region64: #{tpu_custom_call.1} parent=1 // pred_region
      %138 = dma.done [#allocation12], 128
    $region65: #{tpu_custom_call.1} parent=1 // pred_fallthru
      _
    // Predicated region
    $region66: #{tpu_custom_call.1} parent=1 // pred_check
      _
    $region67: #{tpu_custom_call.1} parent=1 // pred_check_branch
      %140 = sbr.rel (0) target = $region69
    $region68: #{tpu_custom_call.1} parent=1 // pred_region
      %141 = dma.done [#allocation15], 128
    $region69: #{tpu_custom_call.1} parent=1 // pred_fallthru
      _
    // Predicated region
    $region70: #{tpu_custom_call.1} parent=1 // pred_check
      _
    $region71: #{tpu_custom_call.1} parent=1 // pred_check_branch
      %143 = sbr.rel (0) target = $region73
    $region72: #{tpu_custom_call.1} parent=1 // pred_region
      %144 = dma.done [#allocation15], 16
    $region73: #{tpu_custom_call.1} parent=1 // pred_fallthru
      _
    %v146 = vld [vmem:[#allocation2] sm:$0xff]
    %v147 = vld [vmem:[#allocation2 + $0x8] sm:$0xff]
    %v148 = vld [vmem:[#allocation5] sm:$0xff]
    %v149 = vld [vmem:[#allocation5 + $0x8] sm:$0xff]
    %v150 = vld [vmem:[#allocation5 + $0x10] sm:$0xff]
    %v151 = vld [vmem:[#allocation5 + $0x18] sm:$0xff]
    %v152 = vld [vmem:[#allocation5 + $0x20] sm:$0xff]
    %v153 = vld [vmem:[#allocation5 + $0x28] sm:$0xff]
    %v154 = vld [vmem:[#allocation5 + $0x30] sm:$0xff]
    %v155 = vld [vmem:[#allocation5 + $0x38] sm:$0xff]
    %v156 = vld [vmem:[#allocation5 + $0x40] sm:$0xff]
    %v157 = vld [vmem:[#allocation5 + $0x48] sm:$0xff]
    %v158 = vld [vmem:[#allocation5 + $0x50] sm:$0xff]
    %v159 = vld [vmem:[#allocation5 + $0x58] sm:$0xff]
    %v160 = vld [vmem:[#allocation5 + $0x60] sm:$0xff]
    %v161 = vld [vmem:[#allocation5 + $0x68] sm:$0xff]
    %v162 = vld [vmem:[#allocation5 + $0x70] sm:$0xff]
    %v163 = vld [vmem:[#allocation5 + $0x78] sm:$0xff]
    %v164 = vld [vmem:[#allocation5 + $0x80] sm:$0xff]
    %v165 = vld [vmem:[#allocation5 + $0x88] sm:$0xff]
    %v166 = vld [vmem:[#allocation5 + $0x90] sm:$0xff]
    %v167 = vld [vmem:[#allocation5 + $0x98] sm:$0xff]
    %v168 = vld [vmem:[#allocation5 + $0xa0] sm:$0xff]
    %v169 = vld [vmem:[#allocation5 + $0xa8] sm:$0xff]
    %v170 = vld [vmem:[#allocation5 + $0xb0] sm:$0xff]
    %v171 = vld [vmem:[#allocation5 + $0xb8] sm:$0xff]
    %v172 = vld [vmem:[#allocation5 + $0xc0] sm:$0xff]
    %v173 = vld [vmem:[#allocation5 + $0xc8] sm:$0xff]
    %v174 = vld [vmem:[#allocation5 + $0xd0] sm:$0xff]
    %v175 = vld [vmem:[#allocation5 + $0xd8] sm:$0xff]
    %v176 = vld [vmem:[#allocation5 + $0xe0] sm:$0xff]
    %v177 = vld [vmem:[#allocation5 + $0xe8] sm:$0xff]
    %v178 = vld [vmem:[#allocation5 + $0xf0] sm:$0xff]
    %v179 = vld [vmem:[#allocation5 + $0xf8] sm:$0xff]
    %v182 = vunpack.c.l.b16 %v146
    %v183 = vunpack.c.h.b16 %v146
    %v184 = vunpack.c.l.b16 %v147
    %v185 = vunpack.c.h.b16 %v147
    %v186 = vpack.c.b16 %v184, %v182
    %v187 = vpack.c.b16 %v185, %v183
    %v222 = vunpack.c.l.b16 %v148
    %v223 = vunpack.c.h.b16 %v148
    %v224 = vunpack.c.l.b16 %v149
    %v225 = vunpack.c.h.b16 %v149
    %v226 = vunpack.c.l.b16 %v150
    %v227 = vunpack.c.h.b16 %v150
    %v228 = vunpack.c.l.b16 %v151
    %v229 = vunpack.c.h.b16 %v151
    %v230 = vunpack.c.l.b16 %v152
    %v231 = vunpack.c.h.b16 %v152
    %v232 = vunpack.c.l.b16 %v153
    %v233 = vunpack.c.h.b16 %v153
    %v234 = vunpack.c.l.b16 %v154
    %v235 = vunpack.c.h.b16 %v154
    %v236 = vunpack.c.l.b16 %v155
    %v237 = vunpack.c.h.b16 %v155
    %v238 = vunpack.c.l.b16 %v156
    %v239 = vunpack.c.h.b16 %v156
    %v240 = vunpack.c.l.b16 %v157
    %v241 = vunpack.c.h.b16 %v157
    %v242 = vunpack.c.l.b16 %v158
    %v243 = vunpack.c.h.b16 %v158
    %v244 = vunpack.c.l.b16 %v159
    %v245 = vunpack.c.h.b16 %v159
    %v246 = vunpack.c.l.b16 %v160
    %v247 = vunpack.c.h.b16 %v160
    %v248 = vunpack.c.l.b16 %v161
    %v249 = vunpack.c.h.b16 %v161
    %v250 = vunpack.c.l.b16 %v162
    %v251 = vunpack.c.h.b16 %v162
    %v252 = vunpack.c.l.b16 %v163
    %v253 = vunpack.c.h.b16 %v163
    %v254 = vunpack.c.l.b16 %v164
    %v255 = vunpack.c.h.b16 %v164
    %v256 = vunpack.c.l.b16 %v165
    %v257 = vunpack.c.h.b16 %v165
    %v258 = vunpack.c.l.b16 %v166
    %v259 = vunpack.c.h.b16 %v166
    %v260 = vunpack.c.l.b16 %v167
    %v261 = vunpack.c.h.b16 %v167
    %v262 = vunpack.c.l.b16 %v168
    %v263 = vunpack.c.h.b16 %v168
    %v264 = vunpack.c.l.b16 %v169
    %v265 = vunpack.c.h.b16 %v169
    %v266 = vunpack.c.l.b16 %v170
    %v267 = vunpack.c.h.b16 %v170
    %v268 = vunpack.c.l.b16 %v171
    %v269 = vunpack.c.h.b16 %v171
    %v270 = vunpack.c.l.b16 %v172
    %v271 = vunpack.c.h.b16 %v172
    %v272 = vunpack.c.l.b16 %v173
    %v273 = vunpack.c.h.b16 %v173
    %v274 = vunpack.c.l.b16 %v174
    %v275 = vunpack.c.h.b16 %v174
    %v276 = vunpack.c.l.b16 %v175
    %v277 = vunpack.c.h.b16 %v175
    %v278 = vunpack.c.l.b16 %v176
    %v279 = vunpack.c.h.b16 %v176
    %v280 = vunpack.c.l.b16 %v177
    %v281 = vunpack.c.h.b16 %v177
    %v282 = vunpack.c.l.b16 %v178
    %v283 = vunpack.c.h.b16 %v178
    %v284 = vunpack.c.l.b16 %v179
    %v285 = vunpack.c.h.b16 %v179
    %v286 = vpack.c.b16 %v224, %v222
    %v287 = vpack.c.b16 %v225, %v223
    %v288 = vpack.c.b16 %v228, %v226
    %v289 = vpack.c.b16 %v229, %v227
    %v290 = vpack.c.b16 %v232, %v230
    %v291 = vpack.c.b16 %v233, %v231
    %v292 = vpack.c.b16 %v236, %v234
    %v293 = vpack.c.b16 %v237, %v235
    %v294 = vpack.c.b16 %v240, %v238
    %v295 = vpack.c.b16 %v241, %v239
    %v296 = vpack.c.b16 %v244, %v242
    %v297 = vpack.c.b16 %v245, %v243
    %v298 = vpack.c.b16 %v248, %v246
    %v299 = vpack.c.b16 %v249, %v247
    %v300 = vpack.c.b16 %v252, %v250
    %v301 = vpack.c.b16 %v253, %v251
    %v302 = vpack.c.b16 %v256, %v254
    %v303 = vpack.c.b16 %v257, %v255
    %v304 = vpack.c.b16 %v260, %v258
    %v305 = vpack.c.b16 %v261, %v259
    %v306 = vpack.c.b16 %v264, %v262
    %v307 = vpack.c.b16 %v265, %v263
    %v308 = vpack.c.b16 %v268, %v266
    %v309 = vpack.c.b16 %v269, %v267
    %v310 = vpack.c.b16 %v272, %v270
    %v311 = vpack.c.b16 %v273, %v271
    %v312 = vpack.c.b16 %v276, %v274
    %v313 = vpack.c.b16 %v277, %v275
    %v314 = vpack.c.b16 %v280, %v278
    %v315 = vpack.c.b16 %v281, %v279
    %v316 = vpack.c.b16 %v284, %v282
    %v317 = vpack.c.b16 %v285, %v283
    %350 = vmatprep.subr.bf16.mxu0 %v301
    %351 = vmatpush1.bf16.msra.mxu0 %v300
    %352 = vmatprep.subr.bf16.mxu0 %v299
    %353 = vmatpush1.bf16.msra.mxu0 %v298
    %354 = vmatprep.subr.bf16.mxu0 %v297
    %355 = vmatpush1.bf16.msra.mxu0 %v296
    %356 = vmatprep.subr.bf16.mxu0 %v295
    %357 = vmatpush1.bf16.msra.mxu0 %v294
    %358 = vmatprep.subr.bf16.mxu0 %v293
    %359 = vmatpush1.bf16.msra.mxu0 %v292
    %360 = vmatprep.subr.bf16.mxu0 %v291
    %361 = vmatpush1.bf16.msra.mxu0 %v290
    %362 = vmatprep.subr.bf16.mxu0 %v289
    %363 = vmatpush1.bf16.msra.mxu0 %v288
    %364 = vmatprep.subr.bf16.mxu0 %v287
    %365 = vmatpush1.bf16.msra.mxu0 %v286
    %366 = vmatprep.subr.bf16.mxu0 %v317
    %367 = vmatpush2.bf16.msra.mxu0 %v316
    %368 = vmatprep.subr.bf16.mxu0 %v315
    %369 = vmatpush2.bf16.msra.mxu0 %v314
    %370 = vmatprep.subr.bf16.mxu0 %v313
    %371 = vmatpush2.bf16.msra.mxu0 %v312
    %372 = vmatprep.subr.bf16.mxu0 %v311
    %373 = vmatpush2.bf16.msra.mxu0 %v310
    %374 = vmatprep.subr.bf16.mxu0 %v309
    %375 = vmatpush2.bf16.msra.mxu0 %v308
    %376 = vmatprep.subr.bf16.mxu0 %v307
    %377 = vmatpush2.bf16.msra.mxu0 %v306
    %378 = vmatprep.subr.bf16.mxu0 %v305
    %379 = vmatpush2.bf16.msra.mxu0 %v304
    %380 = vmatprep.subr.bf16.mxu0 %v303
    %381 = vmatpush2.bf16.msra.mxu0 %v302
    %382 = vmatprep.mubr.bf16.mxu0 %v187
    %383 = vmatmul.mubr.bf16.gmra.mxu0 %v186
    %v384 = vpop.f32.mrf.mxu0
    %v385 = vadd.f32 0.0, %v384
    %v386 = vpop.f32.mrf.mxu0
    %v387 = vadd.f32 0.0, %v386
    %v388 = vpop.f32.mrf.mxu0
    %v389 = vadd.f32 0.0, %v388
    %v390 = vpop.f32.mrf.mxu0
    %v391 = vadd.f32 0.0, %v390
    %392 = vdwg.mxu0
    %v393 = vpack.c.bf16 %v389, %v385
    %v394 = vpack.c.bf16 %v391, %v387
    %v395 = vld [vmem:[#allocation7] sm:$0x3]
    %v398 = vunpack.c.l.s4 1966171168
    %v399 = vunpack.c.0.s8 %v398
    %v400 = vlaneseq
    %v401 = vshrl.u32 %v400, 7
    %v402 = vsub.s32 %v399, %v401
    %v403 = vrot.slane %v395, %v402
    %v404 = vcombine.high %v403, %v403
    %v406 = vunpack.c.l.s4 1966171168
    %v407 = vunpack.c.0.s8 %v406
    %v408 = vlaneseq
    %v409 = vshrl.u32 %v408, 7
    %v410 = vsub.s32 %v407, %v409
    %v411 = vrot.slane %v403, %v410
    %v413 = vunpack.c.l.s4 1966171168
    %v414 = vunpack.c.0.s8 %v413
    %v415 = vlaneseq
    %v416 = vshrl.u32 %v415, 7
    %v417 = vsub.s32 %v414, %v416
    %v418 = vrot.slane %v404, %v417
    %v420 = vpack.i.b16 %v411, %v411
    %v422 = vlaneseq
    %v423 = vshrl.u32 %v422, 7
    %v424 = vsub.s32 0, %v423
    %v425 = vrot.slane %v420, %v424
    %v427 = vpack.i.b16 %v418, %v418
    %v429 = vlaneseq
    %v430 = vshrl.u32 %v429, 7
    %v431 = vsub.s32 0, %v430
    %v432 = vrot.slane %v427, %v431
    %v433 = vadd.bf16 %v393, %v425
    %v434 = vadd.bf16 %v394, %v432
    %v435 = vmax.bf16 %v433, 0
    %v436 = vmax.bf16 %v434, 0
    %v437 = vld [vmem:[#allocation8] sm:$0xff]
    %v438 = vld [vmem:[#allocation8 + $0x8] sm:$0xff]
    %v439 = vld [vmem:[#allocation8 + $0x10] sm:$0xff]
    %v440 = vld [vmem:[#allocation8 + $0x18] sm:$0xff]
    %v441 = vld [vmem:[#allocation8 + $0x20] sm:$0xff]
    %v442 = vld [vmem:[#allocation8 + $0x28] sm:$0xff]
    %v443 = vld [vmem:[#allocation8 + $0x30] sm:$0xff]
    %v444 = vld [vmem:[#allocation8 + $0x38] sm:$0xff]
    %v445 = vld [vmem:[#allocation8 + $0x40] sm:$0xff]
    %v446 = vld [vmem:[#allocation8 + $0x48] sm:$0xff]
    %v447 = vld [vmem:[#allocation8 + $0x50] sm:$0xff]
    %v448 = vld [vmem:[#allocation8 + $0x58] sm:$0xff]
    %v449 = vld [vmem:[#allocation8 + $0x60] sm:$0xff]
    %v450 = vld [vmem:[#allocation8 + $0x68] sm:$0xff]
    %v451 = vld [vmem:[#allocation8 + $0x70] sm:$0xff]
    %v452 = vld [vmem:[#allocation8 + $0x78] sm:$0xff]
    %v453 = vld [vmem:[#allocation8 + $0x80] sm:$0xff]
    %v454 = vld [vmem:[#allocation8 + $0x88] sm:$0xff]
    %v455 = vld [vmem:[#allocation8 + $0x90] sm:$0xff]
    %v456 = vld [vmem:[#allocation8 + $0x98] sm:$0xff]
    %v457 = vld [vmem:[#allocation8 + $0xa0] sm:$0xff]
    %v458 = vld [vmem:[#allocation8 + $0xa8] sm:$0xff]
    %v459 = vld [vmem:[#allocation8 + $0xb0] sm:$0xff]
    %v460 = vld [vmem:[#allocation8 + $0xb8] sm:$0xff]
    %v461 = vld [vmem:[#allocation8 + $0xc0] sm:$0xff]
    %v462 = vld [vmem:[#allocation8 + $0xc8] sm:$0xff]
    %v463 = vld [vmem:[#allocation8 + $0xd0] sm:$0xff]
    %v464 = vld [vmem:[#allocation8 + $0xd8] sm:$0xff]
    %v465 = vld [vmem:[#allocation8 + $0xe0] sm:$0xff]
    %v466 = vld [vmem:[#allocation8 + $0xe8] sm:$0xff]
    %v467 = vld [vmem:[#allocation8 + $0xf0] sm:$0xff]
    %v468 = vld [vmem:[#allocation8 + $0xf8] sm:$0xff]
    %v469 = vld [vmem:[#allocation8 + $0x100] sm:$0xff]
    %v470 = vld [vmem:[#allocation8 + $0x108] sm:$0xff]
    %v471 = vld [vmem:[#allocation8 + $0x110] sm:$0xff]
    %v472 = vld [vmem:[#allocation8 + $0x118] sm:$0xff]
    %v473 = vld [vmem:[#allocation8 + $0x120] sm:$0xff]
    %v474 = vld [vmem:[#allocation8 + $0x128] sm:$0xff]
    %v475 = vld [vmem:[#allocation8 + $0x130] sm:$0xff]
    %v476 = vld [vmem:[#allocation8 + $0x138] sm:$0xff]
    %v477 = vld [vmem:[#allocation8 + $0x140] sm:$0xff]
    %v478 = vld [vmem:[#allocation8 + $0x148] sm:$0xff]
    %v479 = vld [vmem:[#allocation8 + $0x150] sm:$0xff]
    %v480 = vld [vmem:[#allocation8 + $0x158] sm:$0xff]
    %v481 = vld [vmem:[#allocation8 + $0x160] sm:$0xff]
    %v482 = vld [vmem:[#allocation8 + $0x168] sm:$0xff]
    %v483 = vld [vmem:[#allocation8 + $0x170] sm:$0xff]
    %v484 = vld [vmem:[#allocation8 + $0x178] sm:$0xff]
    %v485 = vld [vmem:[#allocation8 + $0x180] sm:$0xff]
    %v486 = vld [vmem:[#allocation8 + $0x188] sm:$0xff]
    %v487 = vld [vmem:[#allocation8 + $0x190] sm:$0xff]
    %v488 = vld [vmem:[#allocation8 + $0x198] sm:$0xff]
    %v489 = vld [vmem:[#allocation8 + $0x1a0] sm:$0xff]
    %v490 = vld [vmem:[#allocation8 + $0x1a8] sm:$0xff]
    %v491 = vld [vmem:[#allocation8 + $0x1b0] sm:$0xff]
    %v492 = vld [vmem:[#allocation8 + $0x1b8] sm:$0xff]
    %v493 = vld [vmem:[#allocation8 + $0x1c0] sm:$0xff]
    %v494 = vld [vmem:[#allocation8 + $0x1c8] sm:$0xff]
    %v495 = vld [vmem:[#allocation8 + $0x1d0] sm:$0xff]
    %v496 = vld [vmem:[#allocation8 + $0x1d8] sm:$0xff]
    %v497 = vld [vmem:[#allocation8 + $0x1e0] sm:$0xff]
    %v498 = vld [vmem:[#allocation8 + $0x1e8] sm:$0xff]
    %v499 = vld [vmem:[#allocation8 + $0x1f0] sm:$0xff]
    %v500 = vld [vmem:[#allocation8 + $0x1f8] sm:$0xff]
    %v501 = vld [vmem:[#allocation8 + $0x200] sm:$0xff]
    %v502 = vld [vmem:[#allocation8 + $0x208] sm:$0xff]
    %v503 = vld [vmem:[#allocation8 + $0x210] sm:$0xff]
    %v504 = vld [vmem:[#allocation8 + $0x218] sm:$0xff]
    %v505 = vld [vmem:[#allocation8 + $0x220] sm:$0xff]
    %v506 = vld [vmem:[#allocation8 + $0x228] sm:$0xff]
    %v507 = vld [vmem:[#allocation8 + $0x230] sm:$0xff]
    %v508 = vld [vmem:[#allocation8 + $0x238] sm:$0xff]
    %v509 = vld [vmem:[#allocation8 + $0x240] sm:$0xff]
    %v510 = vld [vmem:[#allocation8 + $0x248] sm:$0xff]
    %v511 = vld [vmem:[#allocation8 + $0x250] sm:$0xff]
    %v512 = vld [vmem:[#allocation8 + $0x258] sm:$0xff]
    %v513 = vld [vmem:[#allocation8 + $0x260] sm:$0xff]
    %v514 = vld [vmem:[#allocation8 + $0x268] sm:$0xff]
    %v515 = vld [vmem:[#allocation8 + $0x270] sm:$0xff]
    %v516 = vld [vmem:[#allocation8 + $0x278] sm:$0xff]
    %v517 = vld [vmem:[#allocation8 + $0x280] sm:$0xff]
    %v518 = vld [vmem:[#allocation8 + $0x288] sm:$0xff]
    %v519 = vld [vmem:[#allocation8 + $0x290] sm:$0xff]
    %v520 = vld [vmem:[#allocation8 + $0x298] sm:$0xff]
    %v521 = vld [vmem:[#allocation8 + $0x2a0] sm:$0xff]
    %v522 = vld [vmem:[#allocation8 + $0x2a8] sm:$0xff]
    %v523 = vld [vmem:[#allocation8 + $0x2b0] sm:$0xff]
    %v524 = vld [vmem:[#allocation8 + $0x2b8] sm:$0xff]
    %v525 = vld [vmem:[#allocation8 + $0x2c0] sm:$0xff]
    %v526 = vld [vmem:[#allocation8 + $0x2c8] sm:$0xff]
    %v527 = vld [vmem:[#allocation8 + $0x2d0] sm:$0xff]
    %v528 = vld [vmem:[#allocation8 + $0x2d8] sm:$0xff]
    %v529 = vld [vmem:[#allocation8 + $0x2e0] sm:$0xff]
    %v530 = vld [vmem:[#allocation8 + $0x2e8] sm:$0xff]
    %v531 = vld [vmem:[#allocation8 + $0x2f0] sm:$0xff]
    %v532 = vld [vmem:[#allocation8 + $0x2f8] sm:$0xff]
    %v533 = vld [vmem:[#allocation8 + $0x300] sm:$0xff]
    %v534 = vld [vmem:[#allocation8 + $0x308] sm:$0xff]
    %v535 = vld [vmem:[#allocation8 + $0x310] sm:$0xff]
    %v536 = vld [vmem:[#allocation8 + $0x318] sm:$0xff]
    %v537 = vld [vmem:[#allocation8 + $0x320] sm:$0xff]
    %v538 = vld [vmem:[#allocation8 + $0x328] sm:$0xff]
    %v539 = vld [vmem:[#allocation8 + $0x330] sm:$0xff]
    %v540 = vld [vmem:[#allocation8 + $0x338] sm:$0xff]
    %v541 = vld [vmem:[#allocation8 + $0x340] sm:$0xff]
    %v542 = vld [vmem:[#allocation8 + $0x348] sm:$0xff]
    %v543 = vld [vmem:[#allocation8 + $0x350] sm:$0xff]
    %v544 = vld [vmem:[#allocation8 + $0x358] sm:$0xff]
    %v545 = vld [vmem:[#allocation8 + $0x360] sm:$0xff]
    %v546 = vld [vmem:[#allocation8 + $0x368] sm:$0xff]
    %v547 = vld [vmem:[#allocation8 + $0x370] sm:$0xff]
    %v548 = vld [vmem:[#allocation8 + $0x378] sm:$0xff]
    %v549 = vld [vmem:[#allocation8 + $0x380] sm:$0xff]
    %v550 = vld [vmem:[#allocation8 + $0x388] sm:$0xff]
    %v551 = vld [vmem:[#allocation8 + $0x390] sm:$0xff]
    %v552 = vld [vmem:[#allocation8 + $0x398] sm:$0xff]
    %v553 = vld [vmem:[#allocation8 + $0x3a0] sm:$0xff]
    %v554 = vld [vmem:[#allocation8 + $0x3a8] sm:$0xff]
    %v555 = vld [vmem:[#allocation8 + $0x3b0] sm:$0xff]
    %v556 = vld [vmem:[#allocation8 + $0x3b8] sm:$0xff]
    %v557 = vld [vmem:[#allocation8 + $0x3c0] sm:$0xff]
    %v558 = vld [vmem:[#allocation8 + $0x3c8] sm:$0xff]
    %v559 = vld [vmem:[#allocation8 + $0x3d0] sm:$0xff]
    %v560 = vld [vmem:[#allocation8 + $0x3d8] sm:$0xff]
    %v561 = vld [vmem:[#allocation8 + $0x3e0] sm:$0xff]
    %v562 = vld [vmem:[#allocation8 + $0x3e8] sm:$0xff]
    %v563 = vld [vmem:[#allocation8 + $0x3f0] sm:$0xff]
    %v564 = vld [vmem:[#allocation8 + $0x3f8] sm:$0xff]
    %v693 = vunpack.c.l.b16 %v437
    %v694 = vunpack.c.h.b16 %v437
    %v695 = vunpack.c.l.b16 %v438
    %v696 = vunpack.c.h.b16 %v438
    %v697 = vunpack.c.l.b16 %v439
    %v698 = vunpack.c.h.b16 %v439
    %v699 = vunpack.c.l.b16 %v440
    %v700 = vunpack.c.h.b16 %v440
    %v701 = vunpack.c.l.b16 %v441
    %v702 = vunpack.c.h.b16 %v441
    %v703 = vunpack.c.l.b16 %v442
    %v704 = vunpack.c.h.b16 %v442
    %v705 = vunpack.c.l.b16 %v443
    %v706 = vunpack.c.h.b16 %v443
    %v707 = vunpack.c.l.b16 %v444
    %v708 = vunpack.c.h.b16 %v444
    %v709 = vunpack.c.l.b16 %v445
    %v710 = vunpack.c.h.b16 %v445
    %v711 = vunpack.c.l.b16 %v446
    %v712 = vunpack.c.h.b16 %v446
    %v713 = vunpack.c.l.b16 %v447
    %v714 = vunpack.c.h.b16 %v447
    %v715 = vunpack.c.l.b16 %v448
    %v716 = vunpack.c.h.b16 %v448
    %v717 = vunpack.c.l.b16 %v449
    %v718 = vunpack.c.h.b16 %v449
    %v719 = vunpack.c.l.b16 %v450
    %v720 = vunpack.c.h.b16 %v450
    %v721 = vunpack.c.l.b16 %v451
    %v722 = vunpack.c.h.b16 %v451
    %v723 = vunpack.c.l.b16 %v452
    %v724 = vunpack.c.h.b16 %v452
    %v725 = vunpack.c.l.b16 %v453
    %v726 = vunpack.c.h.b16 %v453
    %v727 = vunpack.c.l.b16 %v454
    %v728 = vunpack.c.h.b16 %v454
    %v729 = vunpack.c.l.b16 %v455
    %v730 = vunpack.c.h.b16 %v455
    %v731 = vunpack.c.l.b16 %v456
    %v732 = vunpack.c.h.b16 %v456
    %v733 = vunpack.c.l.b16 %v457
    %v734 = vunpack.c.h.b16 %v457
    %v735 = vunpack.c.l.b16 %v458
    %v736 = vunpack.c.h.b16 %v458
    %v737 = vunpack.c.l.b16 %v459
    %v738 = vunpack.c.h.b16 %v459
    %v739 = vunpack.c.l.b16 %v460
    %v740 = vunpack.c.h.b16 %v460
    %v741 = vunpack.c.l.b16 %v461
    %v742 = vunpack.c.h.b16 %v461
    %v743 = vunpack.c.l.b16 %v462
    %v744 = vunpack.c.h.b16 %v462
    %v745 = vunpack.c.l.b16 %v463
    %v746 = vunpack.c.h.b16 %v463
    %v747 = vunpack.c.l.b16 %v464
    %v748 = vunpack.c.h.b16 %v464
    %v749 = vunpack.c.l.b16 %v465
    %v750 = vunpack.c.h.b16 %v465
    %v751 = vunpack.c.l.b16 %v466
    %v752 = vunpack.c.h.b16 %v466
    %v753 = vunpack.c.l.b16 %v467
    %v754 = vunpack.c.h.b16 %v467
    %v755 = vunpack.c.l.b16 %v468
    %v756 = vunpack.c.h.b16 %v468
    %v757 = vunpack.c.l.b16 %v469
    %v758 = vunpack.c.h.b16 %v469
    %v759 = vunpack.c.l.b16 %v470
    %v760 = vunpack.c.h.b16 %v470
    %v761 = vunpack.c.l.b16 %v471
    %v762 = vunpack.c.h.b16 %v471
    %v763 = vunpack.c.l.b16 %v472
    %v764 = vunpack.c.h.b16 %v472
    %v765 = vunpack.c.l.b16 %v473
    %v766 = vunpack.c.h.b16 %v473
    %v767 = vunpack.c.l.b16 %v474
    %v768 = vunpack.c.h.b16 %v474
    %v769 = vunpack.c.l.b16 %v475
    %v770 = vunpack.c.h.b16 %v475
    %v771 = vunpack.c.l.b16 %v476
    %v772 = vunpack.c.h.b16 %v476
    %v773 = vunpack.c.l.b16 %v477
    %v774 = vunpack.c.h.b16 %v477
    %v775 = vunpack.c.l.b16 %v478
    %v776 = vunpack.c.h.b16 %v478
    %v777 = vunpack.c.l.b16 %v479
    %v778 = vunpack.c.h.b16 %v479
    %v779 = vunpack.c.l.b16 %v480
    %v780 = vunpack.c.h.b16 %v480
    %v781 = vunpack.c.l.b16 %v481
    %v782 = vunpack.c.h.b16 %v481
    %v783 = vunpack.c.l.b16 %v482
    %v784 = vunpack.c.h.b16 %v482
    %v785 = vunpack.c.l.b16 %v483
    %v786 = vunpack.c.h.b16 %v483
    %v787 = vunpack.c.l.b16 %v484
    %v788 = vunpack.c.h.b16 %v484
    %v789 = vunpack.c.l.b16 %v485
    %v790 = vunpack.c.h.b16 %v485
    %v791 = vunpack.c.l.b16 %v486
    %v792 = vunpack.c.h.b16 %v486
    %v793 = vunpack.c.l.b16 %v487
    %v794 = vunpack.c.h.b16 %v487
    %v795 = vunpack.c.l.b16 %v488
    %v796 = vunpack.c.h.b16 %v488
    %v797 = vunpack.c.l.b16 %v489
    %v798 = vunpack.c.h.b16 %v489
    %v799 = vunpack.c.l.b16 %v490
    %v800 = vunpack.c.h.b16 %v490
    %v801 = vunpack.c.l.b16 %v491
    %v802 = vunpack.c.h.b16 %v491
    %v803 = vunpack.c.l.b16 %v492
    %v804 = vunpack.c.h.b16 %v492
    %v805 = vunpack.c.l.b16 %v493
    %v806 = vunpack.c.h.b16 %v493
    %v807 = vunpack.c.l.b16 %v494
    %v808 = vunpack.c.h.b16 %v494
    %v809 = vunpack.c.l.b16 %v495
    %v810 = vunpack.c.h.b16 %v495
    %v811 = vunpack.c.l.b16 %v496
    %v812 = vunpack.c.h.b16 %v496
    %v813 = vunpack.c.l.b16 %v497
    %v814 = vunpack.c.h.b16 %v497
    %v815 = vunpack.c.l.b16 %v498
    %v816 = vunpack.c.h.b16 %v498
    %v817 = vunpack.c.l.b16 %v499
    %v818 = vunpack.c.h.b16 %v499
    %v819 = vunpack.c.l.b16 %v500
    %v820 = vunpack.c.h.b16 %v500
    %v821 = vunpack.c.l.b16 %v501
    %v822 = vunpack.c.h.b16 %v501
    %v823 = vunpack.c.l.b16 %v502
    %v824 = vunpack.c.h.b16 %v502
    %v825 = vunpack.c.l.b16 %v503
    %v826 = vunpack.c.h.b16 %v503
    %v827 = vunpack.c.l.b16 %v504
    %v828 = vunpack.c.h.b16 %v504
    %v829 = vunpack.c.l.b16 %v505
    %v830 = vunpack.c.h.b16 %v505
    %v831 = vunpack.c.l.b16 %v506
    %v832 = vunpack.c.h.b16 %v506
    %v833 = vunpack.c.l.b16 %v507
    %v834 = vunpack.c.h.b16 %v507
    %v835 = vunpack.c.l.b16 %v508
    %v836 = vunpack.c.h.b16 %v508
    %v837 = vunpack.c.l.b16 %v509
    %v838 = vunpack.c.h.b16 %v509
    %v839 = vunpack.c.l.b16 %v510
    %v840 = vunpack.c.h.b16 %v510
    %v841 = vunpack.c.l.b16 %v511
    %v842 = vunpack.c.h.b16 %v511
    %v843 = vunpack.c.l.b16 %v512
    %v844 = vunpack.c.h.b16 %v512
    %v845 = vunpack.c.l.b16 %v513
    %v846 = vunpack.c.h.b16 %v513
    %v847 = vunpack.c.l.b16 %v514
    %v848 = vunpack.c.h.b16 %v514
    %v849 = vunpack.c.l.b16 %v515
    %v850 = vunpack.c.h.b16 %v515
    %v851 = vunpack.c.l.b16 %v516
    %v852 = vunpack.c.h.b16 %v516
    %v853 = vunpack.c.l.b16 %v517
    %v854 = vunpack.c.h.b16 %v517
    %v855 = vunpack.c.l.b16 %v518
    %v856 = vunpack.c.h.b16 %v518
    %v857 = vunpack.c.l.b16 %v519
    %v858 = vunpack.c.h.b16 %v519
    %v859 = vunpack.c.l.b16 %v520
    %v860 = vunpack.c.h.b16 %v520
    %v861 = vunpack.c.l.b16 %v521
    %v862 = vunpack.c.h.b16 %v521
    %v863 = vunpack.c.l.b16 %v522
    %v864 = vunpack.c.h.b16 %v522
    %v865 = vunpack.c.l.b16 %v523
    %v866 = vunpack.c.h.b16 %v523
    %v867 = vunpack.c.l.b16 %v524
    %v868 = vunpack.c.h.b16 %v524
    %v869 = vunpack.c.l.b16 %v525
    %v870 = vunpack.c.h.b16 %v525
    %v871 = vunpack.c.l.b16 %v526
    %v872 = vunpack.c.h.b16 %v526
    %v873 = vunpack.c.l.b16 %v527
    %v874 = vunpack.c.h.b16 %v527
    %v875 = vunpack.c.l.b16 %v528
    %v876 = vunpack.c.h.b16 %v528
    %v877 = vunpack.c.l.b16 %v529
    %v878 = vunpack.c.h.b16 %v529
    %v879 = vunpack.c.l.b16 %v530
    %v880 = vunpack.c.h.b16 %v530
    %v881 = vunpack.c.l.b16 %v531
    %v882 = vunpack.c.h.b16 %v531
    %v883 = vunpack.c.l.b16 %v532
    %v884 = vunpack.c.h.b16 %v532
    %v885 = vunpack.c.l.b16 %v533
    %v886 = vunpack.c.h.b16 %v533
    %v887 = vunpack.c.l.b16 %v534
    %v888 = vunpack.c.h.b16 %v534
    %v889 = vunpack.c.l.b16 %v535
    %v890 = vunpack.c.h.b16 %v535
    %v891 = vunpack.c.l.b16 %v536
    %v892 = vunpack.c.h.b16 %v536
    %v893 = vunpack.c.l.b16 %v537
    %v894 = vunpack.c.h.b16 %v537
    %v895 = vunpack.c.l.b16 %v538
    %v896 = vunpack.c.h.b16 %v538
    %v897 = vunpack.c.l.b16 %v539
    %v898 = vunpack.c.h.b16 %v539
    %v899 = vunpack.c.l.b16 %v540
    %v900 = vunpack.c.h.b16 %v540
    %v901 = vunpack.c.l.b16 %v541
    %v902 = vunpack.c.h.b16 %v541
    %v903 = vunpack.c.l.b16 %v542
    %v904 = vunpack.c.h.b16 %v542
    %v905 = vunpack.c.l.b16 %v543
    %v906 = vunpack.c.h.b16 %v543
    %v907 = vunpack.c.l.b16 %v544
    %v908 = vunpack.c.h.b16 %v544
    %v909 = vunpack.c.l.b16 %v545
    %v910 = vunpack.c.h.b16 %v545
    %v911 = vunpack.c.l.b16 %v546
    %v912 = vunpack.c.h.b16 %v546
    %v913 = vunpack.c.l.b16 %v547
    %v914 = vunpack.c.h.b16 %v547
    %v915 = vunpack.c.l.b16 %v548
    %v916 = vunpack.c.h.b16 %v548
    %v917 = vunpack.c.l.b16 %v549
    %v918 = vunpack.c.h.b16 %v549
    %v919 = vunpack.c.l.b16 %v550
    %v920 = vunpack.c.h.b16 %v550
    %v921 = vunpack.c.l.b16 %v551
    %v922 = vunpack.c.h.b16 %v551
    %v923 = vunpack.c.l.b16 %v552
    %v924 = vunpack.c.h.b16 %v552
    %v925 = vunpack.c.l.b16 %v553
    %v926 = vunpack.c.h.b16 %v553
    %v927 = vunpack.c.l.b16 %v554
    %v928 = vunpack.c.h.b16 %v554
    %v929 = vunpack.c.l.b16 %v555
    %v930 = vunpack.c.h.b16 %v555
    %v931 = vunpack.c.l.b16 %v556
    %v932 = vunpack.c.h.b16 %v556
    %v933 = vunpack.c.l.b16 %v557
    %v934 = vunpack.c.h.b16 %v557
    %v935 = vunpack.c.l.b16 %v558
    %v936 = vunpack.c.h.b16 %v558
    %v937 = vunpack.c.l.b16 %v559
    %v938 = vunpack.c.h.b16 %v559
    %v939 = vunpack.c.l.b16 %v560
    %v940 = vunpack.c.h.b16 %v560
    %v941 = vunpack.c.l.b16 %v561
    %v942 = vunpack.c.h.b16 %v561
    %v943 = vunpack.c.l.b16 %v562
    %v944 = vunpack.c.h.b16 %v562
    %v945 = vunpack.c.l.b16 %v563
    %v946 = vunpack.c.h.b16 %v563
    %v947 = vunpack.c.l.b16 %v564
    %v948 = vunpack.c.h.b16 %v564
    %v949 = vpack.c.b16 %v701, %v693
    %v950 = vpack.c.b16 %v702, %v694
    %v951 = vpack.c.b16 %v703, %v695
    %v952 = vpack.c.b16 %v704, %v696
    %v953 = vpack.c.b16 %v705, %v697
    %v954 = vpack.c.b16 %v706, %v698
    %v955 = vpack.c.b16 %v707, %v699
    %v956 = vpack.c.b16 %v708, %v700
    %v957 = vpack.c.b16 %v717, %v709
    %v958 = vpack.c.b16 %v718, %v710
    %v959 = vpack.c.b16 %v719, %v711
    %v960 = vpack.c.b16 %v720, %v712
    %v961 = vpack.c.b16 %v721, %v713
    %v962 = vpack.c.b16 %v722, %v714
    %v963 = vpack.c.b16 %v723, %v715
    %v964 = vpack.c.b16 %v724, %v716
    %v965 = vpack.c.b16 %v733, %v725
    %v966 = vpack.c.b16 %v734, %v726
    %v967 = vpack.c.b16 %v735, %v727
    %v968 = vpack.c.b16 %v736, %v728
    %v969 = vpack.c.b16 %v737, %v729
    %v970 = vpack.c.b16 %v738, %v730
    %v971 = vpack.c.b16 %v739, %v731
    %v972 = vpack.c.b16 %v740, %v732
    %v973 = vpack.c.b16 %v749, %v741
    %v974 = vpack.c.b16 %v750, %v742
    %v975 = vpack.c.b16 %v751, %v743
    %v976 = vpack.c.b16 %v752, %v744
    %v977 = vpack.c.b16 %v753, %v745
    %v978 = vpack.c.b16 %v754, %v746
    %v979 = vpack.c.b16 %v755, %v747
    %v980 = vpack.c.b16 %v756, %v748
    %v981 = vpack.c.b16 %v765, %v757
    %v982 = vpack.c.b16 %v766, %v758
    %v983 = vpack.c.b16 %v767, %v759
    %v984 = vpack.c.b16 %v768, %v760
    %v985 = vpack.c.b16 %v769, %v761
    %v986 = vpack.c.b16 %v770, %v762
    %v987 = vpack.c.b16 %v771, %v763
    %v988 = vpack.c.b16 %v772, %v764
    %v989 = vpack.c.b16 %v781, %v773
    %v990 = vpack.c.b16 %v782, %v774
    %v991 = vpack.c.b16 %v783, %v775
    %v992 = vpack.c.b16 %v784, %v776
    %v993 = vpack.c.b16 %v785, %v777
    %v994 = vpack.c.b16 %v786, %v778
    %v995 = vpack.c.b16 %v787, %v779
    %v996 = vpack.c.b16 %v788, %v780
    %v997 = vpack.c.b16 %v797, %v789
    %v998 = vpack.c.b16 %v798, %v790
    %v999 = vpack.c.b16 %v799, %v791
    %v1000 = vpack.c.b16 %v800, %v792
    %v1001 = vpack.c.b16 %v801, %v793
    %v1002 = vpack.c.b16 %v802, %v794
    %v1003 = vpack.c.b16 %v803, %v795
    %v1004 = vpack.c.b16 %v804, %v796
    %v1005 = vpack.c.b16 %v813, %v805
    %v1006 = vpack.c.b16 %v814, %v806
    %v1007 = vpack.c.b16 %v815, %v807
    %v1008 = vpack.c.b16 %v816, %v808
    %v1009 = vpack.c.b16 %v817, %v809
    %v1010 = vpack.c.b16 %v818, %v810
    %v1011 = vpack.c.b16 %v819, %v811
    %v1012 = vpack.c.b16 %v820, %v812
    %v1013 = vpack.c.b16 %v829, %v821
    %v1014 = vpack.c.b16 %v830, %v822
    %v1015 = vpack.c.b16 %v831, %v823
    %v1016 = vpack.c.b16 %v832, %v824
    %v1017 = vpack.c.b16 %v833, %v825
    %v1018 = vpack.c.b16 %v834, %v826
    %v1019 = vpack.c.b16 %v835, %v827
    %v1020 = vpack.c.b16 %v836, %v828
    %v1021 = vpack.c.b16 %v845, %v837
    %v1022 = vpack.c.b16 %v846, %v838
    %v1023 = vpack.c.b16 %v847, %v839
    %v1024 = vpack.c.b16 %v848, %v840
    %v1025 = vpack.c.b16 %v849, %v841
    %v1026 = vpack.c.b16 %v850, %v842
    %v1027 = vpack.c.b16 %v851, %v843
    %v1028 = vpack.c.b16 %v852, %v844
    %v1029 = vpack.c.b16 %v861, %v853
    %v1030 = vpack.c.b16 %v862, %v854
    %v1031 = vpack.c.b16 %v863, %v855
    %v1032 = vpack.c.b16 %v864, %v856
    %v1033 = vpack.c.b16 %v865, %v857
    %v1034 = vpack.c.b16 %v866, %v858
    %v1035 = vpack.c.b16 %v867, %v859
    %v1036 = vpack.c.b16 %v868, %v860
    %v1037 = vpack.c.b16 %v877, %v869
    %v1038 = vpack.c.b16 %v878, %v870
    %v1039 = vpack.c.b16 %v879, %v871
    %v1040 = vpack.c.b16 %v880, %v872
    %v1041 = vpack.c.b16 %v881, %v873
    %v1042 = vpack.c.b16 %v882, %v874
    %v1043 = vpack.c.b16 %v883, %v875
    %v1044 = vpack.c.b16 %v884, %v876
    %v1045 = vpack.c.b16 %v893, %v885
    %v1046 = vpack.c.b16 %v894, %v886
    %v1047 = vpack.c.b16 %v895, %v887
    %v1048 = vpack.c.b16 %v896, %v888
    %v1049 = vpack.c.b16 %v897, %v889
    %v1050 = vpack.c.b16 %v898, %v890
    %v1051 = vpack.c.b16 %v899, %v891
    %v1052 = vpack.c.b16 %v900, %v892
    %v1053 = vpack.c.b16 %v909, %v901
    %v1054 = vpack.c.b16 %v910, %v902
    %v1055 = vpack.c.b16 %v911, %v903
    %v1056 = vpack.c.b16 %v912, %v904
    %v1057 = vpack.c.b16 %v913, %v905
    %v1058 = vpack.c.b16 %v914, %v906
    %v1059 = vpack.c.b16 %v915, %v907
    %v1060 = vpack.c.b16 %v916, %v908
    %v1061 = vpack.c.b16 %v925, %v917
    %v1062 = vpack.c.b16 %v926, %v918
    %v1063 = vpack.c.b16 %v927, %v919
    %v1064 = vpack.c.b16 %v928, %v920
    %v1065 = vpack.c.b16 %v929, %v921
    %v1066 = vpack.c.b16 %v930, %v922
    %v1067 = vpack.c.b16 %v931, %v923
    %v1068 = vpack.c.b16 %v932, %v924
    %v1069 = vpack.c.b16 %v941, %v933
    %v1070 = vpack.c.b16 %v942, %v934
    %v1071 = vpack.c.b16 %v943, %v935
    %v1072 = vpack.c.b16 %v944, %v936
    %v1073 = vpack.c.b16 %v945, %v937
    %v1074 = vpack.c.b16 %v946, %v938
    %v1075 = vpack.c.b16 %v947, %v939
    %v1076 = vpack.c.b16 %v948, %v940
    %1205 = vmatprep.subr.bf16.mxu0 %v1006
    %1206 = vmatpush1.bf16.msra.mxu0 %v1005
    %1207 = vmatprep.subr.bf16.mxu0 %v998
    %1208 = vmatpush1.bf16.msra.mxu0 %v997
    %1209 = vmatprep.subr.bf16.mxu0 %v990
    %1210 = vmatpush1.bf16.msra.mxu0 %v989
    %1211 = vmatprep.subr.bf16.mxu0 %v982
    %1212 = vmatpush1.bf16.msra.mxu0 %v981
    %1213 = vmatprep.subr.bf16.mxu0 %v974
    %1214 = vmatpush1.bf16.msra.mxu0 %v973
    %1215 = vmatprep.subr.bf16.mxu0 %v966
    %1216 = vmatpush1.bf16.msra.mxu0 %v965
    %1217 = vmatprep.subr.bf16.mxu0 %v958
    %1218 = vmatpush1.bf16.msra.mxu0 %v957
    %1219 = vmatprep.subr.bf16.mxu0 %v950
    %1220 = vmatpush1.bf16.msra.mxu0 %v949
    %1221 = vmatprep.subr.bf16.mxu0 %v1070
    %1222 = vmatpush2.bf16.msra.mxu0 %v1069
    %1223 = vmatprep.subr.bf16.mxu0 %v1062
    %1224 = vmatpush2.bf16.msra.mxu0 %v1061
    %1225 = vmatprep.subr.bf16.mxu0 %v1054
    %1226 = vmatpush2.bf16.msra.mxu0 %v1053
    %1227 = vmatprep.subr.bf16.mxu0 %v1046
    %1228 = vmatpush2.bf16.msra.mxu0 %v1045
    %1229 = vmatprep.subr.bf16.mxu0 %v1038
    %1230 = vmatpush2.bf16.msra.mxu0 %v1037
    %1231 = vmatprep.subr.bf16.mxu0 %v1030
    %1232 = vmatpush2.bf16.msra.mxu0 %v1029
    %1233 = vmatprep.subr.bf16.mxu0 %v1022
    %1234 = vmatpush2.bf16.msra.mxu0 %v1021
    %1235 = vmatprep.subr.bf16.mxu0 %v1014
    %1236 = vmatpush2.bf16.msra.mxu0 %v1013
    %1237 = vmatprep.mubr.bf16.mxu0 %v436
    %1238 = vmatmul.mubr.bf16.gmra.mxu0 %v435
    %v1239 = vpop.f32.mrf.mxu0
    %v1240 = vadd.f32 0.0, %v1239
    %v1241 = vpop.f32.mrf.mxu0
    %v1242 = vadd.f32 0.0, %v1241
    %v1243 = vpop.f32.mrf.mxu0
    %v1244 = vadd.f32 0.0, %v1243
    %v1245 = vpop.f32.mrf.mxu0
    %v1246 = vadd.f32 0.0, %v1245
    %1247 = vdwg.mxu0
    %1248 = vmatprep.subr.bf16.mxu0 %v1008
    %1249 = vmatpush1.bf16.msra.mxu0 %v1007
    %1250 = vmatprep.subr.bf16.mxu0 %v1000
    %1251 = vmatpush1.bf16.msra.mxu0 %v999
    %1252 = vmatprep.subr.bf16.mxu0 %v992
    %1253 = vmatpush1.bf16.msra.mxu0 %v991
    %1254 = vmatprep.subr.bf16.mxu0 %v984
    %1255 = vmatpush1.bf16.msra.mxu0 %v983
    %1256 = vmatprep.subr.bf16.mxu0 %v976
    %1257 = vmatpush1.bf16.msra.mxu0 %v975
    %1258 = vmatprep.subr.bf16.mxu0 %v968
    %1259 = vmatpush1.bf16.msra.mxu0 %v967
    %1260 = vmatprep.subr.bf16.mxu0 %v960
    %1261 = vmatpush1.bf16.msra.mxu0 %v959
    %1262 = vmatprep.subr.bf16.mxu0 %v952
    %1263 = vmatpush1.bf16.msra.mxu0 %v951
    %1264 = vmatprep.subr.bf16.mxu0 %v1072
    %1265 = vmatpush2.bf16.msra.mxu0 %v1071
    %1266 = vmatprep.subr.bf16.mxu0 %v1064
    %1267 = vmatpush2.bf16.msra.mxu0 %v1063
    %1268 = vmatprep.subr.bf16.mxu0 %v1056
    %1269 = vmatpush2.bf16.msra.mxu0 %v1055
    %1270 = vmatprep.subr.bf16.mxu0 %v1048
    %1271 = vmatpush2.bf16.msra.mxu0 %v1047
    %1272 = vmatprep.subr.bf16.mxu0 %v1040
    %1273 = vmatpush2.bf16.msra.mxu0 %v1039
    %1274 = vmatprep.subr.bf16.mxu0 %v1032
    %1275 = vmatpush2.bf16.msra.mxu0 %v1031
    %1276 = vmatprep.subr.bf16.mxu0 %v1024
    %1277 = vmatpush2.bf16.msra.mxu0 %v1023
    %1278 = vmatprep.subr.bf16.mxu0 %v1016
    %1279 = vmatpush2.bf16.msra.mxu0 %v1015
    %1280 = vmatprep.mubr.bf16.mxu0 %v436
    %1281 = vmatmul.mubr.bf16.gmra.mxu0 %v435
    %v1282 = vpop.f32.mrf.mxu0
    %v1283 = vadd.f32 0.0, %v1282
    %v1284 = vpop.f32.mrf.mxu0
    %v1285 = vadd.f32 0.0, %v1284
    %v1286 = vpop.f32.mrf.mxu0
    %v1287 = vadd.f32 0.0, %v1286
    %v1288 = vpop.f32.mrf.mxu0
    %v1289 = vadd.f32 0.0, %v1288
    %1290 = vdwg.mxu0
    %1291 = vmatprep.subr.bf16.mxu0 %v1010
    %1292 = vmatpush1.bf16.msra.mxu0 %v1009
    %1293 = vmatprep.subr.bf16.mxu0 %v1002
    %1294 = vmatpush1.bf16.msra.mxu0 %v1001
    %1295 = vmatprep.subr.bf16.mxu0 %v994
    %1296 = vmatpush1.bf16.msra.mxu0 %v993
    %1297 = vmatprep.subr.bf16.mxu0 %v986
    %1298 = vmatpush1.bf16.msra.mxu0 %v985
    %1299 = vmatprep.subr.bf16.mxu0 %v978
    %1300 = vmatpush1.bf16.msra.mxu0 %v977
    %1301 = vmatprep.subr.bf16.mxu0 %v970
    %1302 = vmatpush1.bf16.msra.mxu0 %v969
    %1303 = vmatprep.subr.bf16.mxu0 %v962
    %1304 = vmatpush1.bf16.msra.mxu0 %v961
    %1305 = vmatprep.subr.bf16.mxu0 %v954
    %1306 = vmatpush1.bf16.msra.mxu0 %v953
    %1307 = vmatprep.subr.bf16.mxu0 %v1074
    %1308 = vmatpush2.bf16.msra.mxu0 %v1073
    %1309 = vmatprep.subr.bf16.mxu0 %v1066
    %1310 = vmatpush2.bf16.msra.mxu0 %v1065
    %1311 = vmatprep.subr.bf16.mxu0 %v1058
    %1312 = vmatpush2.bf16.msra.mxu0 %v1057
    %1313 = vmatprep.subr.bf16.mxu0 %v1050
    %1314 = vmatpush2.bf16.msra.mxu0 %v1049
    %1315 = vmatprep.subr.bf16.mxu0 %v1042
    %1316 = vmatpush2.bf16.msra.mxu0 %v1041
    %1317 = vmatprep.subr.bf16.mxu0 %v1034
    %1318 = vmatpush2.bf16.msra.mxu0 %v1033
    %1319 = vmatprep.subr.bf16.mxu0 %v1026
    %1320 = vmatpush2.bf16.msra.mxu0 %v1025
    %1321 = vmatprep.subr.bf16.mxu0 %v1018
    %1322 = vmatpush2.bf16.msra.mxu0 %v1017
    %1323 = vmatprep.mubr.bf16.mxu0 %v436
    %1324 = vmatmul.mubr.bf16.gmra.mxu0 %v435
    %v1325 = vpop.f32.mrf.mxu0
    %v1326 = vadd.f32 0.0, %v1325
    %v1327 = vpop.f32.mrf.mxu0
    %v1328 = vadd.f32 0.0, %v1327
    %v1329 = vpop.f32.mrf.mxu0
    %v1330 = vadd.f32 0.0, %v1329
    %v1331 = vpop.f32.mrf.mxu0
    %v1332 = vadd.f32 0.0, %v1331
    %1333 = vdwg.mxu0
    %1334 = vmatprep.subr.bf16.mxu0 %v1012
    %1335 = vmatpush1.bf16.msra.mxu0 %v1011
    %1336 = vmatprep.subr.bf16.mxu0 %v1004
    %1337 = vmatpush1.bf16.msra.mxu0 %v1003
    %1338 = vmatprep.subr.bf16.mxu0 %v996
    %1339 = vmatpush1.bf16.msra.mxu0 %v995
    %1340 = vmatprep.subr.bf16.mxu0 %v988
    %1341 = vmatpush1.bf16.msra.mxu0 %v987
    %1342 = vmatprep.subr.bf16.mxu0 %v980
    %1343 = vmatpush1.bf16.msra.mxu0 %v979
    %1344 = vmatprep.subr.bf16.mxu0 %v972
    %1345 = vmatpush1.bf16.msra.mxu0 %v971
    %1346 = vmatprep.subr.bf16.mxu0 %v964
    %1347 = vmatpush1.bf16.msra.mxu0 %v963
    %1348 = vmatprep.subr.bf16.mxu0 %v956
    %1349 = vmatpush1.bf16.msra.mxu0 %v955
    %1350 = vmatprep.subr.bf16.mxu0 %v1076
    %1351 = vmatpush2.bf16.msra.mxu0 %v1075
    %1352 = vmatprep.subr.bf16.mxu0 %v1068
    %1353 = vmatpush2.bf16.msra.mxu0 %v1067
    %1354 = vmatprep.subr.bf16.mxu0 %v1060
    %1355 = vmatpush2.bf16.msra.mxu0 %v1059
    %1356 = vmatprep.subr.bf16.mxu0 %v1052
    %1357 = vmatpush2.bf16.msra.mxu0 %v1051
    %1358 = vmatprep.subr.bf16.mxu0 %v1044
    %1359 = vmatpush2.bf16.msra.mxu0 %v1043
    %1360 = vmatprep.subr.bf16.mxu0 %v1036
    %1361 = vmatpush2.bf16.msra.mxu0 %v1035
    %1362 = vmatprep.subr.bf16.mxu0 %v1028
    %1363 = vmatpush2.bf16.msra.mxu0 %v1027
    %1364 = vmatprep.subr.bf16.mxu0 %v1020
    %1365 = vmatpush2.bf16.msra.mxu0 %v1019
    %1366 = vmatprep.mubr.bf16.mxu0 %v436
    %1367 = vmatmul.mubr.bf16.gmra.mxu0 %v435
    %v1368 = vpop.f32.mrf.mxu0
    %v1369 = vadd.f32 0.0, %v1368
    %v1370 = vpop.f32.mrf.mxu0
    %v1371 = vadd.f32 0.0, %v1370
    %v1372 = vpop.f32.mrf.mxu0
    %v1373 = vadd.f32 0.0, %v1372
    %v1374 = vpop.f32.mrf.mxu0
    %v1375 = vadd.f32 0.0, %v1374
    %1376 = vdwg.mxu0
    %v1377 = vpack.c.bf16 %v1244, %v1240
    %v1378 = vpack.c.bf16 %v1246, %v1242
    %v1379 = vpack.c.bf16 %v1287, %v1283
    %v1380 = vpack.c.bf16 %v1289, %v1285
    %v1381 = vpack.c.bf16 %v1330, %v1326
    %v1382 = vpack.c.bf16 %v1332, %v1328
    %v1383 = vpack.c.bf16 %v1373, %v1369
    %v1384 = vpack.c.bf16 %v1375, %v1371
    %v1385 = vld [vmem:[#allocation10] sm:$0xff]
    %v1387 = vcombine.high %v1385, %v1385
    %v1389 = vunpack.c.l.s4 1966171168
    %v1390 = vunpack.c.0.s8 %v1389
    %v1391 = vlaneseq
    %v1392 = vshrl.u32 %v1391, 7
    %v1393 = vsub.s32 %v1390, %v1392
    %v1394 = vrot.slane %v1385, %v1393
    %v1396 = vunpack.c.l.s4 1966171168
    %v1397 = vunpack.c.0.s8 %v1396
    %v1398 = vlaneseq
    %v1399 = vshrl.u32 %v1398, 7
    %v1400 = vsub.s32 %v1397, %v1399
    %v1401 = vrot.slane %v1387, %v1400
    %v1402 = vcombine.high %v1394, %v1394
    %v1403 = vcombine.high %v1401, %v1401
    %v1405 = vunpack.c.l.s4 1966171168
    %v1406 = vunpack.c.0.s8 %v1405
    %v1407 = vlaneseq
    %v1408 = vshrl.u32 %v1407, 7
    %v1409 = vsub.s32 %v1406, %v1408
    %v1410 = vrot.slane %v1394, %v1409
    %v1412 = vunpack.c.l.s4 1966171168
    %v1413 = vunpack.c.0.s8 %v1412
    %v1414 = vlaneseq
    %v1415 = vshrl.u32 %v1414, 7
    %v1416 = vsub.s32 %v1413, %v1415
    %v1417 = vrot.slane %v1401, %v1416
    %v1419 = vunpack.c.l.s4 1966171168
    %v1420 = vunpack.c.0.s8 %v1419
    %v1421 = vlaneseq
    %v1422 = vshrl.u32 %v1421, 7
    %v1423 = vsub.s32 %v1420, %v1422
    %v1424 = vrot.slane %v1402, %v1423
    %v1426 = vunpack.c.l.s4 1966171168
    %v1427 = vunpack.c.0.s8 %v1426
    %v1428 = vlaneseq
    %v1429 = vshrl.u32 %v1428, 7
    %v1430 = vsub.s32 %v1427, %v1429
    %v1431 = vrot.slane %v1403, %v1430
    %v1432 = vcombine.high %v1410, %v1410
    %v1433 = vcombine.high %v1417, %v1417
    %v1434 = vcombine.high %v1424, %v1424
    %v1435 = vcombine.high %v1431, %v1431
    %v1437 = vpack.i.b16 %v1410, %v1410
    %v1439 = vlaneseq
    %v1440 = vshrl.u32 %v1439, 7
    %v1441 = vsub.s32 0, %v1440
    %v1442 = vrot.slane %v1437, %v1441
    %v1444 = vpack.i.b16 %v1424, %v1424
    %v1446 = vlaneseq
    %v1447 = vshrl.u32 %v1446, 7
    %v1448 = vsub.s32 0, %v1447
    %v1449 = vrot.slane %v1444, %v1448
    %v1451 = vpack.i.b16 %v1432, %v1432
    %v1453 = vlaneseq
    %v1454 = vshrl.u32 %v1453, 7
    %v1455 = vsub.s32 0, %v1454
    %v1456 = vrot.slane %v1451, %v1455
    %v1458 = vpack.i.b16 %v1434, %v1434
    %v1460 = vlaneseq
    %v1461 = vshrl.u32 %v1460, 7
    %v1462 = vsub.s32 0, %v1461
    %v1463 = vrot.slane %v1458, %v1462
    %v1465 = vpack.i.b16 %v1417, %v1417
    %v1467 = vlaneseq
    %v1468 = vshrl.u32 %v1467, 7
    %v1469 = vsub.s32 0, %v1468
    %v1470 = vrot.slane %v1465, %v1469
    %v1472 = vpack.i.b16 %v1431, %v1431
    %v1474 = vlaneseq
    %v1475 = vshrl.u32 %v1474, 7
    %v1476 = vsub.s32 0, %v1475
    %v1477 = vrot.slane %v1472, %v1476
    %v1479 = vpack.i.b16 %v1433, %v1433
    %v1481 = vlaneseq
    %v1482 = vshrl.u32 %v1481, 7
    %v1483 = vsub.s32 0, %v1482
    %v1484 = vrot.slane %v1479, %v1483
    %v1486 = vpack.i.b16 %v1435, %v1435
    %v1488 = vlaneseq
    %v1489 = vshrl.u32 %v1488, 7
    %v1490 = vsub.s32 0, %v1489
    %v1491 = vrot.slane %v1486, %v1490
    %v1492 = vadd.bf16 %v1377, %v1442
    %v1493 = vadd.bf16 %v1378, %v1449
    %v1494 = vadd.bf16 %v1379, %v1456
    %v1495 = vadd.bf16 %v1380, %v1463
    %v1496 = vadd.bf16 %v1381, %v1470
    %v1497 = vadd.bf16 %v1382, %v1477
    %v1498 = vadd.bf16 %v1383, %v1484
    %v1499 = vadd.bf16 %v1384, %v1491
    %v1500 = vmax.bf16 %v1492, 0
    %v1501 = vmax.bf16 %v1493, 0
    %v1502 = vmax.bf16 %v1494, 0
    %v1503 = vmax.bf16 %v1495, 0
    %v1504 = vmax.bf16 %v1496, 0
    %v1505 = vmax.bf16 %v1497, 0
    %v1506 = vmax.bf16 %v1498, 0
    %v1507 = vmax.bf16 %v1499, 0
    %v1508 = vld [vmem:[#allocation11] sm:$0xff]
    %v1509 = vld [vmem:[#allocation11 + $0x8] sm:$0xff]
    %v1510 = vld [vmem:[#allocation11 + $0x10] sm:$0xff]
    %v1511 = vld [vmem:[#allocation11 + $0x18] sm:$0xff]
    %v1512 = vld [vmem:[#allocation11 + $0x20] sm:$0xff]
    %v1513 = vld [vmem:[#allocation11 + $0x28] sm:$0xff]
    %v1514 = vld [vmem:[#allocation11 + $0x30] sm:$0xff]
    %v1515 = vld [vmem:[#allocation11 + $0x38] sm:$0xff]
    %v1516 = vld [vmem:[#allocation11 + $0x40] sm:$0xff]
    %v1517 = vld [vmem:[#allocation11 + $0x48] sm:$0xff]
    %v1518 = vld [vmem:[#allocation11 + $0x50] sm:$0xff]
    %v1519 = vld [vmem:[#allocation11 + $0x58] sm:$0xff]
    %v1520 = vld [vmem:[#allocation11 + $0x60] sm:$0xff]
    %v1521 = vld [vmem:[#allocation11 + $0x68] sm:$0xff]
    %v1522 = vld [vmem:[#allocation11 + $0x70] sm:$0xff]
    %v1523 = vld [vmem:[#allocation11 + $0x78] sm:$0xff]
    %v1524 = vld [vmem:[#allocation11 + $0x80] sm:$0xff]
    %v1525 = vld [vmem:[#allocation11 + $0x88] sm:$0xff]
    %v1526 = vld [vmem:[#allocation11 + $0x90] sm:$0xff]
    %v1527 = vld [vmem:[#allocation11 + $0x98] sm:$0xff]
    %v1528 = vld [vmem:[#allocation11 + $0xa0] sm:$0xff]
    %v1529 = vld [vmem:[#allocation11 + $0xa8] sm:$0xff]
    %v1530 = vld [vmem:[#allocation11 + $0xb0] sm:$0xff]
    %v1531 = vld [vmem:[#allocation11 + $0xb8] sm:$0xff]
    %v1532 = vld [vmem:[#allocation11 + $0xc0] sm:$0xff]
    %v1533 = vld [vmem:[#allocation11 + $0xc8] sm:$0xff]
    %v1534 = vld [vmem:[#allocation11 + $0xd0] sm:$0xff]
    %v1535 = vld [vmem:[#allocation11 + $0xd8] sm:$0xff]
    %v1536 = vld [vmem:[#allocation11 + $0xe0] sm:$0xff]
    %v1537 = vld [vmem:[#allocation11 + $0xe8] sm:$0xff]
    %v1538 = vld [vmem:[#allocation11 + $0xf0] sm:$0xff]
    %v1539 = vld [vmem:[#allocation11 + $0xf8] sm:$0xff]
    %v1540 = vld [vmem:[#allocation11 + $0x100] sm:$0xff]
    %v1541 = vld [vmem:[#allocation11 + $0x108] sm:$0xff]
    %v1542 = vld [vmem:[#allocation11 + $0x110] sm:$0xff]
    %v1543 = vld [vmem:[#allocation11 + $0x118] sm:$0xff]
    %v1544 = vld [vmem:[#allocation11 + $0x120] sm:$0xff]
    %v1545 = vld [vmem:[#allocation11 + $0x128] sm:$0xff]
    %v1546 = vld [vmem:[#allocation11 + $0x130] sm:$0xff]
    %v1547 = vld [vmem:[#allocation11 + $0x138] sm:$0xff]
    %v1548 = vld [vmem:[#allocation11 + $0x140] sm:$0xff]
    %v1549 = vld [vmem:[#allocation11 + $0x148] sm:$0xff]
    %v1550 = vld [vmem:[#allocation11 + $0x150] sm:$0xff]
    %v1551 = vld [vmem:[#allocation11 + $0x158] sm:$0xff]
    %v1552 = vld [vmem:[#allocation11 + $0x160] sm:$0xff]
    %v1553 = vld [vmem:[#allocation11 + $0x168] sm:$0xff]
    %v1554 = vld [vmem:[#allocation11 + $0x170] sm:$0xff]
    %v1555 = vld [vmem:[#allocation11 + $0x178] sm:$0xff]
    %v1556 = vld [vmem:[#allocation11 + $0x180] sm:$0xff]
    %v1557 = vld [vmem:[#allocation11 + $0x188] sm:$0xff]
    %v1558 = vld [vmem:[#allocation11 + $0x190] sm:$0xff]
    %v1559 = vld [vmem:[#allocation11 + $0x198] sm:$0xff]
    %v1560 = vld [vmem:[#allocation11 + $0x1a0] sm:$0xff]
    %v1561 = vld [vmem:[#allocation11 + $0x1a8] sm:$0xff]
    %v1562 = vld [vmem:[#allocation11 + $0x1b0] sm:$0xff]
    %v1563 = vld [vmem:[#allocation11 + $0x1b8] sm:$0xff]
    %v1564 = vld [vmem:[#allocation11 + $0x1c0] sm:$0xff]
    %v1565 = vld [vmem:[#allocation11 + $0x1c8] sm:$0xff]
    %v1566 = vld [vmem:[#allocation11 + $0x1d0] sm:$0xff]
    %v1567 = vld [vmem:[#allocation11 + $0x1d8] sm:$0xff]
    %v1568 = vld [vmem:[#allocation11 + $0x1e0] sm:$0xff]
    %v1569 = vld [vmem:[#allocation11 + $0x1e8] sm:$0xff]
    %v1570 = vld [vmem:[#allocation11 + $0x1f0] sm:$0xff]
    %v1571 = vld [vmem:[#allocation11 + $0x1f8] sm:$0xff]
    %v1572 = vld [vmem:[#allocation11 + $0x200] sm:$0xff]
    %v1573 = vld [vmem:[#allocation11 + $0x208] sm:$0xff]
    %v1574 = vld [vmem:[#allocation11 + $0x210] sm:$0xff]
    %v1575 = vld [vmem:[#allocation11 + $0x218] sm:$0xff]
    %v1576 = vld [vmem:[#allocation11 + $0x220] sm:$0xff]
    %v1577 = vld [vmem:[#allocation11 + $0x228] sm:$0xff]
    %v1578 = vld [vmem:[#allocation11 + $0x230] sm:$0xff]
    %v1579 = vld [vmem:[#allocation11 + $0x238] sm:$0xff]
    %v1580 = vld [vmem:[#allocation11 + $0x240] sm:$0xff]
    %v1581 = vld [vmem:[#allocation11 + $0x248] sm:$0xff]
    %v1582 = vld [vmem:[#allocation11 + $0x250] sm:$0xff]
    %v1583 = vld [vmem:[#allocation11 + $0x258] sm:$0xff]
    %v1584 = vld [vmem:[#allocation11 + $0x260] sm:$0xff]
    %v1585 = vld [vmem:[#allocation11 + $0x268] sm:$0xff]
    %v1586 = vld [vmem:[#allocation11 + $0x270] sm:$0xff]
    %v1587 = vld [vmem:[#allocation11 + $0x278] sm:$0xff]
    %v1588 = vld [vmem:[#allocation11 + $0x280] sm:$0xff]
    %v1589 = vld [vmem:[#allocation11 + $0x288] sm:$0xff]
    %v1590 = vld [vmem:[#allocation11 + $0x290] sm:$0xff]
    %v1591 = vld [vmem:[#allocation11 + $0x298] sm:$0xff]
    %v1592 = vld [vmem:[#allocation11 + $0x2a0] sm:$0xff]
    %v1593 = vld [vmem:[#allocation11 + $0x2a8] sm:$0xff]
    %v1594 = vld [vmem:[#allocation11 + $0x2b0] sm:$0xff]
    %v1595 = vld [vmem:[#allocation11 + $0x2b8] sm:$0xff]
    %v1596 = vld [vmem:[#allocation11 + $0x2c0] sm:$0xff]
    %v1597 = vld [vmem:[#allocation11 + $0x2c8] sm:$0xff]
    %v1598 = vld [vmem:[#allocation11 + $0x2d0] sm:$0xff]
    %v1599 = vld [vmem:[#allocation11 + $0x2d8] sm:$0xff]
    %v1600 = vld [vmem:[#allocation11 + $0x2e0] sm:$0xff]
    %v1601 = vld [vmem:[#allocation11 + $0x2e8] sm:$0xff]
    %v1602 = vld [vmem:[#allocation11 + $0x2f0] sm:$0xff]
    %v1603 = vld [vmem:[#allocation11 + $0x2f8] sm:$0xff]
    %v1604 = vld [vmem:[#allocation11 + $0x300] sm:$0xff]
    %v1605 = vld [vmem:[#allocation11 + $0x308] sm:$0xff]
    %v1606 = vld [vmem:[#allocation11 + $0x310] sm:$0xff]
    %v1607 = vld [vmem:[#allocation11 + $0x318] sm:$0xff]
    %v1608 = vld [vmem:[#allocation11 + $0x320] sm:$0xff]
    %v1609 = vld [vmem:[#allocation11 + $0x328] sm:$0xff]
    %v1610 = vld [vmem:[#allocation11 + $0x330] sm:$0xff]
    %v1611 = vld [vmem:[#allocation11 + $0x338] sm:$0xff]
    %v1612 = vld [vmem:[#allocation11 + $0x340] sm:$0xff]
    %v1613 = vld [vmem:[#allocation11 + $0x348] sm:$0xff]
    %v1614 = vld [vmem:[#allocation11 + $0x350] sm:$0xff]
    %v1615 = vld [vmem:[#allocation11 + $0x358] sm:$0xff]
    %v1616 = vld [vmem:[#allocation11 + $0x360] sm:$0xff]
    %v1617 = vld [vmem:[#allocation11 + $0x368] sm:$0xff]
    %v1618 = vld [vmem:[#allocation11 + $0x370] sm:$0xff]
    %v1619 = vld [vmem:[#allocation11 + $0x378] sm:$0xff]
    %v1620 = vld [vmem:[#allocation11 + $0x380] sm:$0xff]
    %v1621 = vld [vmem:[#allocation11 + $0x388] sm:$0xff]
    %v1622 = vld [vmem:[#allocation11 + $0x390] sm:$0xff]
    %v1623 = vld [vmem:[#allocation11 + $0x398] sm:$0xff]
    %v1624 = vld [vmem:[#allocation11 + $0x3a0] sm:$0xff]
    %v1625 = vld [vmem:[#allocation11 + $0x3a8] sm:$0xff]
    %v1626 = vld [vmem:[#allocation11 + $0x3b0] sm:$0xff]
    %v1627 = vld [vmem:[#allocation11 + $0x3b8] sm:$0xff]
    %v1628 = vld [vmem:[#allocation11 + $0x3c0] sm:$0xff]
    %v1629 = vld [vmem:[#allocation11 + $0x3c8] sm:$0xff]
    %v1630 = vld [vmem:[#allocation11 + $0x3d0] sm:$0xff]
    %v1631 = vld [vmem:[#allocation11 + $0x3d8] sm:$0xff]
    %v1632 = vld [vmem:[#allocation11 + $0x3e0] sm:$0xff]
    %v1633 = vld [vmem:[#allocation11 + $0x3e8] sm:$0xff]
    %v1634 = vld [vmem:[#allocation11 + $0x3f0] sm:$0xff]
    %v1635 = vld [vmem:[#allocation11 + $0x3f8] sm:$0xff]
    %v1636 = vld [vmem:[#allocation11 + $0x400] sm:$0xff]
    %v1637 = vld [vmem:[#allocation11 + $0x408] sm:$0xff]
    %v1638 = vld [vmem:[#allocation11 + $0x410] sm:$0xff]
    %v1639 = vld [vmem:[#allocation11 + $0x418] sm:$0xff]
    %v1640 = vld [vmem:[#allocation11 + $0x420] sm:$0xff]
    %v1641 = vld [vmem:[#allocation11 + $0x428] sm:$0xff]
    %v1642 = vld [vmem:[#allocation11 + $0x430] sm:$0xff]
    %v1643 = vld [vmem:[#allocation11 + $0x438] sm:$0xff]
    %v1644 = vld [vmem:[#allocation11 + $0x440] sm:$0xff]
    %v1645 = vld [vmem:[#allocation11 + $0x448] sm:$0xff]
    %v1646 = vld [vmem:[#allocation11 + $0x450] sm:$0xff]
    %v1647 = vld [vmem:[#allocation11 + $0x458] sm:$0xff]
    %v1648 = vld [vmem:[#allocation11 + $0x460] sm:$0xff]
    %v1649 = vld [vmem:[#allocation11 + $0x468] sm:$0xff]
    %v1650 = vld [vmem:[#allocation11 + $0x470] sm:$0xff]
    %v1651 = vld [vmem:[#allocation11 + $0x478] sm:$0xff]
    %v1652 = vld [vmem:[#allocation11 + $0x480] sm:$0xff]
    %v1653 = vld [vmem:[#allocation11 + $0x488] sm:$0xff]
    %v1654 = vld [vmem:[#allocation11 + $0x490] sm:$0xff]
    %v1655 = vld [vmem:[#allocation11 + $0x498] sm:$0xff]
    %v1656 = vld [vmem:[#allocation11 + $0x4a0] sm:$0xff]
    %v1657 = vld [vmem:[#allocation11 + $0x4a8] sm:$0xff]
    %v1658 = vld [vmem:[#allocation11 + $0x4b0] sm:$0xff]
    %v1659 = vld [vmem:[#allocation11 + $0x4b8] sm:$0xff]
    %v1660 = vld [vmem:[#allocation11 + $0x4c0] sm:$0xff]
    %v1661 = vld [vmem:[#allocation11 + $0x4c8] sm:$0xff]
    %v1662 = vld [vmem:[#allocation11 + $0x4d0] sm:$0xff]
    %v1663 = vld [vmem:[#allocation11 + $0x4d8] sm:$0xff]
    %v1664 = vld [vmem:[#allocation11 + $0x4e0] sm:$0xff]
    %v1665 = vld [vmem:[#allocation11 + $0x4e8] sm:$0xff]
    %v1666 = vld [vmem:[#allocation11 + $0x4f0] sm:$0xff]
    %v1667 = vld [vmem:[#allocation11 + $0x4f8] sm:$0xff]
    %v1668 = vld [vmem:[#allocation11 + $0x500] sm:$0xff]
    %v1669 = vld [vmem:[#allocation11 + $0x508] sm:$0xff]
    %v1670 = vld [vmem:[#allocation11 + $0x510] sm:$0xff]
    %v1671 = vld [vmem:[#allocation11 + $0x518] sm:$0xff]
    %v1672 = vld [vmem:[#allocation11 + $0x520] sm:$0xff]
    %v1673 = vld [vmem:[#allocation11 + $0x528] sm:$0xff]
    %v1674 = vld [vmem:[#allocation11 + $0x530] sm:$0xff]
    %v1675 = vld [vmem:[#allocation11 + $0x538] sm:$0xff]
    %v1676 = vld [vmem:[#allocation11 + $0x540] sm:$0xff]
    %v1677 = vld [vmem:[#allocation11 + $0x548] sm:$0xff]
    %v1678 = vld [vmem:[#allocation11 + $0x550] sm:$0xff]
    %v1679 = vld [vmem:[#allocation11 + $0x558] sm:$0xff]
    %v1680 = vld [vmem:[#allocation11 + $0x560] sm:$0xff]
    %v1681 = vld [vmem:[#allocation11 + $0x568] sm:$0xff]
    %v1682 = vld [vmem:[#allocation11 + $0x570] sm:$0xff]
    %v1683 = vld [vmem:[#allocation11 + $0x578] sm:$0xff]
    %v1684 = vld [vmem:[#allocation11 + $0x580] sm:$0xff]
    %v1685 = vld [vmem:[#allocation11 + $0x588] sm:$0xff]
    %v1686 = vld [vmem:[#allocation11 + $0x590] sm:$0xff]
    %v1687 = vld [vmem:[#allocation11 + $0x598] sm:$0xff]
    %v1688 = vld [vmem:[#allocation11 + $0x5a0] sm:$0xff]
    %v1689 = vld [vmem:[#allocation11 + $0x5a8] sm:$0xff]
    %v1690 = vld [vmem:[#allocation11 + $0x5b0] sm:$0xff]
    %v1691 = vld [vmem:[#allocation11 + $0x5b8] sm:$0xff]
    %v1692 = vld [vmem:[#allocation11 + $0x5c0] sm:$0xff]
    %v1693 = vld [vmem:[#allocation11 + $0x5c8] sm:$0xff]
    %v1694 = vld [vmem:[#allocation11 + $0x5d0] sm:$0xff]
    %v1695 = vld [vmem:[#allocation11 + $0x5d8] sm:$0xff]
    %v1696 = vld [vmem:[#allocation11 + $0x5e0] sm:$0xff]
    %v1697 = vld [vmem:[#allocation11 + $0x5e8] sm:$0xff]
    %v1698 = vld [vmem:[#allocation11 + $0x5f0] sm:$0xff]
    %v1699 = vld [vmem:[#allocation11 + $0x5f8] sm:$0xff]
    %v1700 = vld [vmem:[#allocation11 + $0x600] sm:$0xff]
    %v1701 = vld [vmem:[#allocation11 + $0x608] sm:$0xff]
    %v1702 = vld [vmem:[#allocation11 + $0x610] sm:$0xff]
    %v1703 = vld [vmem:[#allocation11 + $0x618] sm:$0xff]
    %v1704 = vld [vmem:[#allocation11 + $0x620] sm:$0xff]
    %v1705 = vld [vmem:[#allocation11 + $0x628] sm:$0xff]
    %v1706 = vld [vmem:[#allocation11 + $0x630] sm:$0xff]
    %v1707 = vld [vmem:[#allocation11 + $0x638] sm:$0xff]
    %v1708 = vld [vmem:[#allocation11 + $0x640] sm:$0xff]
    %v1709 = vld [vmem:[#allocation11 + $0x648] sm:$0xff]
    %v1710 = vld [vmem:[#allocation11 + $0x650] sm:$0xff]
    %v1711 = vld [vmem:[#allocation11 + $0x658] sm:$0xff]
    %v1712 = vld [vmem:[#allocation11 + $0x660] sm:$0xff]
    %v1713 = vld [vmem:[#allocation11 + $0x668] sm:$0xff]
    %v1714 = vld [vmem:[#allocation11 + $0x670] sm:$0xff]
    %v1715 = vld [vmem:[#allocation11 + $0x678] sm:$0xff]
    %v1716 = vld [vmem:[#allocation11 + $0x680] sm:$0xff]
    %v1717 = vld [vmem:[#allocation11 + $0x688] sm:$0xff]
    %v1718 = vld [vmem:[#allocation11 + $0x690] sm:$0xff]
    %v1719 = vld [vmem:[#allocation11 + $0x698] sm:$0xff]
    %v1720 = vld [vmem:[#allocation11 + $0x6a0] sm:$0xff]
    %v1721 = vld [vmem:[#allocation11 + $0x6a8] sm:$0xff]
    %v1722 = vld [vmem:[#allocation11 + $0x6b0] sm:$0xff]
    %v1723 = vld [vmem:[#allocation11 + $0x6b8] sm:$0xff]
    %v1724 = vld [vmem:[#allocation11 + $0x6c0] sm:$0xff]
    %v1725 = vld [vmem:[#allocation11 + $0x6c8] sm:$0xff]
    %v1726 = vld [vmem:[#allocation11 + $0x6d0] sm:$0xff]
    %v1727 = vld [vmem:[#allocation11 + $0x6d8] sm:$0xff]
    %v1728 = vld [vmem:[#allocation11 + $0x6e0] sm:$0xff]
    %v1729 = vld [vmem:[#allocation11 + $0x6e8] sm:$0xff]
    %v1730 = vld [vmem:[#allocation11 + $0x6f0] sm:$0xff]
    %v1731 = vld [vmem:[#allocation11 + $0x6f8] sm:$0xff]
    %v1732 = vld [vmem:[#allocation11 + $0x700] sm:$0xff]
    %v1733 = vld [vmem:[#allocation11 + $0x708] sm:$0xff]
    %v1734 = vld [vmem:[#allocation11 + $0x710] sm:$0xff]
    %v1735 = vld [vmem:[#allocation11 + $0x718] sm:$0xff]
    %v1736 = vld [vmem:[#allocation11 + $0x720] sm:$0xff]
    %v1737 = vld [vmem:[#allocation11 + $0x728] sm:$0xff]
    %v1738 = vld [vmem:[#allocation11 + $0x730] sm:$0xff]
    %v1739 = vld [vmem:[#allocation11 + $0x738] sm:$0xff]
    %v1740 = vld [vmem:[#allocation11 + $0x740] sm:$0xff]
    %v1741 = vld [vmem:[#allocation11 + $0x748] sm:$0xff]
    %v1742 = vld [vmem:[#allocation11 + $0x750] sm:$0xff]
    %v1743 = vld [vmem:[#allocation11 + $0x758] sm:$0xff]
    %v1744 = vld [vmem:[#allocation11 + $0x760] sm:$0xff]
    %v1745 = vld [vmem:[#allocation11 + $0x768] sm:$0xff]
    %v1746 = vld [vmem:[#allocation11 + $0x770] sm:$0xff]
    %v1747 = vld [vmem:[#allocation11 + $0x778] sm:$0xff]
    %v1748 = vld [vmem:[#allocation11 + $0x780] sm:$0xff]
    %v1749 = vld [vmem:[#allocation11 + $0x788] sm:$0xff]
    %v1750 = vld [vmem:[#allocation11 + $0x790] sm:$0xff]
    %v1751 = vld [vmem:[#allocation11 + $0x798] sm:$0xff]
    %v1752 = vld [vmem:[#allocation11 + $0x7a0] sm:$0xff]
    %v1753 = vld [vmem:[#allocation11 + $0x7a8] sm:$0xff]
    %v1754 = vld [vmem:[#allocation11 + $0x7b0] sm:$0xff]
    %v1755 = vld [vmem:[#allocation11 + $0x7b8] sm:$0xff]
    %v1756 = vld [vmem:[#allocation11 + $0x7c0] sm:$0xff]
    %v1757 = vld [vmem:[#allocation11 + $0x7c8] sm:$0xff]
    %v1758 = vld [vmem:[#allocation11 + $0x7d0] sm:$0xff]
    %v1759 = vld [vmem:[#allocation11 + $0x7d8] sm:$0xff]
    %v1760 = vld [vmem:[#allocation11 + $0x7e0] sm:$0xff]
    %v1761 = vld [vmem:[#allocation11 + $0x7e8] sm:$0xff]
    %v1762 = vld [vmem:[#allocation11 + $0x7f0] sm:$0xff]
    %v1763 = vld [vmem:[#allocation11 + $0x7f8] sm:$0xff]
    %v1764 = vld [vmem:[#allocation11 + $0x800] sm:$0xff]
    %v1765 = vld [vmem:[#allocation11 + $0x808] sm:$0xff]
    %v1766 = vld [vmem:[#allocation11 + $0x810] sm:$0xff]
    %v1767 = vld [vmem:[#allocation11 + $0x818] sm:$0xff]
    %v1768 = vld [vmem:[#allocation11 + $0x820] sm:$0xff]
    %v1769 = vld [vmem:[#allocation11 + $0x828] sm:$0xff]
    %v1770 = vld [vmem:[#allocation11 + $0x830] sm:$0xff]
    %v1771 = vld [vmem:[#allocation11 + $0x838] sm:$0xff]
    %v1772 = vld [vmem:[#allocation11 + $0x840] sm:$0xff]
    %v1773 = vld [vmem:[#allocation11 + $0x848] sm:$0xff]
    %v1774 = vld [vmem:[#allocation11 + $0x850] sm:$0xff]
    %v1775 = vld [vmem:[#allocation11 + $0x858] sm:$0xff]
    %v1776 = vld [vmem:[#allocation11 + $0x860] sm:$0xff]
    %v1777 = vld [vmem:[#allocation11 + $0x868] sm:$0xff]
    %v1778 = vld [vmem:[#allocation11 + $0x870] sm:$0xff]
    %v1779 = vld [vmem:[#allocation11 + $0x878] sm:$0xff]
    %v1780 = vld [vmem:[#allocation11 + $0x880] sm:$0xff]
    %v1781 = vld [vmem:[#allocation11 + $0x888] sm:$0xff]
    %v1782 = vld [vmem:[#allocation11 + $0x890] sm:$0xff]
    %v1783 = vld [vmem:[#allocation11 + $0x898] sm:$0xff]
    %v1784 = vld [vmem:[#allocation11 + $0x8a0] sm:$0xff]
    %v1785 = vld [vmem:[#allocation11 + $0x8a8] sm:$0xff]
    %v1786 = vld [vmem:[#allocation11 + $0x8b0] sm:$0xff]
    %v1787 = vld [vmem:[#allocation11 + $0x8b8] sm:$0xff]
    %v1788 = vld [vmem:[#allocation11 + $0x8c0] sm:$0xff]
    %v1789 = vld [vmem:[#allocation11 + $0x8c8] sm:$0xff]
    %v1790 = vld [vmem:[#allocation11 + $0x8d0] sm:$0xff]
    %v1791 = vld [vmem:[#allocation11 + $0x8d8] sm:$0xff]
    %v1792 = vld [vmem:[#allocation11 + $0x8e0] sm:$0xff]
    %v1793 = vld [vmem:[#allocation11 + $0x8e8] sm:$0xff]
    %v1794 = vld [vmem:[#allocation11 + $0x8f0] sm:$0xff]
    %v1795 = vld [vmem:[#allocation11 + $0x8f8] sm:$0xff]
    %v1796 = vld [vmem:[#allocation11 + $0x900] sm:$0xff]
    %v1797 = vld [vmem:[#allocation11 + $0x908] sm:$0xff]
    %v1798 = vld [vmem:[#allocation11 + $0x910] sm:$0xff]
    %v1799 = vld [vmem:[#allocation11 + $0x918] sm:$0xff]
    %v1800 = vld [vmem:[#allocation11 + $0x920] sm:$0xff]
    %v1801 = vld [vmem:[#allocation11 + $0x928] sm:$0xff]
    %v1802 = vld [vmem:[#allocation11 + $0x930] sm:$0xff]
    %v1803 = vld [vmem:[#allocation11 + $0x938] sm:$0xff]
    %v1804 = vld [vmem:[#allocation11 + $0x940] sm:$0xff]
    %v1805 = vld [vmem:[#allocation11 + $0x948] sm:$0xff]
    %v1806 = vld [vmem:[#allocation11 + $0x950] sm:$0xff]
    %v1807 = vld [vmem:[#allocation11 + $0x958] sm:$0xff]
    %v1808 = vld [vmem:[#allocation11 + $0x960] sm:$0xff]
    %v1809 = vld [vmem:[#allocation11 + $0x968] sm:$0xff]
    %v1810 = vld [vmem:[#allocation11 + $0x970] sm:$0xff]
    %v1811 = vld [vmem:[#allocation11 + $0x978] sm:$0xff]
    %v1812 = vld [vmem:[#allocation11 + $0x980] sm:$0xff]
    %v1813 = vld [vmem:[#allocation11 + $0x988] sm:$0xff]
    %v1814 = vld [vmem:[#allocation11 + $0x990] sm:$0xff]
    %v1815 = vld [vmem:[#allocation11 + $0x998] sm:$0xff]
    %v1816 = vld [vmem:[#allocation11 + $0x9a0] sm:$0xff]
    %v1817 = vld [vmem:[#allocation11 + $0x9a8] sm:$0xff]
    %v1818 = vld [vmem:[#allocation11 + $0x9b0] sm:$0xff]
    %v1819 = vld [vmem:[#allocation11 + $0x9b8] sm:$0xff]
    %v1820 = vld [vmem:[#allocation11 + $0x9c0] sm:$0xff]
    %v1821 = vld [vmem:[#allocation11 + $0x9c8] sm:$0xff]
    %v1822 = vld [vmem:[#allocation11 + $0x9d0] sm:$0xff]
    %v1823 = vld [vmem:[#allocation11 + $0x9d8] sm:$0xff]
    %v1824 = vld [vmem:[#allocation11 + $0x9e0] sm:$0xff]
    %v1825 = vld [vmem:[#allocation11 + $0x9e8] sm:$0xff]
    %v1826 = vld [vmem:[#allocation11 + $0x9f0] sm:$0xff]
    %v1827 = vld [vmem:[#allocation11 + $0x9f8] sm:$0xff]
    %v1828 = vld [vmem:[#allocation11 + $0xa00] sm:$0xff]
    %v1829 = vld [vmem:[#allocation11 + $0xa08] sm:$0xff]
    %v1830 = vld [vmem:[#allocation11 + $0xa10] sm:$0xff]
    %v1831 = vld [vmem:[#allocation11 + $0xa18] sm:$0xff]
    %v1832 = vld [vmem:[#allocation11 + $0xa20] sm:$0xff]
    %v1833 = vld [vmem:[#allocation11 + $0xa28] sm:$0xff]
    %v1834 = vld [vmem:[#allocation11 + $0xa30] sm:$0xff]
    %v1835 = vld [vmem:[#allocation11 + $0xa38] sm:$0xff]
    %v1836 = vld [vmem:[#allocation11 + $0xa40] sm:$0xff]
    %v1837 = vld [vmem:[#allocation11 + $0xa48] sm:$0xff]
    %v1838 = vld [vmem:[#allocation11 + $0xa50] sm:$0xff]
    %v1839 = vld [vmem:[#allocation11 + $0xa58] sm:$0xff]
    %v1840 = vld [vmem:[#allocation11 + $0xa60] sm:$0xff]
    %v1841 = vld [vmem:[#allocation11 + $0xa68] sm:$0xff]
    %v1842 = vld [vmem:[#allocation11 + $0xa70] sm:$0xff]
    %v1843 = vld [vmem:[#allocation11 + $0xa78] sm:$0xff]
    %v1844 = vld [vmem:[#allocation11 + $0xa80] sm:$0xff]
    %v1845 = vld [vmem:[#allocation11 + $0xa88] sm:$0xff]
    %v1846 = vld [vmem:[#allocation11 + $0xa90] sm:$0xff]
    %v1847 = vld [vmem:[#allocation11 + $0xa98] sm:$0xff]
    %v1848 = vld [vmem:[#allocation11 + $0xaa0] sm:$0xff]
    %v1849 = vld [vmem:[#allocation11 + $0xaa8] sm:$0xff]
    %v1850 = vld [vmem:[#allocation11 + $0xab0] sm:$0xff]
    %v1851 = vld [vmem:[#allocation11 + $0xab8] sm:$0xff]
    %v1852 = vld [vmem:[#allocation11 + $0xac0] sm:$0xff]
    %v1853 = vld [vmem:[#allocation11 + $0xac8] sm:$0xff]
    %v1854 = vld [vmem:[#allocation11 + $0xad0] sm:$0xff]
    %v1855 = vld [vmem:[#allocation11 + $0xad8] sm:$0xff]
    %v1856 = vld [vmem:[#allocation11 + $0xae0] sm:$0xff]
    %v1857 = vld [vmem:[#allocation11 + $0xae8] sm:$0xff]
    %v1858 = vld [vmem:[#allocation11 + $0xaf0] sm:$0xff]
    %v1859 = vld [vmem:[#allocation11 + $0xaf8] sm:$0xff]
    %v1860 = vld [vmem:[#allocation11 + $0xb00] sm:$0xff]
    %v1861 = vld [vmem:[#allocation11 + $0xb08] sm:$0xff]
    %v1862 = vld [vmem:[#allocation11 + $0xb10] sm:$0xff]
    %v1863 = vld [vmem:[#allocation11 + $0xb18] sm:$0xff]
    %v1864 = vld [vmem:[#allocation11 + $0xb20] sm:$0xff]
    %v1865 = vld [vmem:[#allocation11 + $0xb28] sm:$0xff]
    %v1866 = vld [vmem:[#allocation11 + $0xb30] sm:$0xff]
    %v1867 = vld [vmem:[#allocation11 + $0xb38] sm:$0xff]
    %v1868 = vld [vmem:[#allocation11 + $0xb40] sm:$0xff]
    %v1869 = vld [vmem:[#allocation11 + $0xb48] sm:$0xff]
    %v1870 = vld [vmem:[#allocation11 + $0xb50] sm:$0xff]
    %v1871 = vld [vmem:[#allocation11 + $0xb58] sm:$0xff]
    %v1872 = vld [vmem:[#allocation11 + $0xb60] sm:$0xff]
    %v1873 = vld [vmem:[#allocation11 + $0xb68] sm:$0xff]
    %v1874 = vld [vmem:[#allocation11 + $0xb70] sm:$0xff]
    %v1875 = vld [vmem:[#allocation11 + $0xb78] sm:$0xff]
    %v1876 = vld [vmem:[#allocation11 + $0xb80] sm:$0xff]
    %v1877 = vld [vmem:[#allocation11 + $0xb88] sm:$0xff]
    %v1878 = vld [vmem:[#allocation11 + $0xb90] sm:$0xff]
    %v1879 = vld [vmem:[#allocation11 + $0xb98] sm:$0xff]
    %v1880 = vld [vmem:[#allocation11 + $0xba0] sm:$0xff]
    %v1881 = vld [vmem:[#allocation11 + $0xba8] sm:$0xff]
    %v1882 = vld [vmem:[#allocation11 + $0xbb0] sm:$0xff]
    %v1883 = vld [vmem:[#allocation11 + $0xbb8] sm:$0xff]
    %v1884 = vld [vmem:[#allocation11 + $0xbc0] sm:$0xff]
    %v1885 = vld [vmem:[#allocation11 + $0xbc8] sm:$0xff]
    %v1886 = vld [vmem:[#allocation11 + $0xbd0] sm:$0xff]
    %v1887 = vld [vmem:[#allocation11 + $0xbd8] sm:$0xff]
    %v1888 = vld [vmem:[#allocation11 + $0xbe0] sm:$0xff]
    %v1889 = vld [vmem:[#allocation11 + $0xbe8] sm:$0xff]
    %v1890 = vld [vmem:[#allocation11 + $0xbf0] sm:$0xff]
    %v1891 = vld [vmem:[#allocation11 + $0xbf8] sm:$0xff]
    %v1892 = vld [vmem:[#allocation11 + $0xc00] sm:$0xff]
    %v1893 = vld [vmem:[#allocation11 + $0xc08] sm:$0xff]
    %v1894 = vld [vmem:[#allocation11 + $0xc10] sm:$0xff]
    %v1895 = vld [vmem:[#allocation11 + $0xc18] sm:$0xff]
    %v1896 = vld [vmem:[#allocation11 + $0xc20] sm:$0xff]
    %v1897 = vld [vmem:[#allocation11 + $0xc28] sm:$0xff]
    %v1898 = vld [vmem:[#allocation11 + $0xc30] sm:$0xff]
    %v1899 = vld [vmem:[#allocation11 + $0xc38] sm:$0xff]
    %v1900 = vld [vmem:[#allocation11 + $0xc40] sm:$0xff]
    %v1901 = vld [vmem:[#allocation11 + $0xc48] sm:$0xff]
    %v1902 = vld [vmem:[#allocation11 + $0xc50] sm:$0xff]
    %v1903 = vld [vmem:[#allocation11 + $0xc58] sm:$0xff]
    %v1904 = vld [vmem:[#allocation11 + $0xc60] sm:$0xff]
    %v1905 = vld [vmem:[#allocation11 + $0xc68] sm:$0xff]
    %v1906 = vld [vmem:[#allocation11 + $0xc70] sm:$0xff]
    %v1907 = vld [vmem:[#allocation11 + $0xc78] sm:$0xff]
    %v1908 = vld [vmem:[#allocation11 + $0xc80] sm:$0xff]
    %v1909 = vld [vmem:[#allocation11 + $0xc88] sm:$0xff]
    %v1910 = vld [vmem:[#allocation11 + $0xc90] sm:$0xff]
    %v1911 = vld [vmem:[#allocation11 + $0xc98] sm:$0xff]
    %v1912 = vld [vmem:[#allocation11 + $0xca0] sm:$0xff]
    %v1913 = vld [vmem:[#allocation11 + $0xca8] sm:$0xff]
    %v1914 = vld [vmem:[#allocation11 + $0xcb0] sm:$0xff]
    %v1915 = vld [vmem:[#allocation11 + $0xcb8] sm:$0xff]
    %v1916 = vld [vmem:[#allocation11 + $0xcc0] sm:$0xff]
    %v1917 = vld [vmem:[#allocation11 + $0xcc8] sm:$0xff]
    %v1918 = vld [vmem:[#allocation11 + $0xcd0] sm:$0xff]
    %v1919 = vld [vmem:[#allocation11 + $0xcd8] sm:$0xff]
    %v1920 = vld [vmem:[#allocation11 + $0xce0] sm:$0xff]
    %v1921 = vld [vmem:[#allocation11 + $0xce8] sm:$0xff]
    %v1922 = vld [vmem:[#allocation11 + $0xcf0] sm:$0xff]
    %v1923 = vld [vmem:[#allocation11 + $0xcf8] sm:$0xff]
    %v1924 = vld [vmem:[#allocation11 + $0xd00] sm:$0xff]
    %v1925 = vld [vmem:[#allocation11 + $0xd08] sm:$0xff]
    %v1926 = vld [vmem:[#allocation11 + $0xd10] sm:$0xff]
    %v1927 = vld [vmem:[#allocation11 + $0xd18] sm:$0xff]
    %v1928 = vld [vmem:[#allocation11 + $0xd20] sm:$0xff]
    %v1929 = vld [vmem:[#allocation11 + $0xd28] sm:$0xff]
    %v1930 = vld [vmem:[#allocation11 + $0xd30] sm:$0xff]
    %v1931 = vld [vmem:[#allocation11 + $0xd38] sm:$0xff]
    %v1932 = vld [vmem:[#allocation11 + $0xd40] sm:$0xff]
    %v1933 = vld [vmem:[#allocation11 + $0xd48] sm:$0xff]
    %v1934 = vld [vmem:[#allocation11 + $0xd50] sm:$0xff]
    %v1935 = vld [vmem:[#allocation11 + $0xd58] sm:$0xff]
    %v1936 = vld [vmem:[#allocation11 + $0xd60] sm:$0xff]
    %v1937 = vld [vmem:[#allocation11 + $0xd68] sm:$0xff]
    %v1938 = vld [vmem:[#allocation11 + $0xd70] sm:$0xff]
    %v1939 = vld [vmem:[#allocation11 + $0xd78] sm:$0xff]
    %v1940 = vld [vmem:[#allocation11 + $0xd80] sm:$0xff]
    %v1941 = vld [vmem:[#allocation11 + $0xd88] sm:$0xff]
    %v1942 = vld [vmem:[#allocation11 + $0xd90] sm:$0xff]
    %v1943 = vld [vmem:[#allocation11 + $0xd98] sm:$0xff]
    %v1944 = vld [vmem:[#allocation11 + $0xda0] sm:$0xff]
    %v1945 = vld [vmem:[#allocation11 + $0xda8] sm:$0xff]
    %v1946 = vld [vmem:[#allocation11 + $0xdb0] sm:$0xff]
    %v1947 = vld [vmem:[#allocation11 + $0xdb8] sm:$0xff]
    %v1948 = vld [vmem:[#allocation11 + $0xdc0] sm:$0xff]
    %v1949 = vld [vmem:[#allocation11 + $0xdc8] sm:$0xff]
    %v1950 = vld [vmem:[#allocation11 + $0xdd0] sm:$0xff]
    %v1951 = vld [vmem:[#allocation11 + $0xdd8] sm:$0xff]
    %v1952 = vld [vmem:[#allocation11 + $0xde0] sm:$0xff]
    %v1953 = vld [vmem:[#allocation11 + $0xde8] sm:$0xff]
    %v1954 = vld [vmem:[#allocation11 + $0xdf0] sm:$0xff]
    %v1955 = vld [vmem:[#allocation11 + $0xdf8] sm:$0xff]
    %v1956 = vld [vmem:[#allocation11 + $0xe00] sm:$0xff]
    %v1957 = vld [vmem:[#allocation11 + $0xe08] sm:$0xff]
    %v1958 = vld [vmem:[#allocation11 + $0xe10] sm:$0xff]
    %v1959 = vld [vmem:[#allocation11 + $0xe18] sm:$0xff]
    %v1960 = vld [vmem:[#allocation11 + $0xe20] sm:$0xff]
    %v1961 = vld [vmem:[#allocation11 + $0xe28] sm:$0xff]
    %v1962 = vld [vmem:[#allocation11 + $0xe30] sm:$0xff]
    %v1963 = vld [vmem:[#allocation11 + $0xe38] sm:$0xff]
    %v1964 = vld [vmem:[#allocation11 + $0xe40] sm:$0xff]
    %v1965 = vld [vmem:[#allocation11 + $0xe48] sm:$0xff]
    %v1966 = vld [vmem:[#allocation11 + $0xe50] sm:$0xff]
    %v1967 = vld [vmem:[#allocation11 + $0xe58] sm:$0xff]
    %v1968 = vld [vmem:[#allocation11 + $0xe60] sm:$0xff]
    %v1969 = vld [vmem:[#allocation11 + $0xe68] sm:$0xff]
    %v1970 = vld [vmem:[#allocation11 + $0xe70] sm:$0xff]
    %v1971 = vld [vmem:[#allocation11 + $0xe78] sm:$0xff]
    %v1972 = vld [vmem:[#allocation11 + $0xe80] sm:$0xff]
    %v1973 = vld [vmem:[#allocation11 + $0xe88] sm:$0xff]
    %v1974 = vld [vmem:[#allocation11 + $0xe90] sm:$0xff]
    %v1975 = vld [vmem:[#allocation11 + $0xe98] sm:$0xff]
    %v1976 = vld [vmem:[#allocation11 + $0xea0] sm:$0xff]
    %v1977 = vld [vmem:[#allocation11 + $0xea8] sm:$0xff]
    %v1978 = vld [vmem:[#allocation11 + $0xeb0] sm:$0xff]
    %v1979 = vld [vmem:[#allocation11 + $0xeb8] sm:$0xff]
    %v1980 = vld [vmem:[#allocation11 + $0xec0] sm:$0xff]
    %v1981 = vld [vmem:[#allocation11 + $0xec8] sm:$0xff]
    %v1982 = vld [vmem:[#allocation11 + $0xed0] sm:$0xff]
    %v1983 = vld [vmem:[#allocation11 + $0xed8] sm:$0xff]
    %v1984 = vld [vmem:[#allocation11 + $0xee0] sm:$0xff]
    %v1985 = vld [vmem:[#allocation11 + $0xee8] sm:$0xff]
    %v1986 = vld [vmem:[#allocation11 + $0xef0] sm:$0xff]
    %v1987 = vld [vmem:[#allocation11 + $0xef8] sm:$0xff]
    %v1988 = vld [vmem:[#allocation11 + $0xf00] sm:$0xff]
    %v1989 = vld [vmem:[#allocation11 + $0xf08] sm:$0xff]
    %v1990 = vld [vmem:[#allocation11 + $0xf10] sm:$0xff]
    %v1991 = vld [vmem:[#allocation11 + $0xf18] sm:$0xff]
    %v1992 = vld [vmem:[#allocation11 + $0xf20] sm:$0xff]
    %v1993 = vld [vmem:[#allocation11 + $0xf28] sm:$0xff]
    %v1994 = vld [vmem:[#allocation11 + $0xf30] sm:$0xff]
    %v1995 = vld [vmem:[#allocation11 + $0xf38] sm:$0xff]
    %v1996 = vld [vmem:[#allocation11 + $0xf40] sm:$0xff]
    %v1997 = vld [vmem:[#allocation11 + $0xf48] sm:$0xff]
    %v1998 = vld [vmem:[#allocation11 + $0xf50] sm:$0xff]
    %v1999 = vld [vmem:[#allocation11 + $0xf58] sm:$0xff]
    %v2000 = vld [vmem:[#allocation11 + $0xf60] sm:$0xff]
    %v2001 = vld [vmem:[#allocation11 + $0xf68] sm:$0xff]
    %v2002 = vld [vmem:[#allocation11 + $0xf70] sm:$0xff]
    %v2003 = vld [vmem:[#allocation11 + $0xf78] sm:$0xff]
    %v2004 = vld [vmem:[#allocation11 + $0xf80] sm:$0xff]
    %v2005 = vld [vmem:[#allocation11 + $0xf88] sm:$0xff]
    %v2006 = vld [vmem:[#allocation11 + $0xf90] sm:$0xff]
    %v2007 = vld [vmem:[#allocation11 + $0xf98] sm:$0xff]
    %v2008 = vld [vmem:[#allocation11 + $0xfa0] sm:$0xff]
    %v2009 = vld [vmem:[#allocation11 + $0xfa8] sm:$0xff]
    %v2010 = vld [vmem:[#allocation11 + $0xfb0] sm:$0xff]
    %v2011 = vld [vmem:[#allocation11 + $0xfb8] sm:$0xff]
    %v2012 = vld [vmem:[#allocation11 + $0xfc0] sm:$0xff]
    %v2013 = vld [vmem:[#allocation11 + $0xfc8] sm:$0xff]
    %v2014 = vld [vmem:[#allocation11 + $0xfd0] sm:$0xff]
    %v2015 = vld [vmem:[#allocation11 + $0xfd8] sm:$0xff]
    %v2016 = vld [vmem:[#allocation11 + $0xfe0] sm:$0xff]
    %v2017 = vld [vmem:[#allocation11 + $0xfe8] sm:$0xff]
    %v2018 = vld [vmem:[#allocation11 + $0xff0] sm:$0xff]
    %v2019 = vld [vmem:[#allocation11 + $0xff8] sm:$0xff]
    %v2532 = vunpack.c.l.b16 %v1508
    %v2533 = vunpack.c.h.b16 %v1508
    %v2534 = vunpack.c.l.b16 %v1509
    %v2535 = vunpack.c.h.b16 %v1509
    %v2536 = vunpack.c.l.b16 %v1510
    %v2537 = vunpack.c.h.b16 %v1510
    %v2538 = vunpack.c.l.b16 %v1511
    %v2539 = vunpack.c.h.b16 %v1511
    %v2540 = vunpack.c.l.b16 %v1512
    %v2541 = vunpack.c.h.b16 %v1512
    %v2542 = vunpack.c.l.b16 %v1513
    %v2543 = vunpack.c.h.b16 %v1513
    %v2544 = vunpack.c.l.b16 %v1514
    %v2545 = vunpack.c.h.b16 %v1514
    %v2546 = vunpack.c.l.b16 %v1515
    %v2547 = vunpack.c.h.b16 %v1515
    %v2548 = vunpack.c.l.b16 %v1516
    %v2549 = vunpack.c.h.b16 %v1516
    %v2550 = vunpack.c.l.b16 %v1517
    %v2551 = vunpack.c.h.b16 %v1517
    %v2552 = vunpack.c.l.b16 %v1518
    %v2553 = vunpack.c.h.b16 %v1518
    %v2554 = vunpack.c.l.b16 %v1519
    %v2555 = vunpack.c.h.b16 %v1519
    %v2556 = vunpack.c.l.b16 %v1520
    %v2557 = vunpack.c.h.b16 %v1520
    %v2558 = vunpack.c.l.b16 %v1521
    %v2559 = vunpack.c.h.b16 %v1521
    %v2560 = vunpack.c.l.b16 %v1522
    %v2561 = vunpack.c.h.b16 %v1522
    %v2562 = vunpack.c.l.b16 %v1523
    %v2563 = vunpack.c.h.b16 %v1523
    %v2564 = vunpack.c.l.b16 %v1524
    %v2565 = vunpack.c.h.b16 %v1524
    %v2566 = vunpack.c.l.b16 %v1525
    %v2567 = vunpack.c.h.b16 %v1525
    %v2568 = vunpack.c.l.b16 %v1526
    %v2569 = vunpack.c.h.b16 %v1526
    %v2570 = vunpack.c.l.b16 %v1527
    %v2571 = vunpack.c.h.b16 %v1527
    %v2572 = vunpack.c.l.b16 %v1528
    %v2573 = vunpack.c.h.b16 %v1528
    %v2574 = vunpack.c.l.b16 %v1529
    %v2575 = vunpack.c.h.b16 %v1529
    %v2576 = vunpack.c.l.b16 %v1530
    %v2577 = vunpack.c.h.b16 %v1530
    %v2578 = vunpack.c.l.b16 %v1531
    %v2579 = vunpack.c.h.b16 %v1531
    %v2580 = vunpack.c.l.b16 %v1532
    %v2581 = vunpack.c.h.b16 %v1532
    %v2582 = vunpack.c.l.b16 %v1533
    %v2583 = vunpack.c.h.b16 %v1533
    %v2584 = vunpack.c.l.b16 %v1534
    %v2585 = vunpack.c.h.b16 %v1534
    %v2586 = vunpack.c.l.b16 %v1535
    %v2587 = vunpack.c.h.b16 %v1535
    %v2588 = vunpack.c.l.b16 %v1536
    %v2589 = vunpack.c.h.b16 %v1536
    %v2590 = vunpack.c.l.b16 %v1537
    %v2591 = vunpack.c.h.b16 %v1537
    %v2592 = vunpack.c.l.b16 %v1538
    %v2593 = vunpack.c.h.b16 %v1538
    %v2594 = vunpack.c.l.b16 %v1539
    %v2595 = vunpack.c.h.b16 %v1539
    %v2596 = vunpack.c.l.b16 %v1540
    %v2597 = vunpack.c.h.b16 %v1540
    %v2598 = vunpack.c.l.b16 %v1541
    %v2599 = vunpack.c.h.b16 %v1541
    %v2600 = vunpack.c.l.b16 %v1542
    %v2601 = vunpack.c.h.b16 %v1542
    %v2602 = vunpack.c.l.b16 %v1543
    %v2603 = vunpack.c.h.b16 %v1543
    %v2604 = vunpack.c.l.b16 %v1544
    %v2605 = vunpack.c.h.b16 %v1544
    %v2606 = vunpack.c.l.b16 %v1545
    %v2607 = vunpack.c.h.b16 %v1545
    %v2608 = vunpack.c.l.b16 %v1546
    %v2609 = vunpack.c.h.b16 %v1546
    %v2610 = vunpack.c.l.b16 %v1547
    %v2611 = vunpack.c.h.b16 %v1547
    %v2612 = vunpack.c.l.b16 %v1548
    %v2613 = vunpack.c.h.b16 %v1548
    %v2614 = vunpack.c.l.b16 %v1549
    %v2615 = vunpack.c.h.b16 %v1549
    %v2616 = vunpack.c.l.b16 %v1550
    %v2617 = vunpack.c.h.b16 %v1550
    %v2618 = vunpack.c.l.b16 %v1551
    %v2619 = vunpack.c.h.b16 %v1551
    %v2620 = vunpack.c.l.b16 %v1552
    %v2621 = vunpack.c.h.b16 %v1552
    %v2622 = vunpack.c.l.b16 %v1553
    %v2623 = vunpack.c.h.b16 %v1553
    %v2624 = vunpack.c.l.b16 %v1554
    %v2625 = vunpack.c.h.b16 %v1554
    %v2626 = vunpack.c.l.b16 %v1555
    %v2627 = vunpack.c.h.b16 %v1555
    %v2628 = vunpack.c.l.b16 %v1556
    %v2629 = vunpack.c.h.b16 %v1556
    %v2630 = vunpack.c.l.b16 %v1557
    %v2631 = vunpack.c.h.b16 %v1557
    %v2632 = vunpack.c.l.b16 %v1558
    %v2633 = vunpack.c.h.b16 %v1558
    %v2634 = vunpack.c.l.b16 %v1559
    %v2635 = vunpack.c.h.b16 %v1559
    %v2636 = vunpack.c.l.b16 %v1560
    %v2637 = vunpack.c.h.b16 %v1560
    %v2638 = vunpack.c.l.b16 %v1561
    %v2639 = vunpack.c.h.b16 %v1561
    %v2640 = vunpack.c.l.b16 %v1562
    %v2641 = vunpack.c.h.b16 %v1562
    %v2642 = vunpack.c.l.b16 %v1563
    %v2643 = vunpack.c.h.b16 %v1563
    %v2644 = vunpack.c.l.b16 %v1564
    %v2645 = vunpack.c.h.b16 %v1564
    %v2646 = vunpack.c.l.b16 %v1565
    %v2647 = vunpack.c.h.b16 %v1565
    %v2648 = vunpack.c.l.b16 %v1566
    %v2649 = vunpack.c.h.b16 %v1566
    %v2650 = vunpack.c.l.b16 %v1567
    %v2651 = vunpack.c.h.b16 %v1567
    %v2652 = vunpack.c.l.b16 %v1568
    %v2653 = vunpack.c.h.b16 %v1568
    %v2654 = vunpack.c.l.b16 %v1569
    %v2655 = vunpack.c.h.b16 %v1569
    %v2656 = vunpack.c.l.b16 %v1570
    %v2657 = vunpack.c.h.b16 %v1570
    %v2658 = vunpack.c.l.b16 %v1571
    %v2659 = vunpack.c.h.b16 %v1571
    %v2660 = vunpack.c.l.b16 %v1572
    %v2661 = vunpack.c.h.b16 %v1572
    %v2662 = vunpack.c.l.b16 %v1573
    %v2663 = vunpack.c.h.b16 %v1573
    %v2664 = vunpack.c.l.b16 %v1574
    %v2665 = vunpack.c.h.b16 %v1574
    %v2666 = vunpack.c.l.b16 %v1575
    %v2667 = vunpack.c.h.b16 %v1575
    %v2668 = vunpack.c.l.b16 %v1576
    %v2669 = vunpack.c.h.b16 %v1576
    %v2670 = vunpack.c.l.b16 %v1577
    %v2671 = vunpack.c.h.b16 %v1577
    %v2672 = vunpack.c.l.b16 %v1578
    %v2673 = vunpack.c.h.b16 %v1578
    %v2674 = vunpack.c.l.b16 %v1579
    %v2675 = vunpack.c.h.b16 %v1579
    %v2676 = vunpack.c.l.b16 %v1580
    %v2677 = vunpack.c.h.b16 %v1580
    %v2678 = vunpack.c.l.b16 %v1581
    %v2679 = vunpack.c.h.b16 %v1581
    %v2680 = vunpack.c.l.b16 %v1582
    %v2681 = vunpack.c.h.b16 %v1582
    %v2682 = vunpack.c.l.b16 %v1583
    %v2683 = vunpack.c.h.b16 %v1583
    %v2684 = vunpack.c.l.b16 %v1584
    %v2685 = vunpack.c.h.b16 %v1584
    %v2686 = vunpack.c.l.b16 %v1585
    %v2687 = vunpack.c.h.b16 %v1585
    %v2688 = vunpack.c.l.b16 %v1586
    %v2689 = vunpack.c.h.b16 %v1586
    %v2690 = vunpack.c.l.b16 %v1587
    %v2691 = vunpack.c.h.b16 %v1587
    %v2692 = vunpack.c.l.b16 %v1588
    %v2693 = vunpack.c.h.b16 %v1588
    %v2694 = vunpack.c.l.b16 %v1589
    %v2695 = vunpack.c.h.b16 %v1589
    %v2696 = vunpack.c.l.b16 %v1590
    %v2697 = vunpack.c.h.b16 %v1590
    %v2698 = vunpack.c.l.b16 %v1591
    %v2699 = vunpack.c.h.b16 %v1591
    %v2700 = vunpack.c.l.b16 %v1592
    %v2701 = vunpack.c.h.b16 %v1592
    %v2702 = vunpack.c.l.b16 %v1593
    %v2703 = vunpack.c.h.b16 %v1593
    %v2704 = vunpack.c.l.b16 %v1594
    %v2705 = vunpack.c.h.b16 %v1594
    %v2706 = vunpack.c.l.b16 %v1595
    %v2707 = vunpack.c.h.b16 %v1595
    %v2708 = vunpack.c.l.b16 %v1596
    %v2709 = vunpack.c.h.b16 %v1596
    %v2710 = vunpack.c.l.b16 %v1597
    %v2711 = vunpack.c.h.b16 %v1597
    %v2712 = vunpack.c.l.b16 %v1598
    %v2713 = vunpack.c.h.b16 %v1598
    %v2714 = vunpack.c.l.b16 %v1599
    %v2715 = vunpack.c.h.b16 %v1599
    %v2716 = vunpack.c.l.b16 %v1600
    %v2717 = vunpack.c.h.b16 %v1600
    %v2718 = vunpack.c.l.b16 %v1601
    %v2719 = vunpack.c.h.b16 %v1601
    %v2720 = vunpack.c.l.b16 %v1602
    %v2721 = vunpack.c.h.b16 %v1602
    %v2722 = vunpack.c.l.b16 %v1603
    %v2723 = vunpack.c.h.b16 %v1603
    %v2724 = vunpack.c.l.b16 %v1604
    %v2725 = vunpack.c.h.b16 %v1604
    %v2726 = vunpack.c.l.b16 %v1605
    %v2727 = vunpack.c.h.b16 %v1605
    %v2728 = vunpack.c.l.b16 %v1606
    %v2729 = vunpack.c.h.b16 %v1606
    %v2730 = vunpack.c.l.b16 %v1607
    %v2731 = vunpack.c.h.b16 %v1607
    %v2732 = vunpack.c.l.b16 %v1608
    %v2733 = vunpack.c.h.b16 %v1608
    %v2734 = vunpack.c.l.b16 %v1609
    %v2735 = vunpack.c.h.b16 %v1609
    %v2736 = vunpack.c.l.b16 %v1610
    %v2737 = vunpack.c.h.b16 %v1610
    %v2738 = vunpack.c.l.b16 %v1611
    %v2739 = vunpack.c.h.b16 %v1611
    %v2740 = vunpack.c.l.b16 %v1612
    %v2741 = vunpack.c.h.b16 %v1612
    %v2742 = vunpack.c.l.b16 %v1613
    %v2743 = vunpack.c.h.b16 %v1613
    %v2744 = vunpack.c.l.b16 %v1614
    %v2745 = vunpack.c.h.b16 %v1614
    %v2746 = vunpack.c.l.b16 %v1615
    %v2747 = vunpack.c.h.b16 %v1615
    %v2748 = vunpack.c.l.b16 %v1616
    %v2749 = vunpack.c.h.b16 %v1616
    %v2750 = vunpack.c.l.b16 %v1617
    %v2751 = vunpack.c.h.b16 %v1617
    %v2752 = vunpack.c.l.b16 %v1618
    %v2753 = vunpack.c.h.b16 %v1618
    %v2754 = vunpack.c.l.b16 %v1619
    %v2755 = vunpack.c.h.b16 %v1619
    %v2756 = vunpack.c.l.b16 %v1620
    %v2757 = vunpack.c.h.b16 %v1620
    %v2758 = vunpack.c.l.b16 %v1621
    %v2759 = vunpack.c.h.b16 %v1621
    %v2760 = vunpack.c.l.b16 %v1622
    %v2761 = vunpack.c.h.b16 %v1622
    %v2762 = vunpack.c.l.b16 %v1623
    %v2763 = vunpack.c.h.b16 %v1623
    %v2764 = vunpack.c.l.b16 %v1624
    %v2765 = vunpack.c.h.b16 %v1624
    %v2766 = vunpack.c.l.b16 %v1625
    %v2767 = vunpack.c.h.b16 %v1625
    %v2768 = vunpack.c.l.b16 %v1626
    %v2769 = vunpack.c.h.b16 %v1626
    %v2770 = vunpack.c.l.b16 %v1627
    %v2771 = vunpack.c.h.b16 %v1627
    %v2772 = vunpack.c.l.b16 %v1628
    %v2773 = vunpack.c.h.b16 %v1628
    %v2774 = vunpack.c.l.b16 %v1629
    %v2775 = vunpack.c.h.b16 %v1629
    %v2776 = vunpack.c.l.b16 %v1630
    %v2777 = vunpack.c.h.b16 %v1630
    %v2778 = vunpack.c.l.b16 %v1631
    %v2779 = vunpack.c.h.b16 %v1631
    %v2780 = vunpack.c.l.b16 %v1632
    %v2781 = vunpack.c.h.b16 %v1632
    %v2782 = vunpack.c.l.b16 %v1633
    %v2783 = vunpack.c.h.b16 %v1633
    %v2784 = vunpack.c.l.b16 %v1634
    %v2785 = vunpack.c.h.b16 %v1634
    %v2786 = vunpack.c.l.b16 %v1635
    %v2787 = vunpack.c.h.b16 %v1635
    %v2788 = vunpack.c.l.b16 %v1636
    %v2789 = vunpack.c.h.b16 %v1636
    %v2790 = vunpack.c.l.b16 %v1637
    %v2791 = vunpack.c.h.b16 %v1637
    %v2792 = vunpack.c.l.b16 %v1638
    %v2793 = vunpack.c.h.b16 %v1638
    %v2794 = vunpack.c.l.b16 %v1639
    %v2795 = vunpack.c.h.b16 %v1639
    %v2796 = vunpack.c.l.b16 %v1640
    %v2797 = vunpack.c.h.b16 %v1640
    %v2798 = vunpack.c.l.b16 %v1641
    %v2799 = vunpack.c.h.b16 %v1641
    %v2800 = vunpack.c.l.b16 %v1642
    %v2801 = vunpack.c.h.b16 %v1642
    %v2802 = vunpack.c.l.b16 %v1643
    %v2803 = vunpack.c.h.b16 %v1643
    %v2804 = vunpack.c.l.b16 %v1644
    %v2805 = vunpack.c.h.b16 %v1644
    %v2806 = vunpack.c.l.b16 %v1645
    %v2807 = vunpack.c.h.b16 %v1645
    %v2808 = vunpack.c.l.b16 %v1646
    %v2809 = vunpack.c.h.b16 %v1646
    %v2810 = vunpack.c.l.b16 %v1647
    %v2811 = vunpack.c.h.b16 %v1647
    %v2812 = vunpack.c.l.b16 %v1648
    %v2813 = vunpack.c.h.b16 %v1648
    %v2814 = vunpack.c.l.b16 %v1649
    %v2815 = vunpack.c.h.b16 %v1649
    %v2816 = vunpack.c.l.b16 %v1650
    %v2817 = vunpack.c.h.b16 %v1650
    %v2818 = vunpack.c.l.b16 %v1651
    %v2819 = vunpack.c.h.b16 %v1651
    %v2820 = vunpack.c.l.b16 %v1652
    %v2821 = vunpack.c.h.b16 %v1652
    %v2822 = vunpack.c.l.b16 %v1653
    %v2823 = vunpack.c.h.b16 %v1653
    %v2824 = vunpack.c.l.b16 %v1654
    %v2825 = vunpack.c.h.b16 %v1654
    %v2826 = vunpack.c.l.b16 %v1655
    %v2827 = vunpack.c.h.b16 %v1655
    %v2828 = vunpack.c.l.b16 %v1656
    %v2829 = vunpack.c.h.b16 %v1656
    %v2830 = vunpack.c.l.b16 %v1657
    %v2831 = vunpack.c.h.b16 %v1657
    %v2832 = vunpack.c.l.b16 %v1658
    %v2833 = vunpack.c.h.b16 %v1658
    %v2834 = vunpack.c.l.b16 %v1659
    %v2835 = vunpack.c.h.b16 %v1659
    %v2836 = vunpack.c.l.b16 %v1660
    %v2837 = vunpack.c.h.b16 %v1660
    %v2838 = vunpack.c.l.b16 %v1661
    %v2839 = vunpack.c.h.b16 %v1661
    %v2840 = vunpack.c.l.b16 %v1662
    %v2841 = vunpack.c.h.b16 %v1662
    %v2842 = vunpack.c.l.b16 %v1663
    %v2843 = vunpack.c.h.b16 %v1663
    %v2844 = vunpack.c.l.b16 %v1664
    %v2845 = vunpack.c.h.b16 %v1664
    %v2846 = vunpack.c.l.b16 %v1665
    %v2847 = vunpack.c.h.b16 %v1665
    %v2848 = vunpack.c.l.b16 %v1666
    %v2849 = vunpack.c.h.b16 %v1666
    %v2850 = vunpack.c.l.b16 %v1667
    %v2851 = vunpack.c.h.b16 %v1667
    %v2852 = vunpack.c.l.b16 %v1668
    %v2853 = vunpack.c.h.b16 %v1668
    %v2854 = vunpack.c.l.b16 %v1669
    %v2855 = vunpack.c.h.b16 %v1669
    %v2856 = vunpack.c.l.b16 %v1670
    %v2857 = vunpack.c.h.b16 %v1670
    %v2858 = vunpack.c.l.b16 %v1671
    %v2859 = vunpack.c.h.b16 %v1671
    %v2860 = vunpack.c.l.b16 %v1672
    %v2861 = vunpack.c.h.b16 %v1672
    %v2862 = vunpack.c.l.b16 %v1673
    %v2863 = vunpack.c.h.b16 %v1673
    %v2864 = vunpack.c.l.b16 %v1674
    %v2865 = vunpack.c.h.b16 %v1674
    %v2866 = vunpack.c.l.b16 %v1675
    %v2867 = vunpack.c.h.b16 %v1675
    %v2868 = vunpack.c.l.b16 %v1676
    %v2869 = vunpack.c.h.b16 %v1676
    %v2870 = vunpack.c.l.b16 %v1677
    %v2871 = vunpack.c.h.b16 %v1677
    %v2872 = vunpack.c.l.b16 %v1678
    %v2873 = vunpack.c.h.b16 %v1678
    %v2874 = vunpack.c.l.b16 %v1679
    %v2875 = vunpack.c.h.b16 %v1679
    %v2876 = vunpack.c.l.b16 %v1680
    %v2877 = vunpack.c.h.b16 %v1680
    %v2878 = vunpack.c.l.b16 %v1681
    %v2879 = vunpack.c.h.b16 %v1681
    %v2880 = vunpack.c.l.b16 %v1682
    %v2881 = vunpack.c.h.b16 %v1682
    %v2882 = vunpack.c.l.b16 %v1683
    %v2883 = vunpack.c.h.b16 %v1683
    %v2884 = vunpack.c.l.b16 %v1684
    %v2885 = vunpack.c.h.b16 %v1684
    %v2886 = vunpack.c.l.b16 %v1685
    %v2887 = vunpack.c.h.b16 %v1685
    %v2888 = vunpack.c.l.b16 %v1686
    %v2889 = vunpack.c.h.b16 %v1686
    %v2890 = vunpack.c.l.b16 %v1687
    %v2891 = vunpack.c.h.b16 %v1687
    %v2892 = vunpack.c.l.b16 %v1688
    %v2893 = vunpack.c.h.b16 %v1688
    %v2894 = vunpack.c.l.b16 %v1689
    %v2895 = vunpack.c.h.b16 %v1689
    %v2896 = vunpack.c.l.b16 %v1690
    %v2897 = vunpack.c.h.b16 %v1690
    %v2898 = vunpack.c.l.b16 %v1691
    %v2899 = vunpack.c.h.b16 %v1691
    %v2900 = vunpack.c.l.b16 %v1692
    %v2901 = vunpack.c.h.b16 %v1692
    %v2902 = vunpack.c.l.b16 %v1693
    %v2903 = vunpack.c.h.b16 %v1693
    %v2904 = vunpack.c.l.b16 %v1694
    %v2905 = vunpack.c.h.b16 %v1694
    %v2906 = vunpack.c.l.b16 %v1695
    %v2907 = vunpack.c.h.b16 %v1695
    %v2908 = vunpack.c.l.b16 %v1696
    %v2909 = vunpack.c.h.b16 %v1696
    %v2910 = vunpack.c.l.b16 %v1697
    %v2911 = vunpack.c.h.b16 %v1697
    %v2912 = vunpack.c.l.b16 %v1698
    %v2913 = vunpack.c.h.b16 %v1698
    %v2914 = vunpack.c.l.b16 %v1699
    %v2915 = vunpack.c.h.b16 %v1699
    %v2916 = vunpack.c.l.b16 %v1700
    %v2917 = vunpack.c.h.b16 %v1700
    %v2918 = vunpack.c.l.b16 %v1701
    %v2919 = vunpack.c.h.b16 %v1701
    %v2920 = vunpack.c.l.b16 %v1702
    %v2921 = vunpack.c.h.b16 %v1702
    %v2922 = vunpack.c.l.b16 %v1703
    %v2923 = vunpack.c.h.b16 %v1703
    %v2924 = vunpack.c.l.b16 %v1704
    %v2925 = vunpack.c.h.b16 %v1704
    %v2926 = vunpack.c.l.b16 %v1705
    %v2927 = vunpack.c.h.b16 %v1705
    %v2928 = vunpack.c.l.b16 %v1706
    %v2929 = vunpack.c.h.b16 %v1706
    %v2930 = vunpack.c.l.b16 %v1707
    %v2931 = vunpack.c.h.b16 %v1707
    %v2932 = vunpack.c.l.b16 %v1708
    %v2933 = vunpack.c.h.b16 %v1708
    %v2934 = vunpack.c.l.b16 %v1709
    %v2935 = vunpack.c.h.b16 %v1709
    %v2936 = vunpack.c.l.b16 %v1710
    %v2937 = vunpack.c.h.b16 %v1710
    %v2938 = vunpack.c.l.b16 %v1711
    %v2939 = vunpack.c.h.b16 %v1711
    %v2940 = vunpack.c.l.b16 %v1712
    %v2941 = vunpack.c.h.b16 %v1712
    %v2942 = vunpack.c.l.b16 %v1713
    %v2943 = vunpack.c.h.b16 %v1713
    %v2944 = vunpack.c.l.b16 %v1714
    %v2945 = vunpack.c.h.b16 %v1714
    %v2946 = vunpack.c.l.b16 %v1715
    %v2947 = vunpack.c.h.b16 %v1715
    %v2948 = vunpack.c.l.b16 %v1716
    %v2949 = vunpack.c.h.b16 %v1716
    %v2950 = vunpack.c.l.b16 %v1717
    %v2951 = vunpack.c.h.b16 %v1717
    %v2952 = vunpack.c.l.b16 %v1718
    %v2953 = vunpack.c.h.b16 %v1718
    %v2954 = vunpack.c.l.b16 %v1719
    %v2955 = vunpack.c.h.b16 %v1719
    %v2956 = vunpack.c.l.b16 %v1720
    %v2957 = vunpack.c.h.b16 %v1720
    %v2958 = vunpack.c.l.b16 %v1721
    %v2959 = vunpack.c.h.b16 %v1721
    %v2960 = vunpack.c.l.b16 %v1722
    %v2961 = vunpack.c.h.b16 %v1722
    %v2962 = vunpack.c.l.b16 %v1723
    %v2963 = vunpack.c.h.b16 %v1723
    %v2964 = vunpack.c.l.b16 %v1724
    %v2965 = vunpack.c.h.b16 %v1724
    %v2966 = vunpack.c.l.b16 %v1725
    %v2967 = vunpack.c.h.b16 %v1725
    %v2968 = vunpack.c.l.b16 %v1726
    %v2969 = vunpack.c.h.b16 %v1726
    %v2970 = vunpack.c.l.b16 %v1727
    %v2971 = vunpack.c.h.b16 %v1727
    %v2972 = vunpack.c.l.b16 %v1728
    %v2973 = vunpack.c.h.b16 %v1728
    %v2974 = vunpack.c.l.b16 %v1729
    %v2975 = vunpack.c.h.b16 %v1729
    %v2976 = vunpack.c.l.b16 %v1730
    %v2977 = vunpack.c.h.b16 %v1730
    %v2978 = vunpack.c.l.b16 %v1731
    %v2979 = vunpack.c.h.b16 %v1731
    %v2980 = vunpack.c.l.b16 %v1732
    %v2981 = vunpack.c.h.b16 %v1732
    %v2982 = vunpack.c.l.b16 %v1733
    %v2983 = vunpack.c.h.b16 %v1733
    %v2984 = vunpack.c.l.b16 %v1734
    %v2985 = vunpack.c.h.b16 %v1734
    %v2986 = vunpack.c.l.b16 %v1735
    %v2987 = vunpack.c.h.b16 %v1735
    %v2988 = vunpack.c.l.b16 %v1736
    %v2989 = vunpack.c.h.b16 %v1736
    %v2990 = vunpack.c.l.b16 %v1737
    %v2991 = vunpack.c.h.b16 %v1737
    %v2992 = vunpack.c.l.b16 %v1738
    %v2993 = vunpack.c.h.b16 %v1738
    %v2994 = vunpack.c.l.b16 %v1739
    %v2995 = vunpack.c.h.b16 %v1739
    %v2996 = vunpack.c.l.b16 %v1740
    %v2997 = vunpack.c.h.b16 %v1740
    %v2998 = vunpack.c.l.b16 %v1741
    %v2999 = vunpack.c.h.b16 %v1741
    %v3000 = vunpack.c.l.b16 %v1742
    %v3001 = vunpack.c.h.b16 %v1742
    %v3002 = vunpack.c.l.b16 %v1743
    %v3003 = vunpack.c.h.b16 %v1743
    %v3004 = vunpack.c.l.b16 %v1744
    %v3005 = vunpack.c.h.b16 %v1744
    %v3006 = vunpack.c.l.b16 %v1745
    %v3007 = vunpack.c.h.b16 %v1745
    %v3008 = vunpack.c.l.b16 %v1746
    %v3009 = vunpack.c.h.b16 %v1746
    %v3010 = vunpack.c.l.b16 %v1747
    %v3011 = vunpack.c.h.b16 %v1747
    %v3012 = vunpack.c.l.b16 %v1748
    %v3013 = vunpack.c.h.b16 %v1748
    %v3014 = vunpack.c.l.b16 %v1749
    %v3015 = vunpack.c.h.b16 %v1749
    %v3016 = vunpack.c.l.b16 %v1750
    %v3017 = vunpack.c.h.b16 %v1750
    %v3018 = vunpack.c.l.b16 %v1751
    %v3019 = vunpack.c.h.b16 %v1751
    %v3020 = vunpack.c.l.b16 %v1752
    %v3021 = vunpack.c.h.b16 %v1752
    %v3022 = vunpack.c.l.b16 %v1753
    %v3023 = vunpack.c.h.b16 %v1753
    %v3024 = vunpack.c.l.b16 %v1754
    %v3025 = vunpack.c.h.b16 %v1754
    %v3026 = vunpack.c.l.b16 %v1755
    %v3027 = vunpack.c.h.b16 %v1755
    %v3028 = vunpack.c.l.b16 %v1756
    %v3029 = vunpack.c.h.b16 %v1756
    %v3030 = vunpack.c.l.b16 %v1757
    %v3031 = vunpack.c.h.b16 %v1757
    %v3032 = vunpack.c.l.b16 %v1758
    %v3033 = vunpack.c.h.b16 %v1758
    %v3034 = vunpack.c.l.b16 %v1759
    %v3035 = vunpack.c.h.b16 %v1759
    %v3036 = vunpack.c.l.b16 %v1760
    %v3037 = vunpack.c.h.b16 %v1760
    %v3038 = vunpack.c.l.b16 %v1761
    %v3039 = vunpack.c.h.b16 %v1761
    %v3040 = vunpack.c.l.b16 %v1762
    %v3041 = vunpack.c.h.b16 %v1762
    %v3042 = vunpack.c.l.b16 %v1763
    %v3043 = vunpack.c.h.b16 %v1763
    %v3044 = vunpack.c.l.b16 %v1764
    %v3045 = vunpack.c.h.b16 %v1764
    %v3046 = vunpack.c.l.b16 %v1765
    %v3047 = vunpack.c.h.b16 %v1765
    %v3048 = vunpack.c.l.b16 %v1766
    %v3049 = vunpack.c.h.b16 %v1766
    %v3050 = vunpack.c.l.b16 %v1767
    %v3051 = vunpack.c.h.b16 %v1767
    %v3052 = vunpack.c.l.b16 %v1768
    %v3053 = vunpack.c.h.b16 %v1768
    %v3054 = vunpack.c.l.b16 %v1769
    %v3055 = vunpack.c.h.b16 %v1769
    %v3056 = vunpack.c.l.b16 %v1770
    %v3057 = vunpack.c.h.b16 %v1770
    %v3058 = vunpack.c.l.b16 %v1771
    %v3059 = vunpack.c.h.b16 %v1771
    %v3060 = vunpack.c.l.b16 %v1772
    %v3061 = vunpack.c.h.b16 %v1772
    %v3062 = vunpack.c.l.b16 %v1773
    %v3063 = vunpack.c.h.b16 %v1773
    %v3064 = vunpack.c.l.b16 %v1774
    %v3065 = vunpack.c.h.b16 %v1774
    %v3066 = vunpack.c.l.b16 %v1775
    %v3067 = vunpack.c.h.b16 %v1775
    %v3068 = vunpack.c.l.b16 %v1776
    %v3069 = vunpack.c.h.b16 %v1776
    %v3070 = vunpack.c.l.b16 %v1777
    %v3071 = vunpack.c.h.b16 %v1777
    %v3072 = vunpack.c.l.b16 %v1778
    %v3073 = vunpack.c.h.b16 %v1778
    %v3074 = vunpack.c.l.b16 %v1779
    %v3075 = vunpack.c.h.b16 %v1779
    %v3076 = vunpack.c.l.b16 %v1780
    %v3077 = vunpack.c.h.b16 %v1780
    %v3078 = vunpack.c.l.b16 %v1781
    %v3079 = vunpack.c.h.b16 %v1781
    %v3080 = vunpack.c.l.b16 %v1782
    %v3081 = vunpack.c.h.b16 %v1782
    %v3082 = vunpack.c.l.b16 %v1783
    %v3083 = vunpack.c.h.b16 %v1783
    %v3084 = vunpack.c.l.b16 %v1784
    %v3085 = vunpack.c.h.b16 %v1784
    %v3086 = vunpack.c.l.b16 %v1785
    %v3087 = vunpack.c.h.b16 %v1785
    %v3088 = vunpack.c.l.b16 %v1786
    %v3089 = vunpack.c.h.b16 %v1786
    %v3090 = vunpack.c.l.b16 %v1787
    %v3091 = vunpack.c.h.b16 %v1787
    %v3092 = vunpack.c.l.b16 %v1788
    %v3093 = vunpack.c.h.b16 %v1788
    %v3094 = vunpack.c.l.b16 %v1789
    %v3095 = vunpack.c.h.b16 %v1789
    %v3096 = vunpack.c.l.b16 %v1790
    %v3097 = vunpack.c.h.b16 %v1790
    %v3098 = vunpack.c.l.b16 %v1791
    %v3099 = vunpack.c.h.b16 %v1791
    %v3100 = vunpack.c.l.b16 %v1792
    %v3101 = vunpack.c.h.b16 %v1792
    %v3102 = vunpack.c.l.b16 %v1793
    %v3103 = vunpack.c.h.b16 %v1793
    %v3104 = vunpack.c.l.b16 %v1794
    %v3105 = vunpack.c.h.b16 %v1794
    %v3106 = vunpack.c.l.b16 %v1795
    %v3107 = vunpack.c.h.b16 %v1795
    %v3108 = vunpack.c.l.b16 %v1796
    %v3109 = vunpack.c.h.b16 %v1796
    %v3110 = vunpack.c.l.b16 %v1797
    %v3111 = vunpack.c.h.b16 %v1797
    %v3112 = vunpack.c.l.b16 %v1798
    %v3113 = vunpack.c.h.b16 %v1798
    %v3114 = vunpack.c.l.b16 %v1799
    %v3115 = vunpack.c.h.b16 %v1799
    %v3116 = vunpack.c.l.b16 %v1800
    %v3117 = vunpack.c.h.b16 %v1800
    %v3118 = vunpack.c.l.b16 %v1801
    %v3119 = vunpack.c.h.b16 %v1801
    %v3120 = vunpack.c.l.b16 %v1802
    %v3121 = vunpack.c.h.b16 %v1802
    %v3122 = vunpack.c.l.b16 %v1803
    %v3123 = vunpack.c.h.b16 %v1803
    %v3124 = vunpack.c.l.b16 %v1804
    %v3125 = vunpack.c.h.b16 %v1804
    %v3126 = vunpack.c.l.b16 %v1805
    %v3127 = vunpack.c.h.b16 %v1805
    %v3128 = vunpack.c.l.b16 %v1806
    %v3129 = vunpack.c.h.b16 %v1806
    %v3130 = vunpack.c.l.b16 %v1807
    %v3131 = vunpack.c.h.b16 %v1807
    %v3132 = vunpack.c.l.b16 %v1808
    %v3133 = vunpack.c.h.b16 %v1808
    %v3134 = vunpack.c.l.b16 %v1809
    %v3135 = vunpack.c.h.b16 %v1809
    %v3136 = vunpack.c.l.b16 %v1810
    %v3137 = vunpack.c.h.b16 %v1810
    %v3138 = vunpack.c.l.b16 %v1811
    %v3139 = vunpack.c.h.b16 %v1811
    %v3140 = vunpack.c.l.b16 %v1812
    %v3141 = vunpack.c.h.b16 %v1812
    %v3142 = vunpack.c.l.b16 %v1813
    %v3143 = vunpack.c.h.b16 %v1813
    %v3144 = vunpack.c.l.b16 %v1814
    %v3145 = vunpack.c.h.b16 %v1814
    %v3146 = vunpack.c.l.b16 %v1815
    %v3147 = vunpack.c.h.b16 %v1815
    %v3148 = vunpack.c.l.b16 %v1816
    %v3149 = vunpack.c.h.b16 %v1816
    %v3150 = vunpack.c.l.b16 %v1817
    %v3151 = vunpack.c.h.b16 %v1817
    %v3152 = vunpack.c.l.b16 %v1818
    %v3153 = vunpack.c.h.b16 %v1818
    %v3154 = vunpack.c.l.b16 %v1819
    %v3155 = vunpack.c.h.b16 %v1819
    %v3156 = vunpack.c.l.b16 %v1820
    %v3157 = vunpack.c.h.b16 %v1820
    %v3158 = vunpack.c.l.b16 %v1821
    %v3159 = vunpack.c.h.b16 %v1821
    %v3160 = vunpack.c.l.b16 %v1822
    %v3161 = vunpack.c.h.b16 %v1822
    %v3162 = vunpack.c.l.b16 %v1823
    %v3163 = vunpack.c.h.b16 %v1823
    %v3164 = vunpack.c.l.b16 %v1824
    %v3165 = vunpack.c.h.b16 %v1824
    %v3166 = vunpack.c.l.b16 %v1825
    %v3167 = vunpack.c.h.b16 %v1825
    %v3168 = vunpack.c.l.b16 %v1826
    %v3169 = vunpack.c.h.b16 %v1826
    %v3170 = vunpack.c.l.b16 %v1827
    %v3171 = vunpack.c.h.b16 %v1827
    %v3172 = vunpack.c.l.b16 %v1828
    %v3173 = vunpack.c.h.b16 %v1828
    %v3174 = vunpack.c.l.b16 %v1829
    %v3175 = vunpack.c.h.b16 %v1829
    %v3176 = vunpack.c.l.b16 %v1830
    %v3177 = vunpack.c.h.b16 %v1830
    %v3178 = vunpack.c.l.b16 %v1831
    %v3179 = vunpack.c.h.b16 %v1831
    %v3180 = vunpack.c.l.b16 %v1832
    %v3181 = vunpack.c.h.b16 %v1832
    %v3182 = vunpack.c.l.b16 %v1833
    %v3183 = vunpack.c.h.b16 %v1833
    %v3184 = vunpack.c.l.b16 %v1834
    %v3185 = vunpack.c.h.b16 %v1834
    %v3186 = vunpack.c.l.b16 %v1835
    %v3187 = vunpack.c.h.b16 %v1835
    %v3188 = vunpack.c.l.b16 %v1836
    %v3189 = vunpack.c.h.b16 %v1836
    %v3190 = vunpack.c.l.b16 %v1837
    %v3191 = vunpack.c.h.b16 %v1837
    %v3192 = vunpack.c.l.b16 %v1838
    %v3193 = vunpack.c.h.b16 %v1838
    %v3194 = vunpack.c.l.b16 %v1839
    %v3195 = vunpack.c.h.b16 %v1839
    %v3196 = vunpack.c.l.b16 %v1840
    %v3197 = vunpack.c.h.b16 %v1840
    %v3198 = vunpack.c.l.b16 %v1841
    %v3199 = vunpack.c.h.b16 %v1841
    %v3200 = vunpack.c.l.b16 %v1842
    %v3201 = vunpack.c.h.b16 %v1842
    %v3202 = vunpack.c.l.b16 %v1843
    %v3203 = vunpack.c.h.b16 %v1843
    %v3204 = vunpack.c.l.b16 %v1844
    %v3205 = vunpack.c.h.b16 %v1844
    %v3206 = vunpack.c.l.b16 %v1845
    %v3207 = vunpack.c.h.b16 %v1845
    %v3208 = vunpack.c.l.b16 %v1846
    %v3209 = vunpack.c.h.b16 %v1846
    %v3210 = vunpack.c.l.b16 %v1847
    %v3211 = vunpack.c.h.b16 %v1847
    %v3212 = vunpack.c.l.b16 %v1848
    %v3213 = vunpack.c.h.b16 %v1848
    %v3214 = vunpack.c.l.b16 %v1849
    %v3215 = vunpack.c.h.b16 %v1849
    %v3216 = vunpack.c.l.b16 %v1850
    %v3217 = vunpack.c.h.b16 %v1850
    %v3218 = vunpack.c.l.b16 %v1851
    %v3219 = vunpack.c.h.b16 %v1851
    %v3220 = vunpack.c.l.b16 %v1852
    %v3221 = vunpack.c.h.b16 %v1852
    %v3222 = vunpack.c.l.b16 %v1853
    %v3223 = vunpack.c.h.b16 %v1853
    %v3224 = vunpack.c.l.b16 %v1854
    %v3225 = vunpack.c.h.b16 %v1854
    %v3226 = vunpack.c.l.b16 %v1855
    %v3227 = vunpack.c.h.b16 %v1855
    %v3228 = vunpack.c.l.b16 %v1856
    %v3229 = vunpack.c.h.b16 %v1856
    %v3230 = vunpack.c.l.b16 %v1857
    %v3231 = vunpack.c.h.b16 %v1857
    %v3232 = vunpack.c.l.b16 %v1858
    %v3233 = vunpack.c.h.b16 %v1858
    %v3234 = vunpack.c.l.b16 %v1859
    %v3235 = vunpack.c.h.b16 %v1859
    %v3236 = vunpack.c.l.b16 %v1860
    %v3237 = vunpack.c.h.b16 %v1860
    %v3238 = vunpack.c.l.b16 %v1861
    %v3239 = vunpack.c.h.b16 %v1861
    %v3240 = vunpack.c.l.b16 %v1862
    %v3241 = vunpack.c.h.b16 %v1862
    %v3242 = vunpack.c.l.b16 %v1863
    %v3243 = vunpack.c.h.b16 %v1863
    %v3244 = vunpack.c.l.b16 %v1864
    %v3245 = vunpack.c.h.b16 %v1864
    %v3246 = vunpack.c.l.b16 %v1865
    %v3247 = vunpack.c.h.b16 %v1865
    %v3248 = vunpack.c.l.b16 %v1866
    %v3249 = vunpack.c.h.b16 %v1866
    %v3250 = vunpack.c.l.b16 %v1867
    %v3251 = vunpack.c.h.b16 %v1867
    %v3252 = vunpack.c.l.b16 %v1868
    %v3253 = vunpack.c.h.b16 %v1868
    %v3254 = vunpack.c.l.b16 %v1869
    %v3255 = vunpack.c.h.b16 %v1869
    %v3256 = vunpack.c.l.b16 %v1870
    %v3257 = vunpack.c.h.b16 %v1870
    %v3258 = vunpack.c.l.b16 %v1871
    %v3259 = vunpack.c.h.b16 %v1871
    %v3260 = vunpack.c.l.b16 %v1872
    %v3261 = vunpack.c.h.b16 %v1872
    %v3262 = vunpack.c.l.b16 %v1873
    %v3263 = vunpack.c.h.b16 %v1873
    %v3264 = vunpack.c.l.b16 %v1874
    %v3265 = vunpack.c.h.b16 %v1874
    %v3266 = vunpack.c.l.b16 %v1875
    %v3267 = vunpack.c.h.b16 %v1875
    %v3268 = vunpack.c.l.b16 %v1876
    %v3269 = vunpack.c.h.b16 %v1876
    %v3270 = vunpack.c.l.b16 %v1877
    %v3271 = vunpack.c.h.b16 %v1877
    %v3272 = vunpack.c.l.b16 %v1878
    %v3273 = vunpack.c.h.b16 %v1878
    %v3274 = vunpack.c.l.b16 %v1879
    %v3275 = vunpack.c.h.b16 %v1879
    %v3276 = vunpack.c.l.b16 %v1880
    %v3277 = vunpack.c.h.b16 %v1880
    %v3278 = vunpack.c.l.b16 %v1881
    %v3279 = vunpack.c.h.b16 %v1881
    %v3280 = vunpack.c.l.b16 %v1882
    %v3281 = vunpack.c.h.b16 %v1882
    %v3282 = vunpack.c.l.b16 %v1883
    %v3283 = vunpack.c.h.b16 %v1883
    %v3284 = vunpack.c.l.b16 %v1884
    %v3285 = vunpack.c.h.b16 %v1884
    %v3286 = vunpack.c.l.b16 %v1885
    %v3287 = vunpack.c.h.b16 %v1885
    %v3288 = vunpack.c.l.b16 %v1886
    %v3289 = vunpack.c.h.b16 %v1886
    %v3290 = vunpack.c.l.b16 %v1887
    %v3291 = vunpack.c.h.b16 %v1887
    %v3292 = vunpack.c.l.b16 %v1888
    %v3293 = vunpack.c.h.b16 %v1888
    %v3294 = vunpack.c.l.b16 %v1889
    %v3295 = vunpack.c.h.b16 %v1889
    %v3296 = vunpack.c.l.b16 %v1890
    %v3297 = vunpack.c.h.b16 %v1890
    %v3298 = vunpack.c.l.b16 %v1891
    %v3299 = vunpack.c.h.b16 %v1891
    %v3300 = vunpack.c.l.b16 %v1892
    %v3301 = vunpack.c.h.b16 %v1892
    %v3302 = vunpack.c.l.b16 %v1893
    %v3303 = vunpack.c.h.b16 %v1893
    %v3304 = vunpack.c.l.b16 %v1894
    %v3305 = vunpack.c.h.b16 %v1894
    %v3306 = vunpack.c.l.b16 %v1895
    %v3307 = vunpack.c.h.b16 %v1895
    %v3308 = vunpack.c.l.b16 %v1896
    %v3309 = vunpack.c.h.b16 %v1896
    %v3310 = vunpack.c.l.b16 %v1897
    %v3311 = vunpack.c.h.b16 %v1897
    %v3312 = vunpack.c.l.b16 %v1898
    %v3313 = vunpack.c.h.b16 %v1898
    %v3314 = vunpack.c.l.b16 %v1899
    %v3315 = vunpack.c.h.b16 %v1899
    %v3316 = vunpack.c.l.b16 %v1900
    %v3317 = vunpack.c.h.b16 %v1900
    %v3318 = vunpack.c.l.b16 %v1901
    %v3319 = vunpack.c.h.b16 %v1901
    %v3320 = vunpack.c.l.b16 %v1902
    %v3321 = vunpack.c.h.b16 %v1902
    %v3322 = vunpack.c.l.b16 %v1903
    %v3323 = vunpack.c.h.b16 %v1903
    %v3324 = vunpack.c.l.b16 %v1904
    %v3325 = vunpack.c.h.b16 %v1904
    %v3326 = vunpack.c.l.b16 %v1905
    %v3327 = vunpack.c.h.b16 %v1905
    %v3328 = vunpack.c.l.b16 %v1906
    %v3329 = vunpack.c.h.b16 %v1906
    %v3330 = vunpack.c.l.b16 %v1907
    %v3331 = vunpack.c.h.b16 %v1907
    %v3332 = vunpack.c.l.b16 %v1908
    %v3333 = vunpack.c.h.b16 %v1908
    %v3334 = vunpack.c.l.b16 %v1909
    %v3335 = vunpack.c.h.b16 %v1909
    %v3336 = vunpack.c.l.b16 %v1910
    %v3337 = vunpack.c.h.b16 %v1910
    %v3338 = vunpack.c.l.b16 %v1911
    %v3339 = vunpack.c.h.b16 %v1911
    %v3340 = vunpack.c.l.b16 %v1912
    %v3341 = vunpack.c.h.b16 %v1912
    %v3342 = vunpack.c.l.b16 %v1913
    %v3343 = vunpack.c.h.b16 %v1913
    %v3344 = vunpack.c.l.b16 %v1914
    %v3345 = vunpack.c.h.b16 %v1914
    %v3346 = vunpack.c.l.b16 %v1915
    %v3347 = vunpack.c.h.b16 %v1915
    %v3348 = vunpack.c.l.b16 %v1916
    %v3349 = vunpack.c.h.b16 %v1916
    %v3350 = vunpack.c.l.b16 %v1917
    %v3351 = vunpack.c.h.b16 %v1917
    %v3352 = vunpack.c.l.b16 %v1918
    %v3353 = vunpack.c.h.b16 %v1918
    %v3354 = vunpack.c.l.b16 %v1919
    %v3355 = vunpack.c.h.b16 %v1919
    %v3356 = vunpack.c.l.b16 %v1920
    %v3357 = vunpack.c.h.b16 %v1920
    %v3358 = vunpack.c.l.b16 %v1921
    %v3359 = vunpack.c.h.b16 %v1921
    %v3360 = vunpack.c.l.b16 %v1922
    %v3361 = vunpack.c.h.b16 %v1922
    %v3362 = vunpack.c.l.b16 %v1923
    %v3363 = vunpack.c.h.b16 %v1923
    %v3364 = vunpack.c.l.b16 %v1924
    %v3365 = vunpack.c.h.b16 %v1924
    %v3366 = vunpack.c.l.b16 %v1925
    %v3367 = vunpack.c.h.b16 %v1925
    %v3368 = vunpack.c.l.b16 %v1926
    %v3369 = vunpack.c.h.b16 %v1926
    %v3370 = vunpack.c.l.b16 %v1927
    %v3371 = vunpack.c.h.b16 %v1927
    %v3372 = vunpack.c.l.b16 %v1928
    %v3373 = vunpack.c.h.b16 %v1928
    %v3374 = vunpack.c.l.b16 %v1929
    %v3375 = vunpack.c.h.b16 %v1929
    %v3376 = vunpack.c.l.b16 %v1930
    %v3377 = vunpack.c.h.b16 %v1930
    %v3378 = vunpack.c.l.b16 %v1931
    %v3379 = vunpack.c.h.b16 %v1931
    %v3380 = vunpack.c.l.b16 %v1932
    %v3381 = vunpack.c.h.b16 %v1932
    %v3382 = vunpack.c.l.b16 %v1933
    %v3383 = vunpack.c.h.b16 %v1933
    %v3384 = vunpack.c.l.b16 %v1934
    %v3385 = vunpack.c.h.b16 %v1934
    %v3386 = vunpack.c.l.b16 %v1935
    %v3387 = vunpack.c.h.b16 %v1935
    %v3388 = vunpack.c.l.b16 %v1936
    %v3389 = vunpack.c.h.b16 %v1936
    %v3390 = vunpack.c.l.b16 %v1937
    %v3391 = vunpack.c.h.b16 %v1937
    %v3392 = vunpack.c.l.b16 %v1938
    %v3393 = vunpack.c.h.b16 %v1938
    %v3394 = vunpack.c.l.b16 %v1939
    %v3395 = vunpack.c.h.b16 %v1939
    %v3396 = vunpack.c.l.b16 %v1940
    %v3397 = vunpack.c.h.b16 %v1940
    %v3398 = vunpack.c.l.b16 %v1941
    %v3399 = vunpack.c.h.b16 %v1941
    %v3400 = vunpack.c.l.b16 %v1942
    %v3401 = vunpack.c.h.b16 %v1942
    %v3402 = vunpack.c.l.b16 %v1943
    %v3403 = vunpack.c.h.b16 %v1943
    %v3404 = vunpack.c.l.b16 %v1944
    %v3405 = vunpack.c.h.b16 %v1944
    %v3406 = vunpack.c.l.b16 %v1945
    %v3407 = vunpack.c.h.b16 %v1945
    %v3408 = vunpack.c.l.b16 %v1946
    %v3409 = vunpack.c.h.b16 %v1946
    %v3410 = vunpack.c.l.b16 %v1947
    %v3411 = vunpack.c.h.b16 %v1947
    %v3412 = vunpack.c.l.b16 %v1948
    %v3413 = vunpack.c.h.b16 %v1948
    %v3414 = vunpack.c.l.b16 %v1949
    %v3415 = vunpack.c.h.b16 %v1949
    %v3416 = vunpack.c.l.b16 %v1950
    %v3417 = vunpack.c.h.b16 %v1950
    %v3418 = vunpack.c.l.b16 %v1951
    %v3419 = vunpack.c.h.b16 %v1951
    %v3420 = vunpack.c.l.b16 %v1952
    %v3421 = vunpack.c.h.b16 %v1952
    %v3422 = vunpack.c.l.b16 %v1953
    %v3423 = vunpack.c.h.b16 %v1953
    %v3424 = vunpack.c.l.b16 %v1954
    %v3425 = vunpack.c.h.b16 %v1954
    %v3426 = vunpack.c.l.b16 %v1955
    %v3427 = vunpack.c.h.b16 %v1955
    %v3428 = vunpack.c.l.b16 %v1956
    %v3429 = vunpack.c.h.b16 %v1956
    %v3430 = vunpack.c.l.b16 %v1957
    %v3431 = vunpack.c.h.b16 %v1957
    %v3432 = vunpack.c.l.b16 %v1958
    %v3433 = vunpack.c.h.b16 %v1958
    %v3434 = vunpack.c.l.b16 %v1959
    %v3435 = vunpack.c.h.b16 %v1959
    %v3436 = vunpack.c.l.b16 %v1960
    %v3437 = vunpack.c.h.b16 %v1960
    %v3438 = vunpack.c.l.b16 %v1961
    %v3439 = vunpack.c.h.b16 %v1961
    %v3440 = vunpack.c.l.b16 %v1962
    %v3441 = vunpack.c.h.b16 %v1962
    %v3442 = vunpack.c.l.b16 %v1963
    %v3443 = vunpack.c.h.b16 %v1963
    %v3444 = vunpack.c.l.b16 %v1964
    %v3445 = vunpack.c.h.b16 %v1964
    %v3446 = vunpack.c.l.b16 %v1965
    %v3447 = vunpack.c.h.b16 %v1965
    %v3448 = vunpack.c.l.b16 %v1966
    %v3449 = vunpack.c.h.b16 %v1966
    %v3450 = vunpack.c.l.b16 %v1967
    %v3451 = vunpack.c.h.b16 %v1967
    %v3452 = vunpack.c.l.b16 %v1968
    %v3453 = vunpack.c.h.b16 %v1968
    %v3454 = vunpack.c.l.b16 %v1969
    %v3455 = vunpack.c.h.b16 %v1969
    %v3456 = vunpack.c.l.b16 %v1970
    %v3457 = vunpack.c.h.b16 %v1970
    %v3458 = vunpack.c.l.b16 %v1971
    %v3459 = vunpack.c.h.b16 %v1971
    %v3460 = vunpack.c.l.b16 %v1972
    %v3461 = vunpack.c.h.b16 %v1972
    %v3462 = vunpack.c.l.b16 %v1973
    %v3463 = vunpack.c.h.b16 %v1973
    %v3464 = vunpack.c.l.b16 %v1974
    %v3465 = vunpack.c.h.b16 %v1974
    %v3466 = vunpack.c.l.b16 %v1975
    %v3467 = vunpack.c.h.b16 %v1975
    %v3468 = vunpack.c.l.b16 %v1976
    %v3469 = vunpack.c.h.b16 %v1976
    %v3470 = vunpack.c.l.b16 %v1977
    %v3471 = vunpack.c.h.b16 %v1977
    %v3472 = vunpack.c.l.b16 %v1978
    %v3473 = vunpack.c.h.b16 %v1978
    %v3474 = vunpack.c.l.b16 %v1979
    %v3475 = vunpack.c.h.b16 %v1979
    %v3476 = vunpack.c.l.b16 %v1980
    %v3477 = vunpack.c.h.b16 %v1980
    %v3478 = vunpack.c.l.b16 %v1981
    %v3479 = vunpack.c.h.b16 %v1981
    %v3480 = vunpack.c.l.b16 %v1982
    %v3481 = vunpack.c.h.b16 %v1982
    %v3482 = vunpack.c.l.b16 %v1983
    %v3483 = vunpack.c.h.b16 %v1983
    %v3484 = vunpack.c.l.b16 %v1984
    %v3485 = vunpack.c.h.b16 %v1984
    %v3486 = vunpack.c.l.b16 %v1985
    %v3487 = vunpack.c.h.b16 %v1985
    %v3488 = vunpack.c.l.b16 %v1986
    %v3489 = vunpack.c.h.b16 %v1986
    %v3490 = vunpack.c.l.b16 %v1987
    %v3491 = vunpack.c.h.b16 %v1987
    %v3492 = vunpack.c.l.b16 %v1988
    %v3493 = vunpack.c.h.b16 %v1988
    %v3494 = vunpack.c.l.b16 %v1989
    %v3495 = vunpack.c.h.b16 %v1989
    %v3496 = vunpack.c.l.b16 %v1990
    %v3497 = vunpack.c.h.b16 %v1990
    %v3498 = vunpack.c.l.b16 %v1991
    %v3499 = vunpack.c.h.b16 %v1991
    %v3500 = vunpack.c.l.b16 %v1992
    %v3501 = vunpack.c.h.b16 %v1992
    %v3502 = vunpack.c.l.b16 %v1993
    %v3503 = vunpack.c.h.b16 %v1993
    %v3504 = vunpack.c.l.b16 %v1994
    %v3505 = vunpack.c.h.b16 %v1994
    %v3506 = vunpack.c.l.b16 %v1995
    %v3507 = vunpack.c.h.b16 %v1995
    %v3508 = vunpack.c.l.b16 %v1996
    %v3509 = vunpack.c.h.b16 %v1996
    %v3510 = vunpack.c.l.b16 %v1997
    %v3511 = vunpack.c.h.b16 %v1997
    %v3512 = vunpack.c.l.b16 %v1998
    %v3513 = vunpack.c.h.b16 %v1998
    %v3514 = vunpack.c.l.b16 %v1999
    %v3515 = vunpack.c.h.b16 %v1999
    %v3516 = vunpack.c.l.b16 %v2000
    %v3517 = vunpack.c.h.b16 %v2000
    %v3518 = vunpack.c.l.b16 %v2001
    %v3519 = vunpack.c.h.b16 %v2001
    %v3520 = vunpack.c.l.b16 %v2002
    %v3521 = vunpack.c.h.b16 %v2002
    %v3522 = vunpack.c.l.b16 %v2003
    %v3523 = vunpack.c.h.b16 %v2003
    %v3524 = vunpack.c.l.b16 %v2004
    %v3525 = vunpack.c.h.b16 %v2004
    %v3526 = vunpack.c.l.b16 %v2005
    %v3527 = vunpack.c.h.b16 %v2005
    %v3528 = vunpack.c.l.b16 %v2006
    %v3529 = vunpack.c.h.b16 %v2006
    %v3530 = vunpack.c.l.b16 %v2007
    %v3531 = vunpack.c.h.b16 %v2007
    %v3532 = vunpack.c.l.b16 %v2008
    %v3533 = vunpack.c.h.b16 %v2008
    %v3534 = vunpack.c.l.b16 %v2009
    %v3535 = vunpack.c.h.b16 %v2009
    %v3536 = vunpack.c.l.b16 %v2010
    %v3537 = vunpack.c.h.b16 %v2010
    %v3538 = vunpack.c.l.b16 %v2011
    %v3539 = vunpack.c.h.b16 %v2011
    %v3540 = vunpack.c.l.b16 %v2012
    %v3541 = vunpack.c.h.b16 %v2012
    %v3542 = vunpack.c.l.b16 %v2013
    %v3543 = vunpack.c.h.b16 %v2013
    %v3544 = vunpack.c.l.b16 %v2014
    %v3545 = vunpack.c.h.b16 %v2014
    %v3546 = vunpack.c.l.b16 %v2015
    %v3547 = vunpack.c.h.b16 %v2015
    %v3548 = vunpack.c.l.b16 %v2016
    %v3549 = vunpack.c.h.b16 %v2016
    %v3550 = vunpack.c.l.b16 %v2017
    %v3551 = vunpack.c.h.b16 %v2017
    %v3552 = vunpack.c.l.b16 %v2018
    %v3553 = vunpack.c.h.b16 %v2018
    %v3554 = vunpack.c.l.b16 %v2019
    %v3555 = vunpack.c.h.b16 %v2019
    %v3556 = vpack.c.b16 %v2540, %v2532
    %v3557 = vpack.c.b16 %v2541, %v2533
    %v3558 = vpack.c.b16 %v2542, %v2534
    %v3559 = vpack.c.b16 %v2543, %v2535
    %v3560 = vpack.c.b16 %v2544, %v2536
    %v3561 = vpack.c.b16 %v2545, %v2537
    %v3562 = vpack.c.b16 %v2546, %v2538
    %v3563 = vpack.c.b16 %v2547, %v2539
    %v3564 = vpack.c.b16 %v2556, %v2548
    %v3565 = vpack.c.b16 %v2557, %v2549
    %v3566 = vpack.c.b16 %v2558, %v2550
    %v3567 = vpack.c.b16 %v2559, %v2551
    %v3568 = vpack.c.b16 %v2560, %v2552
    %v3569 = vpack.c.b16 %v2561, %v2553
    %v3570 = vpack.c.b16 %v2562, %v2554
    %v3571 = vpack.c.b16 %v2563, %v2555
    %v3572 = vpack.c.b16 %v2572, %v2564
    %v3573 = vpack.c.b16 %v2573, %v2565
    %v3574 = vpack.c.b16 %v2574, %v2566
    %v3575 = vpack.c.b16 %v2575, %v2567
    %v3576 = vpack.c.b16 %v2576, %v2568
    %v3577 = vpack.c.b16 %v2577, %v2569
    %v3578 = vpack.c.b16 %v2578, %v2570
    %v3579 = vpack.c.b16 %v2579, %v2571
    %v3580 = vpack.c.b16 %v2588, %v2580
    %v3581 = vpack.c.b16 %v2589, %v2581
    %v3582 = vpack.c.b16 %v2590, %v2582
    %v3583 = vpack.c.b16 %v2591, %v2583
    %v3584 = vpack.c.b16 %v2592, %v2584
    %v3585 = vpack.c.b16 %v2593, %v2585
    %v3586 = vpack.c.b16 %v2594, %v2586
    %v3587 = vpack.c.b16 %v2595, %v2587
    %v3588 = vpack.c.b16 %v2604, %v2596
    %v3589 = vpack.c.b16 %v2605, %v2597
    %v3590 = vpack.c.b16 %v2606, %v2598
    %v3591 = vpack.c.b16 %v2607, %v2599
    %v3592 = vpack.c.b16 %v2608, %v2600
    %v3593 = vpack.c.b16 %v2609, %v2601
    %v3594 = vpack.c.b16 %v2610, %v2602
    %v3595 = vpack.c.b16 %v2611, %v2603
    %v3596 = vpack.c.b16 %v2620, %v2612
    %v3597 = vpack.c.b16 %v2621, %v2613
    %v3598 = vpack.c.b16 %v2622, %v2614
    %v3599 = vpack.c.b16 %v2623, %v2615
    %v3600 = vpack.c.b16 %v2624, %v2616
    %v3601 = vpack.c.b16 %v2625, %v2617
    %v3602 = vpack.c.b16 %v2626, %v2618
    %v3603 = vpack.c.b16 %v2627, %v2619
    %v3604 = vpack.c.b16 %v2636, %v2628
    %v3605 = vpack.c.b16 %v2637, %v2629
    %v3606 = vpack.c.b16 %v2638, %v2630
    %v3607 = vpack.c.b16 %v2639, %v2631
    %v3608 = vpack.c.b16 %v2640, %v2632
    %v3609 = vpack.c.b16 %v2641, %v2633
    %v3610 = vpack.c.b16 %v2642, %v2634
    %v3611 = vpack.c.b16 %v2643, %v2635
    %v3612 = vpack.c.b16 %v2652, %v2644
    %v3613 = vpack.c.b16 %v2653, %v2645
    %v3614 = vpack.c.b16 %v2654, %v2646
    %v3615 = vpack.c.b16 %v2655, %v2647
    %v3616 = vpack.c.b16 %v2656, %v2648
    %v3617 = vpack.c.b16 %v2657, %v2649
    %v3618 = vpack.c.b16 %v2658, %v2650
    %v3619 = vpack.c.b16 %v2659, %v2651
    %v3620 = vpack.c.b16 %v2668, %v2660
    %v3621 = vpack.c.b16 %v2669, %v2661
    %v3622 = vpack.c.b16 %v2670, %v2662
    %v3623 = vpack.c.b16 %v2671, %v2663
    %v3624 = vpack.c.b16 %v2672, %v2664
    %v3625 = vpack.c.b16 %v2673, %v2665
    %v3626 = vpack.c.b16 %v2674, %v2666
    %v3627 = vpack.c.b16 %v2675, %v2667
    %v3628 = vpack.c.b16 %v2684, %v2676
    %v3629 = vpack.c.b16 %v2685, %v2677
    %v3630 = vpack.c.b16 %v2686, %v2678
    %v3631 = vpack.c.b16 %v2687, %v2679
    %v3632 = vpack.c.b16 %v2688, %v2680
    %v3633 = vpack.c.b16 %v2689, %v2681
    %v3634 = vpack.c.b16 %v2690, %v2682
    %v3635 = vpack.c.b16 %v2691, %v2683
    %v3636 = vpack.c.b16 %v2700, %v2692
    %v3637 = vpack.c.b16 %v2701, %v2693
    %v3638 = vpack.c.b16 %v2702, %v2694
    %v3639 = vpack.c.b16 %v2703, %v2695
    %v3640 = vpack.c.b16 %v2704, %v2696
    %v3641 = vpack.c.b16 %v2705, %v2697
    %v3642 = vpack.c.b16 %v2706, %v2698
    %v3643 = vpack.c.b16 %v2707, %v2699
    %v3644 = vpack.c.b16 %v2716, %v2708
    %v3645 = vpack.c.b16 %v2717, %v2709
    %v3646 = vpack.c.b16 %v2718, %v2710
    %v3647 = vpack.c.b16 %v2719, %v2711
    %v3648 = vpack.c.b16 %v2720, %v2712
    %v3649 = vpack.c.b16 %v2721, %v2713
    %v3650 = vpack.c.b16 %v2722, %v2714
    %v3651 = vpack.c.b16 %v2723, %v2715
    %v3652 = vpack.c.b16 %v2732, %v2724
    %v3653 = vpack.c.b16 %v2733, %v2725
    %v3654 = vpack.c.b16 %v2734, %v2726
    %v3655 = vpack.c.b16 %v2735, %v2727
    %v3656 = vpack.c.b16 %v2736, %v2728
    %v3657 = vpack.c.b16 %v2737, %v2729
    %v3658 = vpack.c.b16 %v2738, %v2730
    %v3659 = vpack.c.b16 %v2739, %v2731
    %v3660 = vpack.c.b16 %v2748, %v2740
    %v3661 = vpack.c.b16 %v2749, %v2741
    %v3662 = vpack.c.b16 %v2750, %v2742
    %v3663 = vpack.c.b16 %v2751, %v2743
    %v3664 = vpack.c.b16 %v2752, %v2744
    %v3665 = vpack.c.b16 %v2753, %v2745
    %v3666 = vpack.c.b16 %v2754, %v2746
    %v3667 = vpack.c.b16 %v2755, %v2747
    %v3668 = vpack.c.b16 %v2764, %v2756
    %v3669 = vpack.c.b16 %v2765, %v2757
    %v3670 = vpack.c.b16 %v2766, %v2758
    %v3671 = vpack.c.b16 %v2767, %v2759
    %v3672 = vpack.c.b16 %v2768, %v2760
    %v3673 = vpack.c.b16 %v2769, %v2761
    %v3674 = vpack.c.b16 %v2770, %v2762
    %v3675 = vpack.c.b16 %v2771, %v2763
    %v3676 = vpack.c.b16 %v2780, %v2772
    %v3677 = vpack.c.b16 %v2781, %v2773
    %v3678 = vpack.c.b16 %v2782, %v2774
    %v3679 = vpack.c.b16 %v2783, %v2775
    %v3680 = vpack.c.b16 %v2784, %v2776
    %v3681 = vpack.c.b16 %v2785, %v2777
    %v3682 = vpack.c.b16 %v2786, %v2778
    %v3683 = vpack.c.b16 %v2787, %v2779
    %v3684 = vpack.c.b16 %v2796, %v2788
    %v3685 = vpack.c.b16 %v2797, %v2789
    %v3686 = vpack.c.b16 %v2798, %v2790
    %v3687 = vpack.c.b16 %v2799, %v2791
    %v3688 = vpack.c.b16 %v2800, %v2792
    %v3689 = vpack.c.b16 %v2801, %v2793
    %v3690 = vpack.c.b16 %v2802, %v2794
    %v3691 = vpack.c.b16 %v2803, %v2795
    %v3692 = vpack.c.b16 %v2812, %v2804
    %v3693 = vpack.c.b16 %v2813, %v2805
    %v3694 = vpack.c.b16 %v2814, %v2806
    %v3695 = vpack.c.b16 %v2815, %v2807
    %v3696 = vpack.c.b16 %v2816, %v2808
    %v3697 = vpack.c.b16 %v2817, %v2809
    %v3698 = vpack.c.b16 %v2818, %v2810
    %v3699 = vpack.c.b16 %v2819, %v2811
    %v3700 = vpack.c.b16 %v2828, %v2820
    %v3701 = vpack.c.b16 %v2829, %v2821
    %v3702 = vpack.c.b16 %v2830, %v2822
    %v3703 = vpack.c.b16 %v2831, %v2823
    %v3704 = vpack.c.b16 %v2832, %v2824
    %v3705 = vpack.c.b16 %v2833, %v2825
    %v3706 = vpack.c.b16 %v2834, %v2826
    %v3707 = vpack.c.b16 %v2835, %v2827
    %v3708 = vpack.c.b16 %v2844, %v2836
    %v3709 = vpack.c.b16 %v2845, %v2837
    %v3710 = vpack.c.b16 %v2846, %v2838
    %v3711 = vpack.c.b16 %v2847, %v2839
    %v3712 = vpack.c.b16 %v2848, %v2840
    %v3713 = vpack.c.b16 %v2849, %v2841
    %v3714 = vpack.c.b16 %v2850, %v2842
    %v3715 = vpack.c.b16 %v2851, %v2843
    %v3716 = vpack.c.b16 %v2860, %v2852
    %v3717 = vpack.c.b16 %v2861, %v2853
    %v3718 = vpack.c.b16 %v2862, %v2854
    %v3719 = vpack.c.b16 %v2863, %v2855
    %v3720 = vpack.c.b16 %v2864, %v2856
    %v3721 = vpack.c.b16 %v2865, %v2857
    %v3722 = vpack.c.b16 %v2866, %v2858
    %v3723 = vpack.c.b16 %v2867, %v2859
    %v3724 = vpack.c.b16 %v2876, %v2868
    %v3725 = vpack.c.b16 %v2877, %v2869
    %v3726 = vpack.c.b16 %v2878, %v2870
    %v3727 = vpack.c.b16 %v2879, %v2871
    %v3728 = vpack.c.b16 %v2880, %v2872
    %v3729 = vpack.c.b16 %v2881, %v2873
    %v3730 = vpack.c.b16 %v2882, %v2874
    %v3731 = vpack.c.b16 %v2883, %v2875
    %v3732 = vpack.c.b16 %v2892, %v2884
    %v3733 = vpack.c.b16 %v2893, %v2885
    %v3734 = vpack.c.b16 %v2894, %v2886
    %v3735 = vpack.c.b16 %v2895, %v2887
    %v3736 = vpack.c.b16 %v2896, %v2888
    %v3737 = vpack.c.b16 %v2897, %v2889
    %v3738 = vpack.c.b16 %v2898, %v2890
    %v3739 = vpack.c.b16 %v2899, %v2891
    %v3740 = vpack.c.b16 %v2908, %v2900
    %v3741 = vpack.c.b16 %v2909, %v2901
    %v3742 = vpack.c.b16 %v2910, %v2902
    %v3743 = vpack.c.b16 %v2911, %v2903
    %v3744 = vpack.c.b16 %v2912, %v2904
    %v3745 = vpack.c.b16 %v2913, %v2905
    %v3746 = vpack.c.b16 %v2914, %v2906
    %v3747 = vpack.c.b16 %v2915, %v2907
    %v3748 = vpack.c.b16 %v2924, %v2916
    %v3749 = vpack.c.b16 %v2925, %v2917
    %v3750 = vpack.c.b16 %v2926, %v2918
    %v3751 = vpack.c.b16 %v2927, %v2919
    %v3752 = vpack.c.b16 %v2928, %v2920
    %v3753 = vpack.c.b16 %v2929, %v2921
    %v3754 = vpack.c.b16 %v2930, %v2922
    %v3755 = vpack.c.b16 %v2931, %v2923
    %v3756 = vpack.c.b16 %v2940, %v2932
    %v3757 = vpack.c.b16 %v2941, %v2933
    %v3758 = vpack.c.b16 %v2942, %v2934
    %v3759 = vpack.c.b16 %v2943, %v2935
    %v3760 = vpack.c.b16 %v2944, %v2936
    %v3761 = vpack.c.b16 %v2945, %v2937
    %v3762 = vpack.c.b16 %v2946, %v2938
    %v3763 = vpack.c.b16 %v2947, %v2939
    %v3764 = vpack.c.b16 %v2956, %v2948
    %v3765 = vpack.c.b16 %v2957, %v2949
    %v3766 = vpack.c.b16 %v2958, %v2950
    %v3767 = vpack.c.b16 %v2959, %v2951
    %v3768 = vpack.c.b16 %v2960, %v2952
    %v3769 = vpack.c.b16 %v2961, %v2953
    %v3770 = vpack.c.b16 %v2962, %v2954
    %v3771 = vpack.c.b16 %v2963, %v2955
    %v3772 = vpack.c.b16 %v2972, %v2964
    %v3773 = vpack.c.b16 %v2973, %v2965
    %v3774 = vpack.c.b16 %v2974, %v2966
    %v3775 = vpack.c.b16 %v2975, %v2967
    %v3776 = vpack.c.b16 %v2976, %v2968
    %v3777 = vpack.c.b16 %v2977, %v2969
    %v3778 = vpack.c.b16 %v2978, %v2970
    %v3779 = vpack.c.b16 %v2979, %v2971
    %v3780 = vpack.c.b16 %v2988, %v2980
    %v3781 = vpack.c.b16 %v2989, %v2981
    %v3782 = vpack.c.b16 %v2990, %v2982
    %v3783 = vpack.c.b16 %v2991, %v2983
    %v3784 = vpack.c.b16 %v2992, %v2984
    %v3785 = vpack.c.b16 %v2993, %v2985
    %v3786 = vpack.c.b16 %v2994, %v2986
    %v3787 = vpack.c.b16 %v2995, %v2987
    %v3788 = vpack.c.b16 %v3004, %v2996
    %v3789 = vpack.c.b16 %v3005, %v2997
    %v3790 = vpack.c.b16 %v3006, %v2998
    %v3791 = vpack.c.b16 %v3007, %v2999
    %v3792 = vpack.c.b16 %v3008, %v3000
    %v3793 = vpack.c.b16 %v3009, %v3001
    %v3794 = vpack.c.b16 %v3010, %v3002
    %v3795 = vpack.c.b16 %v3011, %v3003
    %v3796 = vpack.c.b16 %v3020, %v3012
    %v3797 = vpack.c.b16 %v3021, %v3013
    %v3798 = vpack.c.b16 %v3022, %v3014
    %v3799 = vpack.c.b16 %v3023, %v3015
    %v3800 = vpack.c.b16 %v3024, %v3016
    %v3801 = vpack.c.b16 %v3025, %v3017
    %v3802 = vpack.c.b16 %v3026, %v3018
    %v3803 = vpack.c.b16 %v3027, %v3019
    %v3804 = vpack.c.b16 %v3036, %v3028
    %v3805 = vpack.c.b16 %v3037, %v3029
    %v3806 = vpack.c.b16 %v3038, %v3030
    %v3807 = vpack.c.b16 %v3039, %v3031
    %v3808 = vpack.c.b16 %v3040, %v3032
    %v3809 = vpack.c.b16 %v3041, %v3033
    %v3810 = vpack.c.b16 %v3042, %v3034
    %v3811 = vpack.c.b16 %v3043, %v3035
    %v3812 = vpack.c.b16 %v3052, %v3044
    %v3813 = vpack.c.b16 %v3053, %v3045
    %v3814 = vpack.c.b16 %v3054, %v3046
    %v3815 = vpack.c.b16 %v3055, %v3047
    %v3816 = vpack.c.b16 %v3056, %v3048
    %v3817 = vpack.c.b16 %v3057, %v3049
    %v3818 = vpack.c.b16 %v3058, %v3050
    %v3819 = vpack.c.b16 %v3059, %v3051
    %v3820 = vpack.c.b16 %v3068, %v3060
    %v3821 = vpack.c.b16 %v3069, %v3061
    %v3822 = vpack.c.b16 %v3070, %v3062
    %v3823 = vpack.c.b16 %v3071, %v3063
    %v3824 = vpack.c.b16 %v3072, %v3064
    %v3825 = vpack.c.b16 %v3073, %v3065
    %v3826 = vpack.c.b16 %v3074, %v3066
    %v3827 = vpack.c.b16 %v3075, %v3067
    %v3828 = vpack.c.b16 %v3084, %v3076
    %v3829 = vpack.c.b16 %v3085, %v3077
    %v3830 = vpack.c.b16 %v3086, %v3078
    %v3831 = vpack.c.b16 %v3087, %v3079
    %v3832 = vpack.c.b16 %v3088, %v3080
    %v3833 = vpack.c.b16 %v3089, %v3081
    %v3834 = vpack.c.b16 %v3090, %v3082
    %v3835 = vpack.c.b16 %v3091, %v3083
    %v3836 = vpack.c.b16 %v3100, %v3092
    %v3837 = vpack.c.b16 %v3101, %v3093
    %v3838 = vpack.c.b16 %v3102, %v3094
    %v3839 = vpack.c.b16 %v3103, %v3095
    %v3840 = vpack.c.b16 %v3104, %v3096
    %v3841 = vpack.c.b16 %v3105, %v3097
    %v3842 = vpack.c.b16 %v3106, %v3098
    %v3843 = vpack.c.b16 %v3107, %v3099
    %v3844 = vpack.c.b16 %v3116, %v3108
    %v3845 = vpack.c.b16 %v3117, %v3109
    %v3846 = vpack.c.b16 %v3118, %v3110
    %v3847 = vpack.c.b16 %v3119, %v3111
    %v3848 = vpack.c.b16 %v3120, %v3112
    %v3849 = vpack.c.b16 %v3121, %v3113
    %v3850 = vpack.c.b16 %v3122, %v3114
    %v3851 = vpack.c.b16 %v3123, %v3115
    %v3852 = vpack.c.b16 %v3132, %v3124
    %v3853 = vpack.c.b16 %v3133, %v3125
    %v3854 = vpack.c.b16 %v3134, %v3126
    %v3855 = vpack.c.b16 %v3135, %v3127
    %v3856 = vpack.c.b16 %v3136, %v3128
    %v3857 = vpack.c.b16 %v3137, %v3129
    %v3858 = vpack.c.b16 %v3138, %v3130
    %v3859 = vpack.c.b16 %v3139, %v3131
    %v3860 = vpack.c.b16 %v3148, %v3140
    %v3861 = vpack.c.b16 %v3149, %v3141
    %v3862 = vpack.c.b16 %v3150, %v3142
    %v3863 = vpack.c.b16 %v3151, %v3143
    %v3864 = vpack.c.b16 %v3152, %v3144
    %v3865 = vpack.c.b16 %v3153, %v3145
    %v3866 = vpack.c.b16 %v3154, %v3146
    %v3867 = vpack.c.b16 %v3155, %v3147
    %v3868 = vpack.c.b16 %v3164, %v3156
    %v3869 = vpack.c.b16 %v3165, %v3157
    %v3870 = vpack.c.b16 %v3166, %v3158
    %v3871 = vpack.c.b16 %v3167, %v3159
    %v3872 = vpack.c.b16 %v3168, %v3160
    %v3873 = vpack.c.b16 %v3169, %v3161
    %v3874 = vpack.c.b16 %v3170, %v3162
    %v3875 = vpack.c.b16 %v3171, %v3163
    %v3876 = vpack.c.b16 %v3180, %v3172
    %v3877 = vpack.c.b16 %v3181, %v3173
    %v3878 = vpack.c.b16 %v3182, %v3174
    %v3879 = vpack.c.b16 %v3183, %v3175
    %v3880 = vpack.c.b16 %v3184, %v3176
    %v3881 = vpack.c.b16 %v3185, %v3177
    %v3882 = vpack.c.b16 %v3186, %v3178
    %v3883 = vpack.c.b16 %v3187, %v3179
    %v3884 = vpack.c.b16 %v3196, %v3188
    %v3885 = vpack.c.b16 %v3197, %v3189
    %v3886 = vpack.c.b16 %v3198, %v3190
    %v3887 = vpack.c.b16 %v3199, %v3191
    %v3888 = vpack.c.b16 %v3200, %v3192
    %v3889 = vpack.c.b16 %v3201, %v3193
    %v3890 = vpack.c.b16 %v3202, %v3194
    %v3891 = vpack.c.b16 %v3203, %v3195
    %v3892 = vpack.c.b16 %v3212, %v3204
    %v3893 = vpack.c.b16 %v3213, %v3205
    %v3894 = vpack.c.b16 %v3214, %v3206
    %v3895 = vpack.c.b16 %v3215, %v3207
    %v3896 = vpack.c.b16 %v3216, %v3208
    %v3897 = vpack.c.b16 %v3217, %v3209
    %v3898 = vpack.c.b16 %v3218, %v3210
    %v3899 = vpack.c.b16 %v3219, %v3211
    %v3900 = vpack.c.b16 %v3228, %v3220
    %v3901 = vpack.c.b16 %v3229, %v3221
    %v3902 = vpack.c.b16 %v3230, %v3222
    %v3903 = vpack.c.b16 %v3231, %v3223
    %v3904 = vpack.c.b16 %v3232, %v3224
    %v3905 = vpack.c.b16 %v3233, %v3225
    %v3906 = vpack.c.b16 %v3234, %v3226
    %v3907 = vpack.c.b16 %v3235, %v3227
    %v3908 = vpack.c.b16 %v3244, %v3236
    %v3909 = vpack.c.b16 %v3245, %v3237
    %v3910 = vpack.c.b16 %v3246, %v3238
    %v3911 = vpack.c.b16 %v3247, %v3239
    %v3912 = vpack.c.b16 %v3248, %v3240
    %v3913 = vpack.c.b16 %v3249, %v3241
    %v3914 = vpack.c.b16 %v3250, %v3242
    %v3915 = vpack.c.b16 %v3251, %v3243
    %v3916 = vpack.c.b16 %v3260, %v3252
    %v3917 = vpack.c.b16 %v3261, %v3253
    %v3918 = vpack.c.b16 %v3262, %v3254
    %v3919 = vpack.c.b16 %v3263, %v3255
    %v3920 = vpack.c.b16 %v3264, %v3256
    %v3921 = vpack.c.b16 %v3265, %v3257
    %v3922 = vpack.c.b16 %v3266, %v3258
    %v3923 = vpack.c.b16 %v3267, %v3259
    %v3924 = vpack.c.b16 %v3276, %v3268
    %v3925 = vpack.c.b16 %v3277, %v3269
    %v3926 = vpack.c.b16 %v3278, %v3270
    %v3927 = vpack.c.b16 %v3279, %v3271
    %v3928 = vpack.c.b16 %v3280, %v3272
    %v3929 = vpack.c.b16 %v3281, %v3273
    %v3930 = vpack.c.b16 %v3282, %v3274
    %v3931 = vpack.c.b16 %v3283, %v3275
    %v3932 = vpack.c.b16 %v3292, %v3284
    %v3933 = vpack.c.b16 %v3293, %v3285
    %v3934 = vpack.c.b16 %v3294, %v3286
    %v3935 = vpack.c.b16 %v3295, %v3287
    %v3936 = vpack.c.b16 %v3296, %v3288
    %v3937 = vpack.c.b16 %v3297, %v3289
    %v3938 = vpack.c.b16 %v3298, %v3290
    %v3939 = vpack.c.b16 %v3299, %v3291
    %v3940 = vpack.c.b16 %v3308, %v3300
    %v3941 = vpack.c.b16 %v3309, %v3301
    %v3942 = vpack.c.b16 %v3310, %v3302
    %v3943 = vpack.c.b16 %v3311, %v3303
    %v3944 = vpack.c.b16 %v3312, %v3304
    %v3945 = vpack.c.b16 %v3313, %v3305
    %v3946 = vpack.c.b16 %v3314, %v3306
    %v3947 = vpack.c.b16 %v3315, %v3307
    %v3948 = vpack.c.b16 %v3324, %v3316
    %v3949 = vpack.c.b16 %v3325, %v3317
    %v3950 = vpack.c.b16 %v3326, %v3318
    %v3951 = vpack.c.b16 %v3327, %v3319
    %v3952 = vpack.c.b16 %v3328, %v3320
    %v3953 = vpack.c.b16 %v3329, %v3321
    %v3954 = vpack.c.b16 %v3330, %v3322
    %v3955 = vpack.c.b16 %v3331, %v3323
    %v3956 = vpack.c.b16 %v3340, %v3332
    %v3957 = vpack.c.b16 %v3341, %v3333
    %v3958 = vpack.c.b16 %v3342, %v3334
    %v3959 = vpack.c.b16 %v3343, %v3335
    %v3960 = vpack.c.b16 %v3344, %v3336
    %v3961 = vpack.c.b16 %v3345, %v3337
    %v3962 = vpack.c.b16 %v3346, %v3338
    %v3963 = vpack.c.b16 %v3347, %v3339
    %v3964 = vpack.c.b16 %v3356, %v3348
    %v3965 = vpack.c.b16 %v3357, %v3349
    %v3966 = vpack.c.b16 %v3358, %v3350
    %v3967 = vpack.c.b16 %v3359, %v3351
    %v3968 = vpack.c.b16 %v3360, %v3352
    %v3969 = vpack.c.b16 %v3361, %v3353
    %v3970 = vpack.c.b16 %v3362, %v3354
    %v3971 = vpack.c.b16 %v3363, %v3355
    %v3972 = vpack.c.b16 %v3372, %v3364
    %v3973 = vpack.c.b16 %v3373, %v3365
    %v3974 = vpack.c.b16 %v3374, %v3366
    %v3975 = vpack.c.b16 %v3375, %v3367
    %v3976 = vpack.c.b16 %v3376, %v3368
    %v3977 = vpack.c.b16 %v3377, %v3369
    %v3978 = vpack.c.b16 %v3378, %v3370
    %v3979 = vpack.c.b16 %v3379, %v3371
    %v3980 = vpack.c.b16 %v3388, %v3380
    %v3981 = vpack.c.b16 %v3389, %v3381
    %v3982 = vpack.c.b16 %v3390, %v3382
    %v3983 = vpack.c.b16 %v3391, %v3383
    %v3984 = vpack.c.b16 %v3392, %v3384
    %v3985 = vpack.c.b16 %v3393, %v3385
    %v3986 = vpack.c.b16 %v3394, %v3386
    %v3987 = vpack.c.b16 %v3395, %v3387
    %v3988 = vpack.c.b16 %v3404, %v3396
    %v3989 = vpack.c.b16 %v3405, %v3397
    %v3990 = vpack.c.b16 %v3406, %v3398
    %v3991 = vpack.c.b16 %v3407, %v3399
    %v3992 = vpack.c.b16 %v3408, %v3400
    %v3993 = vpack.c.b16 %v3409, %v3401
    %v3994 = vpack.c.b16 %v3410, %v3402
    %v3995 = vpack.c.b16 %v3411, %v3403
    %v3996 = vpack.c.b16 %v3420, %v3412
    %v3997 = vpack.c.b16 %v3421, %v3413
    %v3998 = vpack.c.b16 %v3422, %v3414
    %v3999 = vpack.c.b16 %v3423, %v3415
    %v4000 = vpack.c.b16 %v3424, %v3416
    %v4001 = vpack.c.b16 %v3425, %v3417
    %v4002 = vpack.c.b16 %v3426, %v3418
    %v4003 = vpack.c.b16 %v3427, %v3419
    %v4004 = vpack.c.b16 %v3436, %v3428
    %v4005 = vpack.c.b16 %v3437, %v3429
    %v4006 = vpack.c.b16 %v3438, %v3430
    %v4007 = vpack.c.b16 %v3439, %v3431
    %v4008 = vpack.c.b16 %v3440, %v3432
    %v4009 = vpack.c.b16 %v3441, %v3433
    %v4010 = vpack.c.b16 %v3442, %v3434
    %v4011 = vpack.c.b16 %v3443, %v3435
    %v4012 = vpack.c.b16 %v3452, %v3444
    %v4013 = vpack.c.b16 %v3453, %v3445
    %v4014 = vpack.c.b16 %v3454, %v3446
    %v4015 = vpack.c.b16 %v3455, %v3447
    %v4016 = vpack.c.b16 %v3456, %v3448
    %v4017 = vpack.c.b16 %v3457, %v3449
    %v4018 = vpack.c.b16 %v3458, %v3450
    %v4019 = vpack.c.b16 %v3459, %v3451
    %v4020 = vpack.c.b16 %v3468, %v3460
    %v4021 = vpack.c.b16 %v3469, %v3461
    %v4022 = vpack.c.b16 %v3470, %v3462
    %v4023 = vpack.c.b16 %v3471, %v3463
    %v4024 = vpack.c.b16 %v3472, %v3464
    %v4025 = vpack.c.b16 %v3473, %v3465
    %v4026 = vpack.c.b16 %v3474, %v3466
    %v4027 = vpack.c.b16 %v3475, %v3467
    %v4028 = vpack.c.b16 %v3484, %v3476
    %v4029 = vpack.c.b16 %v3485, %v3477
    %v4030 = vpack.c.b16 %v3486, %v3478
    %v4031 = vpack.c.b16 %v3487, %v3479
    %v4032 = vpack.c.b16 %v3488, %v3480
    %v4033 = vpack.c.b16 %v3489, %v3481
    %v4034 = vpack.c.b16 %v3490, %v3482
    %v4035 = vpack.c.b16 %v3491, %v3483
    %v4036 = vpack.c.b16 %v3500, %v3492
    %v4037 = vpack.c.b16 %v3501, %v3493
    %v4038 = vpack.c.b16 %v3502, %v3494
    %v4039 = vpack.c.b16 %v3503, %v3495
    %v4040 = vpack.c.b16 %v3504, %v3496
    %v4041 = vpack.c.b16 %v3505, %v3497
    %v4042 = vpack.c.b16 %v3506, %v3498
    %v4043 = vpack.c.b16 %v3507, %v3499
    %v4044 = vpack.c.b16 %v3516, %v3508
    %v4045 = vpack.c.b16 %v3517, %v3509
    %v4046 = vpack.c.b16 %v3518, %v3510
    %v4047 = vpack.c.b16 %v3519, %v3511
    %v4048 = vpack.c.b16 %v3520, %v3512
    %v4049 = vpack.c.b16 %v3521, %v3513
    %v4050 = vpack.c.b16 %v3522, %v3514
    %v4051 = vpack.c.b16 %v3523, %v3515
    %v4052 = vpack.c.b16 %v3532, %v3524
    %v4053 = vpack.c.b16 %v3533, %v3525
    %v4054 = vpack.c.b16 %v3534, %v3526
    %v4055 = vpack.c.b16 %v3535, %v3527
    %v4056 = vpack.c.b16 %v3536, %v3528
    %v4057 = vpack.c.b16 %v3537, %v3529
    %v4058 = vpack.c.b16 %v3538, %v3530
    %v4059 = vpack.c.b16 %v3539, %v3531
    %v4060 = vpack.c.b16 %v3548, %v3540
    %v4061 = vpack.c.b16 %v3549, %v3541
    %v4062 = vpack.c.b16 %v3550, %v3542
    %v4063 = vpack.c.b16 %v3551, %v3543
    %v4064 = vpack.c.b16 %v3552, %v3544
    %v4065 = vpack.c.b16 %v3553, %v3545
    %v4066 = vpack.c.b16 %v3554, %v3546
    %v4067 = vpack.c.b16 %v3555, %v3547
    %4580 = vmatprep.subr.bf16.mxu0 %v3613
    %4581 = vmatpush1.bf16.msra.mxu0 %v3612
    %4582 = vmatprep.subr.bf16.mxu0 %v3605
    %4583 = vmatpush1.bf16.msra.mxu0 %v3604
    %4584 = vmatprep.subr.bf16.mxu0 %v3597
    %4585 = vmatpush1.bf16.msra.mxu0 %v3596
    %4586 = vmatprep.subr.bf16.mxu0 %v3589
    %4587 = vmatpush1.bf16.msra.mxu0 %v3588
    %4588 = vmatprep.subr.bf16.mxu0 %v3581
    %4589 = vmatpush1.bf16.msra.mxu0 %v3580
    %4590 = vmatprep.subr.bf16.mxu0 %v3573
    %4591 = vmatpush1.bf16.msra.mxu0 %v3572
    %4592 = vmatprep.subr.bf16.mxu0 %v3565
    %4593 = vmatpush1.bf16.msra.mxu0 %v3564
    %4594 = vmatprep.subr.bf16.mxu0 %v3557
    %4595 = vmatpush1.bf16.msra.mxu0 %v3556
    %4596 = vmatprep.subr.bf16.mxu0 %v3677
    %4597 = vmatpush2.bf16.msra.mxu0 %v3676
    %4598 = vmatprep.subr.bf16.mxu0 %v3669
    %4599 = vmatpush2.bf16.msra.mxu0 %v3668
    %4600 = vmatprep.subr.bf16.mxu0 %v3661
    %4601 = vmatpush2.bf16.msra.mxu0 %v3660
    %4602 = vmatprep.subr.bf16.mxu0 %v3653
    %4603 = vmatpush2.bf16.msra.mxu0 %v3652
    %4604 = vmatprep.subr.bf16.mxu0 %v3645
    %4605 = vmatpush2.bf16.msra.mxu0 %v3644
    %4606 = vmatprep.subr.bf16.mxu0 %v3637
    %4607 = vmatpush2.bf16.msra.mxu0 %v3636
    %4608 = vmatprep.subr.bf16.mxu0 %v3629
    %4609 = vmatpush2.bf16.msra.mxu0 %v3628
    %4610 = vmatprep.subr.bf16.mxu0 %v3621
    %4611 = vmatpush2.bf16.msra.mxu0 %v3620
    %4612 = vmatprep.mubr.bf16.mxu0 %v1501
    %4613 = vmatmul.mubr.bf16.gmra.mxu0 %v1500
    %v4614 = vpop.f32.mrf.mxu0
    %v4615 = vadd.f32 0.0, %v4614
    %v4616 = vpop.f32.mrf.mxu0
    %v4617 = vadd.f32 0.0, %v4616
    %v4618 = vpop.f32.mrf.mxu0
    %v4619 = vadd.f32 0.0, %v4618
    %v4620 = vpop.f32.mrf.mxu0
    %v4621 = vadd.f32 0.0, %v4620
    %4622 = vdwg.mxu0
    %4623 = vmatprep.subr.bf16.mxu0 %v3741
    %4624 = vmatpush1.bf16.msra.mxu0 %v3740
    %4625 = vmatprep.subr.bf16.mxu0 %v3733
    %4626 = vmatpush1.bf16.msra.mxu0 %v3732
    %4627 = vmatprep.subr.bf16.mxu0 %v3725
    %4628 = vmatpush1.bf16.msra.mxu0 %v3724
    %4629 = vmatprep.subr.bf16.mxu0 %v3717
    %4630 = vmatpush1.bf16.msra.mxu0 %v3716
    %4631 = vmatprep.subr.bf16.mxu0 %v3709
    %4632 = vmatpush1.bf16.msra.mxu0 %v3708
    %4633 = vmatprep.subr.bf16.mxu0 %v3701
    %4634 = vmatpush1.bf16.msra.mxu0 %v3700
    %4635 = vmatprep.subr.bf16.mxu0 %v3693
    %4636 = vmatpush1.bf16.msra.mxu0 %v3692
    %4637 = vmatprep.subr.bf16.mxu0 %v3685
    %4638 = vmatpush1.bf16.msra.mxu0 %v3684
    %4639 = vmatprep.subr.bf16.mxu0 %v3805
    %4640 = vmatpush2.bf16.msra.mxu0 %v3804
    %4641 = vmatprep.subr.bf16.mxu0 %v3797
    %4642 = vmatpush2.bf16.msra.mxu0 %v3796
    %4643 = vmatprep.subr.bf16.mxu0 %v3789
    %4644 = vmatpush2.bf16.msra.mxu0 %v3788
    %4645 = vmatprep.subr.bf16.mxu0 %v3781
    %4646 = vmatpush2.bf16.msra.mxu0 %v3780
    %4647 = vmatprep.subr.bf16.mxu0 %v3773
    %4648 = vmatpush2.bf16.msra.mxu0 %v3772
    %4649 = vmatprep.subr.bf16.mxu0 %v3765
    %4650 = vmatpush2.bf16.msra.mxu0 %v3764
    %4651 = vmatprep.subr.bf16.mxu0 %v3757
    %4652 = vmatpush2.bf16.msra.mxu0 %v3756
    %4653 = vmatprep.subr.bf16.mxu0 %v3749
    %4654 = vmatpush2.bf16.msra.mxu0 %v3748
    %4655 = vmatprep.mubr.bf16.mxu0 %v1503
    %4656 = vmatmul.mubr.bf16.gmra.mxu0 %v1502
    %v4657 = vpop.f32.mrf.mxu0
    %v4658 = vadd.f32 %v4615, %v4657
    %v4659 = vpop.f32.mrf.mxu0
    %v4660 = vadd.f32 %v4617, %v4659
    %v4661 = vpop.f32.mrf.mxu0
    %v4662 = vadd.f32 %v4619, %v4661
    %v4663 = vpop.f32.mrf.mxu0
    %v4664 = vadd.f32 %v4621, %v4663
    %4665 = vdwg.mxu0
    %4666 = vmatprep.subr.bf16.mxu0 %v3869
    %4667 = vmatpush1.bf16.msra.mxu0 %v3868
    %4668 = vmatprep.subr.bf16.mxu0 %v3861
    %4669 = vmatpush1.bf16.msra.mxu0 %v3860
    %4670 = vmatprep.subr.bf16.mxu0 %v3853
    %4671 = vmatpush1.bf16.msra.mxu0 %v3852
    %4672 = vmatprep.subr.bf16.mxu0 %v3845
    %4673 = vmatpush1.bf16.msra.mxu0 %v3844
    %4674 = vmatprep.subr.bf16.mxu0 %v3837
    %4675 = vmatpush1.bf16.msra.mxu0 %v3836
    %4676 = vmatprep.subr.bf16.mxu0 %v3829
    %4677 = vmatpush1.bf16.msra.mxu0 %v3828
    %4678 = vmatprep.subr.bf16.mxu0 %v3821
    %4679 = vmatpush1.bf16.msra.mxu0 %v3820
    %4680 = vmatprep.subr.bf16.mxu0 %v3813
    %4681 = vmatpush1.bf16.msra.mxu0 %v3812
    %4682 = vmatprep.subr.bf16.mxu0 %v3933
    %4683 = vmatpush2.bf16.msra.mxu0 %v3932
    %4684 = vmatprep.subr.bf16.mxu0 %v3925
    %4685 = vmatpush2.bf16.msra.mxu0 %v3924
    %4686 = vmatprep.subr.bf16.mxu0 %v3917
    %4687 = vmatpush2.bf16.msra.mxu0 %v3916
    %4688 = vmatprep.subr.bf16.mxu0 %v3909
    %4689 = vmatpush2.bf16.msra.mxu0 %v3908
    %4690 = vmatprep.subr.bf16.mxu0 %v3901
    %4691 = vmatpush2.bf16.msra.mxu0 %v3900
    %4692 = vmatprep.subr.bf16.mxu0 %v3893
    %4693 = vmatpush2.bf16.msra.mxu0 %v3892
    %4694 = vmatprep.subr.bf16.mxu0 %v3885
    %4695 = vmatpush2.bf16.msra.mxu0 %v3884
    %4696 = vmatprep.subr.bf16.mxu0 %v3877
    %4697 = vmatpush2.bf16.msra.mxu0 %v3876
    %4698 = vmatprep.mubr.bf16.mxu0 %v1505
    %4699 = vmatmul.mubr.bf16.gmra.mxu0 %v1504
    %v4700 = vpop.f32.mrf.mxu0
    %v4701 = vadd.f32 %v4658, %v4700
    %v4702 = vpop.f32.mrf.mxu0
    %v4703 = vadd.f32 %v4660, %v4702
    %v4704 = vpop.f32.mrf.mxu0
    %v4705 = vadd.f32 %v4662, %v4704
    %v4706 = vpop.f32.mrf.mxu0
    %v4707 = vadd.f32 %v4664, %v4706
    %4708 = vdwg.mxu0
    %4709 = vmatprep.subr.bf16.mxu0 %v3997
    %4710 = vmatpush1.bf16.msra.mxu0 %v3996
    %4711 = vmatprep.subr.bf16.mxu0 %v3989
    %4712 = vmatpush1.bf16.msra.mxu0 %v3988
    %4713 = vmatprep.subr.bf16.mxu0 %v3981
    %4714 = vmatpush1.bf16.msra.mxu0 %v3980
    %4715 = vmatprep.subr.bf16.mxu0 %v3973
    %4716 = vmatpush1.bf16.msra.mxu0 %v3972
    %4717 = vmatprep.subr.bf16.mxu0 %v3965
    %4718 = vmatpush1.bf16.msra.mxu0 %v3964
    %4719 = vmatprep.subr.bf16.mxu0 %v3957
    %4720 = vmatpush1.bf16.msra.mxu0 %v3956
    %4721 = vmatprep.subr.bf16.mxu0 %v3949
    %4722 = vmatpush1.bf16.msra.mxu0 %v3948
    %4723 = vmatprep.subr.bf16.mxu0 %v3941
    %4724 = vmatpush1.bf16.msra.mxu0 %v3940
    %4725 = vmatprep.subr.bf16.mxu0 %v4061
    %4726 = vmatpush2.bf16.msra.mxu0 %v4060
    %4727 = vmatprep.subr.bf16.mxu0 %v4053
    %4728 = vmatpush2.bf16.msra.mxu0 %v4052
    %4729 = vmatprep.subr.bf16.mxu0 %v4045
    %4730 = vmatpush2.bf16.msra.mxu0 %v4044
    %4731 = vmatprep.subr.bf16.mxu0 %v4037
    %4732 = vmatpush2.bf16.msra.mxu0 %v4036
    %4733 = vmatprep.subr.bf16.mxu0 %v4029
    %4734 = vmatpush2.bf16.msra.mxu0 %v4028
    %4735 = vmatprep.subr.bf16.mxu0 %v4021
    %4736 = vmatpush2.bf16.msra.mxu0 %v4020
    %4737 = vmatprep.subr.bf16.mxu0 %v4013
    %4738 = vmatpush2.bf16.msra.mxu0 %v4012
    %4739 = vmatprep.subr.bf16.mxu0 %v4005
    %4740 = vmatpush2.bf16.msra.mxu0 %v4004
    %4741 = vmatprep.mubr.bf16.mxu0 %v1507
    %4742 = vmatmul.mubr.bf16.gmra.mxu0 %v1506
    %v4743 = vpop.f32.mrf.mxu0
    %v4744 = vadd.f32 %v4701, %v4743
    %v4745 = vpop.f32.mrf.mxu0
    %v4746 = vadd.f32 %v4703, %v4745
    %v4747 = vpop.f32.mrf.mxu0
    %v4748 = vadd.f32 %v4705, %v4747
    %v4749 = vpop.f32.mrf.mxu0
    %v4750 = vadd.f32 %v4707, %v4749
    %4751 = vdwg.mxu0
    %4752 = vmatprep.subr.bf16.mxu0 %v3615
    %4753 = vmatpush1.bf16.msra.mxu0 %v3614
    %4754 = vmatprep.subr.bf16.mxu0 %v3607
    %4755 = vmatpush1.bf16.msra.mxu0 %v3606
    %4756 = vmatprep.subr.bf16.mxu0 %v3599
    %4757 = vmatpush1.bf16.msra.mxu0 %v3598
    %4758 = vmatprep.subr.bf16.mxu0 %v3591
    %4759 = vmatpush1.bf16.msra.mxu0 %v3590
    %4760 = vmatprep.subr.bf16.mxu0 %v3583
    %4761 = vmatpush1.bf16.msra.mxu0 %v3582
    %4762 = vmatprep.subr.bf16.mxu0 %v3575
    %4763 = vmatpush1.bf16.msra.mxu0 %v3574
    %4764 = vmatprep.subr.bf16.mxu0 %v3567
    %4765 = vmatpush1.bf16.msra.mxu0 %v3566
    %4766 = vmatprep.subr.bf16.mxu0 %v3559
    %4767 = vmatpush1.bf16.msra.mxu0 %v3558
    %4768 = vmatprep.subr.bf16.mxu0 %v3679
    %4769 = vmatpush2.bf16.msra.mxu0 %v3678
    %4770 = vmatprep.subr.bf16.mxu0 %v3671
    %4771 = vmatpush2.bf16.msra.mxu0 %v3670
    %4772 = vmatprep.subr.bf16.mxu0 %v3663
    %4773 = vmatpush2.bf16.msra.mxu0 %v3662
    %4774 = vmatprep.subr.bf16.mxu0 %v3655
    %4775 = vmatpush2.bf16.msra.mxu0 %v3654
    %4776 = vmatprep.subr.bf16.mxu0 %v3647
    %4777 = vmatpush2.bf16.msra.mxu0 %v3646
    %4778 = vmatprep.subr.bf16.mxu0 %v3639
    %4779 = vmatpush2.bf16.msra.mxu0 %v3638
    %4780 = vmatprep.subr.bf16.mxu0 %v3631
    %4781 = vmatpush2.bf16.msra.mxu0 %v3630
    %4782 = vmatprep.subr.bf16.mxu0 %v3623
    %4783 = vmatpush2.bf16.msra.mxu0 %v3622
    %4784 = vmatprep.mubr.bf16.mxu0 %v1501
    %4785 = vmatmul.mubr.bf16.gmra.mxu0 %v1500
    %v4786 = vpop.f32.mrf.mxu0
    %v4787 = vadd.f32 0.0, %v4786
    %v4788 = vpop.f32.mrf.mxu0
    %v4789 = vadd.f32 0.0, %v4788
    %v4790 = vpop.f32.mrf.mxu0
    %v4791 = vadd.f32 0.0, %v4790
    %v4792 = vpop.f32.mrf.mxu0
    %v4793 = vadd.f32 0.0, %v4792
    %4794 = vdwg.mxu0
    %4795 = vmatprep.subr.bf16.mxu0 %v3743
    %4796 = vmatpush1.bf16.msra.mxu0 %v3742
    %4797 = vmatprep.subr.bf16.mxu0 %v3735
    %4798 = vmatpush1.bf16.msra.mxu0 %v3734
    %4799 = vmatprep.subr.bf16.mxu0 %v3727
    %4800 = vmatpush1.bf16.msra.mxu0 %v3726
    %4801 = vmatprep.subr.bf16.mxu0 %v3719
    %4802 = vmatpush1.bf16.msra.mxu0 %v3718
    %4803 = vmatprep.subr.bf16.mxu0 %v3711
    %4804 = vmatpush1.bf16.msra.mxu0 %v3710
    %4805 = vmatprep.subr.bf16.mxu0 %v3703
    %4806 = vmatpush1.bf16.msra.mxu0 %v3702
    %4807 = vmatprep.subr.bf16.mxu0 %v3695
    %4808 = vmatpush1.bf16.msra.mxu0 %v3694
    %4809 = vmatprep.subr.bf16.mxu0 %v3687
    %4810 = vmatpush1.bf16.msra.mxu0 %v3686
    %4811 = vmatprep.subr.bf16.mxu0 %v3807
    %4812 = vmatpush2.bf16.msra.mxu0 %v3806
    %4813 = vmatprep.subr.bf16.mxu0 %v3799
    %4814 = vmatpush2.bf16.msra.mxu0 %v3798
    %4815 = vmatprep.subr.bf16.mxu0 %v3791
    %4816 = vmatpush2.bf16.msra.mxu0 %v3790
    %4817 = vmatprep.subr.bf16.mxu0 %v3783
    %4818 = vmatpush2.bf16.msra.mxu0 %v3782
    %4819 = vmatprep.subr.bf16.mxu0 %v3775
    %4820 = vmatpush2.bf16.msra.mxu0 %v3774
    %4821 = vmatprep.subr.bf16.mxu0 %v3767
    %4822 = vmatpush2.bf16.msra.mxu0 %v3766
    %4823 = vmatprep.subr.bf16.mxu0 %v3759
    %4824 = vmatpush2.bf16.msra.mxu0 %v3758
    %4825 = vmatprep.subr.bf16.mxu0 %v3751
    %4826 = vmatpush2.bf16.msra.mxu0 %v3750
    %4827 = vmatprep.mubr.bf16.mxu0 %v1503
    %4828 = vmatmul.mubr.bf16.gmra.mxu0 %v1502
    %v4829 = vpop.f32.mrf.mxu0
    %v4830 = vadd.f32 %v4787, %v4829
    %v4831 = vpop.f32.mrf.mxu0
    %v4832 = vadd.f32 %v4789, %v4831
    %v4833 = vpop.f32.mrf.mxu0
    %v4834 = vadd.f32 %v4791, %v4833
    %v4835 = vpop.f32.mrf.mxu0
    %v4836 = vadd.f32 %v4793, %v4835
    %4837 = vdwg.mxu0
    %4838 = vmatprep.subr.bf16.mxu0 %v3871
    %4839 = vmatpush1.bf16.msra.mxu0 %v3870
    %4840 = vmatprep.subr.bf16.mxu0 %v3863
    %4841 = vmatpush1.bf16.msra.mxu0 %v3862
    %4842 = vmatprep.subr.bf16.mxu0 %v3855
    %4843 = vmatpush1.bf16.msra.mxu0 %v3854
    %4844 = vmatprep.subr.bf16.mxu0 %v3847
    %4845 = vmatpush1.bf16.msra.mxu0 %v3846
    %4846 = vmatprep.subr.bf16.mxu0 %v3839
    %4847 = vmatpush1.bf16.msra.mxu0 %v3838
    %4848 = vmatprep.subr.bf16.mxu0 %v3831
    %4849 = vmatpush1.bf16.msra.mxu0 %v3830
    %4850 = vmatprep.subr.bf16.mxu0 %v3823
    %4851 = vmatpush1.bf16.msra.mxu0 %v3822
    %4852 = vmatprep.subr.bf16.mxu0 %v3815
    %4853 = vmatpush1.bf16.msra.mxu0 %v3814
    %4854 = vmatprep.subr.bf16.mxu0 %v3935
    %4855 = vmatpush2.bf16.msra.mxu0 %v3934
    %4856 = vmatprep.subr.bf16.mxu0 %v3927
    %4857 = vmatpush2.bf16.msra.mxu0 %v3926
    %4858 = vmatprep.subr.bf16.mxu0 %v3919
    %4859 = vmatpush2.bf16.msra.mxu0 %v3918
    %4860 = vmatprep.subr.bf16.mxu0 %v3911
    %4861 = vmatpush2.bf16.msra.mxu0 %v3910
    %4862 = vmatprep.subr.bf16.mxu0 %v3903
    %4863 = vmatpush2.bf16.msra.mxu0 %v3902
    %4864 = vmatprep.subr.bf16.mxu0 %v3895
    %4865 = vmatpush2.bf16.msra.mxu0 %v3894
    %4866 = vmatprep.subr.bf16.mxu0 %v3887
    %4867 = vmatpush2.bf16.msra.mxu0 %v3886
    %4868 = vmatprep.subr.bf16.mxu0 %v3879
    %4869 = vmatpush2.bf16.msra.mxu0 %v3878
    %4870 = vmatprep.mubr.bf16.mxu0 %v1505
    %4871 = vmatmul.mubr.bf16.gmra.mxu0 %v1504
    %v4872 = vpop.f32.mrf.mxu0
    %v4873 = vadd.f32 %v4830, %v4872
    %v4874 = vpop.f32.mrf.mxu0
    %v4875 = vadd.f32 %v4832, %v4874
    %v4876 = vpop.f32.mrf.mxu0
    %v4877 = vadd.f32 %v4834, %v4876
    %v4878 = vpop.f32.mrf.mxu0
    %v4879 = vadd.f32 %v4836, %v4878
    %4880 = vdwg.mxu0
    %4881 = vmatprep.subr.bf16.mxu0 %v3999
    %4882 = vmatpush1.bf16.msra.mxu0 %v3998
    %4883 = vmatprep.subr.bf16.mxu0 %v3991
    %4884 = vmatpush1.bf16.msra.mxu0 %v3990
    %4885 = vmatprep.subr.bf16.mxu0 %v3983
    %4886 = vmatpush1.bf16.msra.mxu0 %v3982
    %4887 = vmatprep.subr.bf16.mxu0 %v3975
    %4888 = vmatpush1.bf16.msra.mxu0 %v3974
    %4889 = vmatprep.subr.bf16.mxu0 %v3967
    %4890 = vmatpush1.bf16.msra.mxu0 %v3966
    %4891 = vmatprep.subr.bf16.mxu0 %v3959
    %4892 = vmatpush1.bf16.msra.mxu0 %v3958
    %4893 = vmatprep.subr.bf16.mxu0 %v3951
    %4894 = vmatpush1.bf16.msra.mxu0 %v3950
    %4895 = vmatprep.subr.bf16.mxu0 %v3943
    %4896 = vmatpush1.bf16.msra.mxu0 %v3942
    %4897 = vmatprep.subr.bf16.mxu0 %v4063
    %4898 = vmatpush2.bf16.msra.mxu0 %v4062
    %4899 = vmatprep.subr.bf16.mxu0 %v4055
    %4900 = vmatpush2.bf16.msra.mxu0 %v4054
    %4901 = vmatprep.subr.bf16.mxu0 %v4047
    %4902 = vmatpush2.bf16.msra.mxu0 %v4046
    %4903 = vmatprep.subr.bf16.mxu0 %v4039
    %4904 = vmatpush2.bf16.msra.mxu0 %v4038
    %4905 = vmatprep.subr.bf16.mxu0 %v4031
    %4906 = vmatpush2.bf16.msra.mxu0 %v4030
    %4907 = vmatprep.subr.bf16.mxu0 %v4023
    %4908 = vmatpush2.bf16.msra.mxu0 %v4022
    %4909 = vmatprep.subr.bf16.mxu0 %v4015
    %4910 = vmatpush2.bf16.msra.mxu0 %v4014
    %4911 = vmatprep.subr.bf16.mxu0 %v4007
    %4912 = vmatpush2.bf16.msra.mxu0 %v4006
    %4913 = vmatprep.mubr.bf16.mxu0 %v1507
    %4914 = vmatmul.mubr.bf16.gmra.mxu0 %v1506
    %v4915 = vpop.f32.mrf.mxu0
    %v4916 = vadd.f32 %v4873, %v4915
    %v4917 = vpop.f32.mrf.mxu0
    %v4918 = vadd.f32 %v4875, %v4917
    %v4919 = vpop.f32.mrf.mxu0
    %v4920 = vadd.f32 %v4877, %v4919
    %v4921 = vpop.f32.mrf.mxu0
    %v4922 = vadd.f32 %v4879, %v4921
    %4923 = vdwg.mxu0
    %4924 = vmatprep.subr.bf16.mxu0 %v3617
    %4925 = vmatpush1.bf16.msra.mxu0 %v3616
    %4926 = vmatprep.subr.bf16.mxu0 %v3609
    %4927 = vmatpush1.bf16.msra.mxu0 %v3608
    %4928 = vmatprep.subr.bf16.mxu0 %v3601
    %4929 = vmatpush1.bf16.msra.mxu0 %v3600
    %4930 = vmatprep.subr.bf16.mxu0 %v3593
    %4931 = vmatpush1.bf16.msra.mxu0 %v3592
    %4932 = vmatprep.subr.bf16.mxu0 %v3585
    %4933 = vmatpush1.bf16.msra.mxu0 %v3584
    %4934 = vmatprep.subr.bf16.mxu0 %v3577
    %4935 = vmatpush1.bf16.msra.mxu0 %v3576
    %4936 = vmatprep.subr.bf16.mxu0 %v3569
    %4937 = vmatpush1.bf16.msra.mxu0 %v3568
    %4938 = vmatprep.subr.bf16.mxu0 %v3561
    %4939 = vmatpush1.bf16.msra.mxu0 %v3560
    %4940 = vmatprep.subr.bf16.mxu0 %v3681
    %4941 = vmatpush2.bf16.msra.mxu0 %v3680
    %4942 = vmatprep.subr.bf16.mxu0 %v3673
    %4943 = vmatpush2.bf16.msra.mxu0 %v3672
    %4944 = vmatprep.subr.bf16.mxu0 %v3665
    %4945 = vmatpush2.bf16.msra.mxu0 %v3664
    %4946 = vmatprep.subr.bf16.mxu0 %v3657
    %4947 = vmatpush2.bf16.msra.mxu0 %v3656
    %4948 = vmatprep.subr.bf16.mxu0 %v3649
    %4949 = vmatpush2.bf16.msra.mxu0 %v3648
    %4950 = vmatprep.subr.bf16.mxu0 %v3641
    %4951 = vmatpush2.bf16.msra.mxu0 %v3640
    %4952 = vmatprep.subr.bf16.mxu0 %v3633
    %4953 = vmatpush2.bf16.msra.mxu0 %v3632
    %4954 = vmatprep.subr.bf16.mxu0 %v3625
    %4955 = vmatpush2.bf16.msra.mxu0 %v3624
    %4956 = vmatprep.mubr.bf16.mxu0 %v1501
    %4957 = vmatmul.mubr.bf16.gmra.mxu0 %v1500
    %v4958 = vpop.f32.mrf.mxu0
    %v4959 = vadd.f32 0.0, %v4958
    %v4960 = vpop.f32.mrf.mxu0
    %v4961 = vadd.f32 0.0, %v4960
    %v4962 = vpop.f32.mrf.mxu0
    %v4963 = vadd.f32 0.0, %v4962
    %v4964 = vpop.f32.mrf.mxu0
    %v4965 = vadd.f32 0.0, %v4964
    %4966 = vdwg.mxu0
    %4967 = vmatprep.subr.bf16.mxu0 %v3745
    %4968 = vmatpush1.bf16.msra.mxu0 %v3744
    %4969 = vmatprep.subr.bf16.mxu0 %v3737
    %4970 = vmatpush1.bf16.msra.mxu0 %v3736
    %4971 = vmatprep.subr.bf16.mxu0 %v3729
    %4972 = vmatpush1.bf16.msra.mxu0 %v3728
    %4973 = vmatprep.subr.bf16.mxu0 %v3721
    %4974 = vmatpush1.bf16.msra.mxu0 %v3720
    %4975 = vmatprep.subr.bf16.mxu0 %v3713
    %4976 = vmatpush1.bf16.msra.mxu0 %v3712
    %4977 = vmatprep.subr.bf16.mxu0 %v3705
    %4978 = vmatpush1.bf16.msra.mxu0 %v3704
    %4979 = vmatprep.subr.bf16.mxu0 %v3697
    %4980 = vmatpush1.bf16.msra.mxu0 %v3696
    %4981 = vmatprep.subr.bf16.mxu0 %v3689
    %4982 = vmatpush1.bf16.msra.mxu0 %v3688
    %4983 = vmatprep.subr.bf16.mxu0 %v3809
    %4984 = vmatpush2.bf16.msra.mxu0 %v3808
    %4985 = vmatprep.subr.bf16.mxu0 %v3801
    %4986 = vmatpush2.bf16.msra.mxu0 %v3800
    %4987 = vmatprep.subr.bf16.mxu0 %v3793
    %4988 = vmatpush2.bf16.msra.mxu0 %v3792
    %4989 = vmatprep.subr.bf16.mxu0 %v3785
    %4990 = vmatpush2.bf16.msra.mxu0 %v3784
    %4991 = vmatprep.subr.bf16.mxu0 %v3777
    %4992 = vmatpush2.bf16.msra.mxu0 %v3776
    %4993 = vmatprep.subr.bf16.mxu0 %v3769
    %4994 = vmatpush2.bf16.msra.mxu0 %v3768
    %4995 = vmatprep.subr.bf16.mxu0 %v3761
    %4996 = vmatpush2.bf16.msra.mxu0 %v3760
    %4997 = vmatprep.subr.bf16.mxu0 %v3753
    %4998 = vmatpush2.bf16.msra.mxu0 %v3752
    %4999 = vmatprep.mubr.bf16.mxu0 %v1503
    %5000 = vmatmul.mubr.bf16.gmra.mxu0 %v1502
    %v5001 = vpop.f32.mrf.mxu0
    %v5002 = vadd.f32 %v4959, %v5001
    %v5003 = vpop.f32.mrf.mxu0
    %v5004 = vadd.f32 %v4961, %v5003
    %v5005 = vpop.f32.mrf.mxu0
    %v5006 = vadd.f32 %v4963, %v5005
    %v5007 = vpop.f32.mrf.mxu0
    %v5008 = vadd.f32 %v4965, %v5007
    %5009 = vdwg.mxu0
    %5010 = vmatprep.subr.bf16.mxu0 %v3873
    %5011 = vmatpush1.bf16.msra.mxu0 %v3872
    %5012 = vmatprep.subr.bf16.mxu0 %v3865
    %5013 = vmatpush1.bf16.msra.mxu0 %v3864
    %5014 = vmatprep.subr.bf16.mxu0 %v3857
    %5015 = vmatpush1.bf16.msra.mxu0 %v3856
    %5016 = vmatprep.subr.bf16.mxu0 %v3849
    %5017 = vmatpush1.bf16.msra.mxu0 %v3848
    %5018 = vmatprep.subr.bf16.mxu0 %v3841
    %5019 = vmatpush1.bf16.msra.mxu0 %v3840
    %5020 = vmatprep.subr.bf16.mxu0 %v3833
    %5021 = vmatpush1.bf16.msra.mxu0 %v3832
    %5022 = vmatprep.subr.bf16.mxu0 %v3825
    %5023 = vmatpush1.bf16.msra.mxu0 %v3824
    %5024 = vmatprep.subr.bf16.mxu0 %v3817
    %5025 = vmatpush1.bf16.msra.mxu0 %v3816
    %5026 = vmatprep.subr.bf16.mxu0 %v3937
    %5027 = vmatpush2.bf16.msra.mxu0 %v3936
    %5028 = vmatprep.subr.bf16.mxu0 %v3929
    %5029 = vmatpush2.bf16.msra.mxu0 %v3928
    %5030 = vmatprep.subr.bf16.mxu0 %v3921
    %5031 = vmatpush2.bf16.msra.mxu0 %v3920
    %5032 = vmatprep.subr.bf16.mxu0 %v3913
    %5033 = vmatpush2.bf16.msra.mxu0 %v3912
    %5034 = vmatprep.subr.bf16.mxu0 %v3905
    %5035 = vmatpush2.bf16.msra.mxu0 %v3904
    %5036 = vmatprep.subr.bf16.mxu0 %v3897
    %5037 = vmatpush2.bf16.msra.mxu0 %v3896
    %5038 = vmatprep.subr.bf16.mxu0 %v3889
    %5039 = vmatpush2.bf16.msra.mxu0 %v3888
    %5040 = vmatprep.subr.bf16.mxu0 %v3881
    %5041 = vmatpush2.bf16.msra.mxu0 %v3880
    %5042 = vmatprep.mubr.bf16.mxu0 %v1505
    %5043 = vmatmul.mubr.bf16.gmra.mxu0 %v1504
    %v5044 = vpop.f32.mrf.mxu0
    %v5045 = vadd.f32 %v5002, %v5044
    %v5046 = vpop.f32.mrf.mxu0
    %v5047 = vadd.f32 %v5004, %v5046
    %v5048 = vpop.f32.mrf.mxu0
    %v5049 = vadd.f32 %v5006, %v5048
    %v5050 = vpop.f32.mrf.mxu0
    %v5051 = vadd.f32 %v5008, %v5050
    %5052 = vdwg.mxu0
    %5053 = vmatprep.subr.bf16.mxu0 %v4001
    %5054 = vmatpush1.bf16.msra.mxu0 %v4000
    %5055 = vmatprep.subr.bf16.mxu0 %v3993
    %5056 = vmatpush1.bf16.msra.mxu0 %v3992
    %5057 = vmatprep.subr.bf16.mxu0 %v3985
    %5058 = vmatpush1.bf16.msra.mxu0 %v3984
    %5059 = vmatprep.subr.bf16.mxu0 %v3977
    %5060 = vmatpush1.bf16.msra.mxu0 %v3976
    %5061 = vmatprep.subr.bf16.mxu0 %v3969
    %5062 = vmatpush1.bf16.msra.mxu0 %v3968
    %5063 = vmatprep.subr.bf16.mxu0 %v3961
    %5064 = vmatpush1.bf16.msra.mxu0 %v3960
    %5065 = vmatprep.subr.bf16.mxu0 %v3953
    %5066 = vmatpush1.bf16.msra.mxu0 %v3952
    %5067 = vmatprep.subr.bf16.mxu0 %v3945
    %5068 = vmatpush1.bf16.msra.mxu0 %v3944
    %5069 = vmatprep.subr.bf16.mxu0 %v4065
    %5070 = vmatpush2.bf16.msra.mxu0 %v4064
    %5071 = vmatprep.subr.bf16.mxu0 %v4057
    %5072 = vmatpush2.bf16.msra.mxu0 %v4056
    %5073 = vmatprep.subr.bf16.mxu0 %v4049
    %5074 = vmatpush2.bf16.msra.mxu0 %v4048
    %5075 = vmatprep.subr.bf16.mxu0 %v4041
    %5076 = vmatpush2.bf16.msra.mxu0 %v4040
    %5077 = vmatprep.subr.bf16.mxu0 %v4033
    %5078 = vmatpush2.bf16.msra.mxu0 %v4032
    %5079 = vmatprep.subr.bf16.mxu0 %v4025
    %5080 = vmatpush2.bf16.msra.mxu0 %v4024
    %5081 = vmatprep.subr.bf16.mxu0 %v4017
    %5082 = vmatpush2.bf16.msra.mxu0 %v4016
    %5083 = vmatprep.subr.bf16.mxu0 %v4009
    %5084 = vmatpush2.bf16.msra.mxu0 %v4008
    %5085 = vmatprep.mubr.bf16.mxu0 %v1507
    %5086 = vmatmul.mubr.bf16.gmra.mxu0 %v1506
    %v5087 = vpop.f32.mrf.mxu0
    %v5088 = vadd.f32 %v5045, %v5087
    %v5089 = vpop.f32.mrf.mxu0
    %v5090 = vadd.f32 %v5047, %v5089
    %v5091 = vpop.f32.mrf.mxu0
    %v5092 = vadd.f32 %v5049, %v5091
    %v5093 = vpop.f32.mrf.mxu0
    %v5094 = vadd.f32 %v5051, %v5093
    %5095 = vdwg.mxu0
    %5096 = vmatprep.subr.bf16.mxu0 %v3619
    %5097 = vmatpush1.bf16.msra.mxu0 %v3618
    %5098 = vmatprep.subr.bf16.mxu0 %v3611
    %5099 = vmatpush1.bf16.msra.mxu0 %v3610
    %5100 = vmatprep.subr.bf16.mxu0 %v3603
    %5101 = vmatpush1.bf16.msra.mxu0 %v3602
    %5102 = vmatprep.subr.bf16.mxu0 %v3595
    %5103 = vmatpush1.bf16.msra.mxu0 %v3594
    %5104 = vmatprep.subr.bf16.mxu0 %v3587
    %5105 = vmatpush1.bf16.msra.mxu0 %v3586
    %5106 = vmatprep.subr.bf16.mxu0 %v3579
    %5107 = vmatpush1.bf16.msra.mxu0 %v3578
    %5108 = vmatprep.subr.bf16.mxu0 %v3571
    %5109 = vmatpush1.bf16.msra.mxu0 %v3570
    %5110 = vmatprep.subr.bf16.mxu0 %v3563
    %5111 = vmatpush1.bf16.msra.mxu0 %v3562
    %5112 = vmatprep.subr.bf16.mxu0 %v3683
    %5113 = vmatpush2.bf16.msra.mxu0 %v3682
    %5114 = vmatprep.subr.bf16.mxu0 %v3675
    %5115 = vmatpush2.bf16.msra.mxu0 %v3674
    %5116 = vmatprep.subr.bf16.mxu0 %v3667
    %5117 = vmatpush2.bf16.msra.mxu0 %v3666
    %5118 = vmatprep.subr.bf16.mxu0 %v3659
    %5119 = vmatpush2.bf16.msra.mxu0 %v3658
    %5120 = vmatprep.subr.bf16.mxu0 %v3651
    %5121 = vmatpush2.bf16.msra.mxu0 %v3650
    %5122 = vmatprep.subr.bf16.mxu0 %v3643
    %5123 = vmatpush2.bf16.msra.mxu0 %v3642
    %5124 = vmatprep.subr.bf16.mxu0 %v3635
    %5125 = vmatpush2.bf16.msra.mxu0 %v3634
    %5126 = vmatprep.subr.bf16.mxu0 %v3627
    %5127 = vmatpush2.bf16.msra.mxu0 %v3626
    %5128 = vmatprep.mubr.bf16.mxu0 %v1501
    %5129 = vmatmul.mubr.bf16.gmra.mxu0 %v1500
    %v5130 = vpop.f32.mrf.mxu0
    %v5131 = vadd.f32 0.0, %v5130
    %v5132 = vpop.f32.mrf.mxu0
    %v5133 = vadd.f32 0.0, %v5132
    %v5134 = vpop.f32.mrf.mxu0
    %v5135 = vadd.f32 0.0, %v5134
    %v5136 = vpop.f32.mrf.mxu0
    %v5137 = vadd.f32 0.0, %v5136
    %5138 = vdwg.mxu0
    %5139 = vmatprep.subr.bf16.mxu0 %v3747
    %5140 = vmatpush1.bf16.msra.mxu0 %v3746
    %5141 = vmatprep.subr.bf16.mxu0 %v3739
    %5142 = vmatpush1.bf16.msra.mxu0 %v3738
    %5143 = vmatprep.subr.bf16.mxu0 %v3731
    %5144 = vmatpush1.bf16.msra.mxu0 %v3730
    %5145 = vmatprep.subr.bf16.mxu0 %v3723
    %5146 = vmatpush1.bf16.msra.mxu0 %v3722
    %5147 = vmatprep.subr.bf16.mxu0 %v3715
    %5148 = vmatpush1.bf16.msra.mxu0 %v3714
    %5149 = vmatprep.subr.bf16.mxu0 %v3707
    %5150 = vmatpush1.bf16.msra.mxu0 %v3706
    %5151 = vmatprep.subr.bf16.mxu0 %v3699
    %5152 = vmatpush1.bf16.msra.mxu0 %v3698
    %5153 = vmatprep.subr.bf16.mxu0 %v3691
    %5154 = vmatpush1.bf16.msra.mxu0 %v3690
    %5155 = vmatprep.subr.bf16.mxu0 %v3811
    %5156 = vmatpush2.bf16.msra.mxu0 %v3810
    %5157 = vmatprep.subr.bf16.mxu0 %v3803
    %5158 = vmatpush2.bf16.msra.mxu0 %v3802
    %5159 = vmatprep.subr.bf16.mxu0 %v3795
    %5160 = vmatpush2.bf16.msra.mxu0 %v3794
    %5161 = vmatprep.subr.bf16.mxu0 %v3787
    %5162 = vmatpush2.bf16.msra.mxu0 %v3786
    %5163 = vmatprep.subr.bf16.mxu0 %v3779
    %5164 = vmatpush2.bf16.msra.mxu0 %v3778
    %5165 = vmatprep.subr.bf16.mxu0 %v3771
    %5166 = vmatpush2.bf16.msra.mxu0 %v3770
    %5167 = vmatprep.subr.bf16.mxu0 %v3763
    %5168 = vmatpush2.bf16.msra.mxu0 %v3762
    %5169 = vmatprep.subr.bf16.mxu0 %v3755
    %5170 = vmatpush2.bf16.msra.mxu0 %v3754
    %5171 = vmatprep.mubr.bf16.mxu0 %v1503
    %5172 = vmatmul.mubr.bf16.gmra.mxu0 %v1502
    %v5173 = vpop.f32.mrf.mxu0
    %v5174 = vadd.f32 %v5131, %v5173
    %v5175 = vpop.f32.mrf.mxu0
    %v5176 = vadd.f32 %v5133, %v5175
    %v5177 = vpop.f32.mrf.mxu0
    %v5178 = vadd.f32 %v5135, %v5177
    %v5179 = vpop.f32.mrf.mxu0
    %v5180 = vadd.f32 %v5137, %v5179
    %5181 = vdwg.mxu0
    %5182 = vmatprep.subr.bf16.mxu0 %v3875
    %5183 = vmatpush1.bf16.msra.mxu0 %v3874
    %5184 = vmatprep.subr.bf16.mxu0 %v3867
    %5185 = vmatpush1.bf16.msra.mxu0 %v3866
    %5186 = vmatprep.subr.bf16.mxu0 %v3859
    %5187 = vmatpush1.bf16.msra.mxu0 %v3858
    %5188 = vmatprep.subr.bf16.mxu0 %v3851
    %5189 = vmatpush1.bf16.msra.mxu0 %v3850
    %5190 = vmatprep.subr.bf16.mxu0 %v3843
    %5191 = vmatpush1.bf16.msra.mxu0 %v3842
    %5192 = vmatprep.subr.bf16.mxu0 %v3835
    %5193 = vmatpush1.bf16.msra.mxu0 %v3834
    %5194 = vmatprep.subr.bf16.mxu0 %v3827
    %5195 = vmatpush1.bf16.msra.mxu0 %v3826
    %5196 = vmatprep.subr.bf16.mxu0 %v3819
    %5197 = vmatpush1.bf16.msra.mxu0 %v3818
    %5198 = vmatprep.subr.bf16.mxu0 %v3939
    %5199 = vmatpush2.bf16.msra.mxu0 %v3938
    %5200 = vmatprep.subr.bf16.mxu0 %v3931
    %5201 = vmatpush2.bf16.msra.mxu0 %v3930
    %5202 = vmatprep.subr.bf16.mxu0 %v3923
    %5203 = vmatpush2.bf16.msra.mxu0 %v3922
    %5204 = vmatprep.subr.bf16.mxu0 %v3915
    %5205 = vmatpush2.bf16.msra.mxu0 %v3914
    %5206 = vmatprep.subr.bf16.mxu0 %v3907
    %5207 = vmatpush2.bf16.msra.mxu0 %v3906
    %5208 = vmatprep.subr.bf16.mxu0 %v3899
    %5209 = vmatpush2.bf16.msra.mxu0 %v3898
    %5210 = vmatprep.subr.bf16.mxu0 %v3891
    %5211 = vmatpush2.bf16.msra.mxu0 %v3890
    %5212 = vmatprep.subr.bf16.mxu0 %v3883
    %5213 = vmatpush2.bf16.msra.mxu0 %v3882
    %5214 = vmatprep.mubr.bf16.mxu0 %v1505
    %5215 = vmatmul.mubr.bf16.gmra.mxu0 %v1504
    %v5216 = vpop.f32.mrf.mxu0
    %v5217 = vadd.f32 %v5174, %v5216
    %v5218 = vpop.f32.mrf.mxu0
    %v5219 = vadd.f32 %v5176, %v5218
    %v5220 = vpop.f32.mrf.mxu0
    %v5221 = vadd.f32 %v5178, %v5220
    %v5222 = vpop.f32.mrf.mxu0
    %v5223 = vadd.f32 %v5180, %v5222
    %5224 = vdwg.mxu0
    %5225 = vmatprep.subr.bf16.mxu0 %v4003
    %5226 = vmatpush1.bf16.msra.mxu0 %v4002
    %5227 = vmatprep.subr.bf16.mxu0 %v3995
    %5228 = vmatpush1.bf16.msra.mxu0 %v3994
    %5229 = vmatprep.subr.bf16.mxu0 %v3987
    %5230 = vmatpush1.bf16.msra.mxu0 %v3986
    %5231 = vmatprep.subr.bf16.mxu0 %v3979
    %5232 = vmatpush1.bf16.msra.mxu0 %v3978
    %5233 = vmatprep.subr.bf16.mxu0 %v3971
    %5234 = vmatpush1.bf16.msra.mxu0 %v3970
    %5235 = vmatprep.subr.bf16.mxu0 %v3963
    %5236 = vmatpush1.bf16.msra.mxu0 %v3962
    %5237 = vmatprep.subr.bf16.mxu0 %v3955
    %5238 = vmatpush1.bf16.msra.mxu0 %v3954
    %5239 = vmatprep.subr.bf16.mxu0 %v3947
    %5240 = vmatpush1.bf16.msra.mxu0 %v3946
    %5241 = vmatprep.subr.bf16.mxu0 %v4067
    %5242 = vmatpush2.bf16.msra.mxu0 %v4066
    %5243 = vmatprep.subr.bf16.mxu0 %v4059
    %5244 = vmatpush2.bf16.msra.mxu0 %v4058
    %5245 = vmatprep.subr.bf16.mxu0 %v4051
    %5246 = vmatpush2.bf16.msra.mxu0 %v4050
    %5247 = vmatprep.subr.bf16.mxu0 %v4043
    %5248 = vmatpush2.bf16.msra.mxu0 %v4042
    %5249 = vmatprep.subr.bf16.mxu0 %v4035
    %5250 = vmatpush2.bf16.msra.mxu0 %v4034
    %5251 = vmatprep.subr.bf16.mxu0 %v4027
    %5252 = vmatpush2.bf16.msra.mxu0 %v4026
    %5253 = vmatprep.subr.bf16.mxu0 %v4019
    %5254 = vmatpush2.bf16.msra.mxu0 %v4018
    %5255 = vmatprep.subr.bf16.mxu0 %v4011
    %5256 = vmatpush2.bf16.msra.mxu0 %v4010
    %5257 = vmatprep.mubr.bf16.mxu0 %v1507
    %5258 = vmatmul.mubr.bf16.gmra.mxu0 %v1506
    %v5259 = vpop.f32.mrf.mxu0
    %v5260 = vadd.f32 %v5217, %v5259
    %v5261 = vpop.f32.mrf.mxu0
    %v5262 = vadd.f32 %v5219, %v5261
    %v5263 = vpop.f32.mrf.mxu0
    %v5264 = vadd.f32 %v5221, %v5263
    %v5265 = vpop.f32.mrf.mxu0
    %v5266 = vadd.f32 %v5223, %v5265
    %5267 = vdwg.mxu0
    %v5268 = vpack.c.bf16 %v4748, %v4744
    %v5269 = vpack.c.bf16 %v4750, %v4746
    %v5270 = vpack.c.bf16 %v4920, %v4916
    %v5271 = vpack.c.bf16 %v4922, %v4918
    %v5272 = vpack.c.bf16 %v5092, %v5088
    %v5273 = vpack.c.bf16 %v5094, %v5090
    %v5274 = vpack.c.bf16 %v5264, %v5260
    %v5275 = vpack.c.bf16 %v5266, %v5262
    %v5276 = vld [vmem:[#allocation13] sm:$0xff]
    %v5278 = vcombine.high %v5276, %v5276
    %v5280 = vunpack.c.l.s4 1966171168
    %v5281 = vunpack.c.0.s8 %v5280
    %v5282 = vlaneseq
    %v5283 = vshrl.u32 %v5282, 7
    %v5284 = vsub.s32 %v5281, %v5283
    %v5285 = vrot.slane %v5276, %v5284
    %v5287 = vunpack.c.l.s4 1966171168
    %v5288 = vunpack.c.0.s8 %v5287
    %v5289 = vlaneseq
    %v5290 = vshrl.u32 %v5289, 7
    %v5291 = vsub.s32 %v5288, %v5290
    %v5292 = vrot.slane %v5278, %v5291
    %v5293 = vcombine.high %v5285, %v5285
    %v5294 = vcombine.high %v5292, %v5292
    %v5296 = vunpack.c.l.s4 1966171168
    %v5297 = vunpack.c.0.s8 %v5296
    %v5298 = vlaneseq
    %v5299 = vshrl.u32 %v5298, 7
    %v5300 = vsub.s32 %v5297, %v5299
    %v5301 = vrot.slane %v5285, %v5300
    %v5303 = vunpack.c.l.s4 1966171168
    %v5304 = vunpack.c.0.s8 %v5303
    %v5305 = vlaneseq
    %v5306 = vshrl.u32 %v5305, 7
    %v5307 = vsub.s32 %v5304, %v5306
    %v5308 = vrot.slane %v5292, %v5307
    %v5310 = vunpack.c.l.s4 1966171168
    %v5311 = vunpack.c.0.s8 %v5310
    %v5312 = vlaneseq
    %v5313 = vshrl.u32 %v5312, 7
    %v5314 = vsub.s32 %v5311, %v5313
    %v5315 = vrot.slane %v5293, %v5314
    %v5317 = vunpack.c.l.s4 1966171168
    %v5318 = vunpack.c.0.s8 %v5317
    %v5319 = vlaneseq
    %v5320 = vshrl.u32 %v5319, 7
    %v5321 = vsub.s32 %v5318, %v5320
    %v5322 = vrot.slane %v5294, %v5321
    %v5323 = vcombine.high %v5301, %v5301
    %v5324 = vcombine.high %v5308, %v5308
    %v5325 = vcombine.high %v5315, %v5315
    %v5326 = vcombine.high %v5322, %v5322
    %v5328 = vpack.i.b16 %v5301, %v5301
    %v5330 = vlaneseq
    %v5331 = vshrl.u32 %v5330, 7
    %v5332 = vsub.s32 0, %v5331
    %v5333 = vrot.slane %v5328, %v5332
    %v5335 = vpack.i.b16 %v5315, %v5315
    %v5337 = vlaneseq
    %v5338 = vshrl.u32 %v5337, 7
    %v5339 = vsub.s32 0, %v5338
    %v5340 = vrot.slane %v5335, %v5339
    %v5342 = vpack.i.b16 %v5323, %v5323
    %v5344 = vlaneseq
    %v5345 = vshrl.u32 %v5344, 7
    %v5346 = vsub.s32 0, %v5345
    %v5347 = vrot.slane %v5342, %v5346
    %v5349 = vpack.i.b16 %v5325, %v5325
    %v5351 = vlaneseq
    %v5352 = vshrl.u32 %v5351, 7
    %v5353 = vsub.s32 0, %v5352
    %v5354 = vrot.slane %v5349, %v5353
    %v5356 = vpack.i.b16 %v5308, %v5308
    %v5358 = vlaneseq
    %v5359 = vshrl.u32 %v5358, 7
    %v5360 = vsub.s32 0, %v5359
    %v5361 = vrot.slane %v5356, %v5360
    %v5363 = vpack.i.b16 %v5322, %v5322
    %v5365 = vlaneseq
    %v5366 = vshrl.u32 %v5365, 7
    %v5367 = vsub.s32 0, %v5366
    %v5368 = vrot.slane %v5363, %v5367
    %v5370 = vpack.i.b16 %v5324, %v5324
    %v5372 = vlaneseq
    %v5373 = vshrl.u32 %v5372, 7
    %v5374 = vsub.s32 0, %v5373
    %v5375 = vrot.slane %v5370, %v5374
    %v5377 = vpack.i.b16 %v5326, %v5326
    %v5379 = vlaneseq
    %v5380 = vshrl.u32 %v5379, 7
    %v5381 = vsub.s32 0, %v5380
    %v5382 = vrot.slane %v5377, %v5381
    %v5383 = vadd.bf16 %v5268, %v5333
    %v5384 = vadd.bf16 %v5269, %v5340
    %v5385 = vadd.bf16 %v5270, %v5347
    %v5386 = vadd.bf16 %v5271, %v5354
    %v5387 = vadd.bf16 %v5272, %v5361
    %v5388 = vadd.bf16 %v5273, %v5368
    %v5389 = vadd.bf16 %v5274, %v5375
    %v5390 = vadd.bf16 %v5275, %v5382
    %v5391 = vmax.bf16 %v5383, 0
    %v5392 = vmax.bf16 %v5384, 0
    %v5393 = vmax.bf16 %v5385, 0
    %v5394 = vmax.bf16 %v5386, 0
    %v5395 = vmax.bf16 %v5387, 0
    %v5396 = vmax.bf16 %v5388, 0
    %v5397 = vmax.bf16 %v5389, 0
    %v5398 = vmax.bf16 %v5390, 0
    %v5399 = vunpack.c.l.bf16 %v5391
    %v5400 = vunpack.c.l.bf16 %v5392
    %v5401 = vunpack.c.l.bf16 %v5393
    %v5402 = vunpack.c.l.bf16 %v5394
    %v5403 = vunpack.c.l.bf16 %v5395
    %v5404 = vunpack.c.l.bf16 %v5396
    %v5405 = vunpack.c.l.bf16 %v5397
    %v5406 = vunpack.c.l.bf16 %v5398
    %v5407 = vunpack.c.h.bf16 %v5391
    %v5408 = vunpack.c.h.bf16 %v5392
    %v5409 = vunpack.c.h.bf16 %v5393
    %v5410 = vunpack.c.h.bf16 %v5394
    %v5411 = vunpack.c.h.bf16 %v5395
    %v5412 = vunpack.c.h.bf16 %v5396
    %v5413 = vunpack.c.h.bf16 %v5397
    %v5414 = vunpack.c.h.bf16 %v5398
    %v5415 = vld [vmem:[#allocation14] sm:$0xff]
    %v5417 = vlaneseq
    %v5418 = vshrl.u32 %v5417, 7
    %v5419 = vsub.s32 0, %v5418
    %v5420 = vrot.slane %v5415, %v5419
    %v5421 = vlaneseq
    %v5422 = vshrl.u32 %v5421, 7
    %v5423 = vsub.s32 1, %v5422
    %v5424 = vrot.slane %v5415, %v5423
    %v5425 = vlaneseq
    %v5426 = vshrl.u32 %v5425, 7
    %v5427 = vsub.s32 2, %v5426
    %v5428 = vrot.slane %v5415, %v5427
    %v5429 = vlaneseq
    %v5430 = vshrl.u32 %v5429, 7
    %v5431 = vsub.s32 3, %v5430
    %v5432 = vrot.slane %v5415, %v5431
    %v5433 = vlaneseq
    %v5434 = vshrl.u32 %v5433, 7
    %v5435 = vsub.s32 4, %v5434
    %v5436 = vrot.slane %v5415, %v5435
    %v5437 = vlaneseq
    %v5438 = vshrl.u32 %v5437, 7
    %v5439 = vsub.s32 5, %v5438
    %v5440 = vrot.slane %v5415, %v5439
    %v5441 = vlaneseq
    %v5442 = vshrl.u32 %v5441, 7
    %v5443 = vsub.s32 6, %v5442
    %v5444 = vrot.slane %v5415, %v5443
    %v5445 = vlaneseq
    %v5446 = vshrl.u32 %v5445, 7
    %v5447 = vsub.s32 7, %v5446
    %v5448 = vrot.slane %v5415, %v5447
    %v5457 = vmul.f32 %v5399, %v5420
    %v5458 = vmul.f32 %v5400, %v5424
    %v5459 = vmul.f32 %v5401, %v5428
    %v5460 = vmul.f32 %v5402, %v5432
    %v5461 = vmul.f32 %v5403, %v5436
    %v5462 = vmul.f32 %v5404, %v5440
    %v5463 = vmul.f32 %v5405, %v5444
    %v5464 = vmul.f32 %v5406, %v5448
    %v5465 = vmul.f32 %v5407, %v5420
    %v5466 = vmul.f32 %v5408, %v5424
    %v5467 = vmul.f32 %v5409, %v5428
    %v5468 = vmul.f32 %v5410, %v5432
    %v5469 = vmul.f32 %v5411, %v5436
    %v5470 = vmul.f32 %v5412, %v5440
    %v5471 = vmul.f32 %v5413, %v5444
    %v5472 = vmul.f32 %v5414, %v5448
    %v5473 = vadd.f32 %v5457, %v5458
    %v5474 = vadd.f32 %v5473, %v5459
    %v5475 = vadd.f32 %v5474, %v5460
    %v5476 = vadd.f32 %v5475, %v5461
    %v5477 = vadd.f32 %v5476, %v5462
    %v5478 = vadd.f32 %v5477, %v5463
    %v5479 = vadd.f32 %v5478, %v5464
    %5480 = vadd.xlane.f32.xlu0 %v5479
    %v5481 = vpop.xlane.xlu0 %5480
    %v5482 = vadd.f32 %v5465, %v5466
    %v5483 = vadd.f32 %v5482, %v5467
    %v5484 = vadd.f32 %v5483, %v5468
    %v5485 = vadd.f32 %v5484, %v5469
    %v5486 = vadd.f32 %v5485, %v5470
    %v5487 = vadd.f32 %v5486, %v5471
    %v5488 = vadd.f32 %v5487, %v5472
    %5489 = vadd.xlane.f32.xlu0 %v5488
    %v5490 = vpop.xlane.xlu0 %5489
    %v5491 = vld [vmem:[#allocation16] sm:$0x1]
    %v5493 = vlaneseq
    %v5494 = vshrl.u32 %v5493, 7
    %v5495 = vsub.s32 0, %v5494
    %v5496 = vrot.slane %v5491, %v5495
    %v5498 = vadd.f32 %v5481, %v5496
    %v5499 = vadd.f32 %v5490, %v5496
    %5500 = vst [vmem:[#allocation17] sm:$0xff] %v5498
    %5501 = vst [vmem:[#allocation17 + $0x8] sm:$0xff] %v5499
    // Predicated region
    $region74: #{tpu_custom_call.1} parent=1 // pred_check
      _
    $region75: #{tpu_custom_call.1} parent=1 // pred_check_branch
      %5503 = sbr.rel (0) target = $region77
    $region76: #{tpu_custom_call.1} parent=1 // pred_region
      %s5505 = ssub.s32 256, 256
      %5506 = vsyncadd [#allocation4], %s5505
      %s5507 = sshll.u32 [#allocation17], 4
      %s5508 = int_to_ptr.vmem [resolvable:$true] %s5507
      %5513 = dma.vmem_to_hbm [thread:$0]  %s5508, 256, %s9, [#allocation4], 128, 128, 8
    $region77: #{tpu_custom_call.1} parent=1 // pred_fallthru
      _
    // Predicated region
    $region78: #{tpu_custom_call.1} parent=1 // pred_check
      _
    $region79: #{tpu_custom_call.1} parent=1 // pred_check_branch
      %5515 = sbr.rel (0) target = $region81
    $region80: #{tpu_custom_call.1} parent=1 // pred_region
      %5516 = dma.done [#allocation4], 256
    $region81: #{tpu_custom_call.1} parent=1 // pred_fallthru
      _
    %5517 = vsyncpa [#allocation3], 1
    %5518 = vsyncpa [#allocation6], 1
    %5519 = vsyncpa [#allocation9], 1
    %5520 = vsyncpa [#allocation12], 1
    %5521 = vsyncpa [#allocation15], 1
    %5522 = vsyncpa [#allocation4], 1

</llo_original>
